<compile_context>
chip_gen: v7x
topology: tpu7x:2x2x1
jax: 0.10.0
libtpu: 0.0.40
codegen_flags: <defaults>
</compile_context>

<pallas_src>
import functools
import math

import jax
import jax.numpy as jnp
from jax import lax
from jax.experimental import pallas as pl
from jax.experimental.pallas import tpu as pltpu


# ------------------------------- small helpers ------------------------------

def group_channels(channel_size, cluster):
    channel_div = channel_size // cluster
    channel_mod = channel_size % cluster
    channel_list = [channel_div for _ in range(cluster)]
    channel_list[cluster - 1] += channel_mod
    return channel_list


def channel_shuffle(x, groups):
    n, c, h, w = x.shape
    x = x.reshape(n, groups, c // groups, h, w)
    x = jnp.transpose(x, (0, 2, 1, 3, 4))
    return x.reshape(n, c, h, w)


def avg_pool_3x3_s2_p1(x):
    # F.avg_pool2d(x, 3, stride=2, padding=1), count_include_pad=True (divide by 9).
    s = lax.reduce_window(x, 0.0, lax.add, (1, 1, 3, 3), (1, 1, 2, 2),
                          ((0, 0), (0, 0), (1, 1), (1, 1)))
    return s / 9.0


# ----------------------- fused pointwise (1x1) conv kernel ------------------
# Channel-major 1x1 conv + eval-BatchNorm [+ ReLU]:
#   Y[n, :, m] = act(scale * (W @ X[n, :, m]) + shift)
# grid = (N, M // TM); W / scale / shift stay resident across M tiles.

def _pw_bn_kernel(x_ref, w_ref, scale_ref, shift_ref, o_ref, *, apply_relu):
    # x_ref: (1, Cin, TM)  w_ref: (Cout, Cin)  scale/shift: (Cout, 1)  o_ref: (1, Cout, TM)
    y = jnp.dot(w_ref[...], x_ref[0],
                preferred_element_type=jnp.float32,
                precision=jax.lax.Precision.HIGHEST)
    y = y * scale_ref[...] + shift_ref[...]
    if apply_relu:
        y = jnp.maximum(y, 0.0)
    o_ref[0] = y


def _pick_m_tile(m, cin, cout, vmem_budget_bytes=8 * 1024 * 1024):
    # Double-buffered f32 input + output tiles must fit the budget (weights are tiny
    # and resident).  Leaves ample headroom under the 32 MiB scoped limit requested
    # below, which is itself safe on v7x's 64 MiB physical VMEM.
    per_row = 2 * 2 * (cin + cout) * 4
    cap = max(128, (vmem_budget_bytes // per_row) // 128 * 128)
    if m <= cap:
        return m
    t = cap
    while t >= 128:
        if m % t == 0:
            return t
        t -= 128
    return m  # TODO(synk): pad M instead of one big block for huge, indivisible M.


def pointwise_conv_bn(x, w, scale, shift, *, apply_relu):
    """x: (N, Cin, M) f32, w: (Cout, Cin), scale/shift: (Cout, 1) -> (N, Cout, M)."""
    n, cin, m = x.shape
    cout = w.shape[0]
    tm = _pick_m_tile(m, cin, cout)
    kernel = functools.partial(_pw_bn_kernel, apply_relu=apply_relu)
    cost = pl.CostEstimate(
        flops=int(2 * n * m * cin * cout),
        transcendentals=0,
        bytes_accessed=int(4 * (n * m * (cin + cout) + cout * cin + 2 * cout)),
    )
    return pl.pallas_call(
        kernel,
        out_shape=jax.ShapeDtypeStruct((n, cout, m), x.dtype),
        grid=(n, m // tm),
        in_specs=[
            pl.BlockSpec((1, cin, tm), lambda i, j: (i, 0, j)),
            pl.BlockSpec((cout, cin), lambda i, j: (0, 0)),
            pl.BlockSpec((cout, 1), lambda i, j: (0, 0)),
            pl.BlockSpec((cout, 1), lambda i, j: (0, 0)),
        ],
        out_specs=pl.BlockSpec((1, cout, tm), lambda i, j: (i, 0, j)),
        compiler_params=pltpu.CompilerParams(
            dimension_semantics=("parallel", "parallel"),
            vmem_limit_bytes=32 * 1024 * 1024,
        ),
        cost_estimate=cost,
    )(x, w, scale, shift)


# --------------------------- depthwise 3x3 kernel ---------------------------
# Channel-major depthwise conv over a pre-padded input; computes the stride-1
# ("valid") result, the wrapper applies the conv stride by subsampling.
# TODO(synk): fold the conv stride into the kernel's tap indexing (strided pl.ds)
#             instead of computing the stride-1 result and subsampling outside.

def _dw3x3_kernel(x_ref, w_ref, o_ref):
    # x_ref: (1, C, Hp, Wp)  w_ref: (9, C, 1, 1)  o_ref: (1, C, Hp-2, Wp-2)
    c, hs, ws = o_ref.shape[1], o_ref.shape[2], o_ref.shape[3]
    acc = jnp.zeros((c, hs, ws), jnp.float32)
    for kh in range(3):
        for kw in range(3):
            patch = x_ref[0, :, pl.ds(kh, hs), pl.ds(kw, ws)]   # (C, Hs, Ws)
            acc = acc + patch * w_ref[kh * 3 + kw]              # (C, 1, 1) broadcast
    o_ref[0] = acc


def depthwise_conv3x3(x, w9, pad):
    """x: (N, C, H, W), w9: (9, C, 1, 1). Returns the stride-1 conv with `pad`."""
    xp = jnp.pad(x, ((0, 0), (0, 0), (pad, pad), (pad, pad)))
    n, c, hp, wp = xp.shape
    hs, ws = hp - 2, wp - 2
    return pl.pallas_call(
        _dw3x3_kernel,
        out_shape=jax.ShapeDtypeStruct((n, c, hs, ws), x.dtype),
        grid=(n,),
        in_specs=[
            pl.BlockSpec((1, c, hp, wp), lambda i: (i, 0, 0, 0)),
            pl.BlockSpec((9, c, 1, 1), lambda i: (0, 0, 0, 0)),
        ],
        out_specs=pl.BlockSpec((1, c, hs, ws), lambda i: (i, 0, 0, 0)),
        compiler_params=pltpu.CompilerParams(
            dimension_semantics=("parallel",),
            vmem_limit_bytes=32 * 1024 * 1024,
        ),
    )(xp, w9)


# --------------------------------- ConvUnit ---------------------------------

class ConvUnit:
    """JAX/Pallas port of the PyTorch ConvUnit (inference-mode BatchNorm)."""

    def __init__(self, in_planes, out_planes, stride, pad, cluster, stage, key):
        self.cluster = cluster
        self.stride = stride
        self.pad = pad
        self.stage = stage
        self.in_planes = in_planes
        self.out_planes = out_planes
        self.expansion = int(in_planes * 2)
        self.gc_out = out_planes if in_planes == out_planes else int(out_planes / 2)
        self.gc_in_list = group_channels(self.expansion, cluster)
        self.gc_out_list = group_channels(self.gc_out, cluster)

        keys = jax.random.split(key, 2 + cluster)

        # conv1x1 expansion weight (Cout, Cin); PyTorch default bound 1/sqrt(fan_in).
        b = 1.0 / math.sqrt(in_planes)
        self.w1 = jax.random.uniform(keys[0], (self.expansion, in_planes),
                                     jnp.float32, -b, b)

        # Depthwise 3x3 weight (C, 3, 3); fan_in = 1*3*3.
        b = 1.0 / 3.0
        self.wd = jax.random.uniform(keys[1], (self.expansion, 3, 3),
                                     jnp.float32, -b, b)
        # Tap-major copy for the Pallas kernel: (9, C, 1, 1).
        self.wd9 = jnp.transpose(self.wd.reshape(self.expansion, 9),
                                 (1, 0)).reshape(9, self.expansion, 1, 1)

        # Grouped 1x1 conv: per-group weights + a block-diagonal matrix so the whole
        # grouped conv runs as ONE Pallas matmul launch.
        self.gc_weights = []
        w_bd = jnp.zeros((self.gc_out, self.expansion), jnp.float32)
        ci = co = 0
        for g in range(cluster):
            b = 1.0 / math.sqrt(self.gc_in_list[g])
            wg = jax.random.uniform(keys[2 + g],
                                    (self.gc_out_list[g], self.gc_in_list[g]),
                                    jnp.float32, -b, b)
            self.gc_weights.append(wg)
            w_bd = w_bd.at[co:co + self.gc_out_list[g],
                           ci:ci + self.gc_in_list[g]].set(wg)
            ci += self.gc_in_list[g]
            co += self.gc_out_list[g]
        self.w_gc = w_bd

        # BatchNorm (eval mode), PyTorch-default params; fused as per-channel scale/shift.
        self.eps = 1e-5

        def bn_params(c):
            return (jnp.ones((c,), jnp.float32), jnp.zeros((c,), jnp.float32),
                    jnp.zeros((c,), jnp.float32), jnp.ones((c,), jnp.float32))

        self.bn1 = bn_params(self.expansion)
        self.bn2 = bn_params(self.gc_out)

        def fuse(bn):
            gamma, beta, mean, var = bn
            scale = gamma / jnp.sqrt(var + self.eps)
            shift = beta - mean * scale
            return scale.reshape(-1, 1), shift.reshape(-1, 1)

        self.bn1_scale, self.bn1_shift = fuse(self.bn1)
        self.bn2_scale, self.bn2_shift = fuse(self.bn2)

    def __call__(self, x):
        n, c, h, w = x.shape
        s, p = self.stride, self.pad

        shortcut = x
        if s == 2:
            shortcut = avg_pool_3x3_s2_p1(x)

        # 1) expansion 1x1 conv + BN1 + ReLU (fused). NCHW -> (N, C, H*W) is free.
        h1 = pointwise_conv_bn(x.reshape(n, c, h * w), self.w1,
                               self.bn1_scale, self.bn1_shift, apply_relu=True)
        h1 = h1.reshape(n, self.expansion, h, w)

        # 2) depthwise 3x3 (Pallas); stride applied by subsampling the stride-1 result.
        hd = depthwise_conv3x3(h1, self.wd9, p)
        if s > 1:
            hd = hd[:, :, ::s, ::s]
        ho, wo = hd.shape[2], hd.shape[3]

        # 3) grouped 1x1 conv (block-diagonal weight) + BN2 (fused), one launch.
        hg = pointwise_conv_bn(hd.reshape(n, self.expansion, ho * wo), self.w_gc,
                               self.bn2_scale, self.bn2_shift, apply_relu=False)
        hg = hg.reshape(n, self.gc_out, ho, wo)

        # 4) residual add / concat, ReLU, channel shuffle (cheap epilogue left to XLA).
        if self.in_planes == self.out_planes:
            out = shortcut + hg
        else:
            out = jnp.concatenate([shortcut, hg], axis=1)
        out = jnp.maximum(out, 0.0)
        return channel_shuffle(out, self.cluster)


# -------------------------------- reference ---------------------------------

def _bn_ref(x, bn, eps):
    gamma, beta, mean, var = bn
    inv = gamma / jnp.sqrt(var + eps)
    return (x - mean[None, :, None, None]) * inv[None, :, None, None] \
        + beta[None, :, None, None]


def conv_unit_ref(module, x):
    """Pure-JAX (lax.conv) reference with identical parameters/semantics."""
    s, p = module.stride, module.pad
    dn = ('NCHW', 'OIHW', 'NCHW')
    hi = jax.lax.Precision.HIGHEST

    shortcut = x if s == 1 else avg_pool_3x3_s2_p1(x)

    h = lax.conv_general_dilated(x, module.w1[:, :, None, None], (1, 1),
                                 ((0, 0), (0, 0)), dimension_numbers=dn, precision=hi)
    h = jnp.maximum(_bn_ref(h, module.bn1, module.eps), 0.0)

    h = lax.conv_general_dilated(h, module.wd[:, None, :, :], (s, s),
                                 ((p, p), (p, p)), dimension_numbers=dn,
                                 feature_group_count=module.expansion, precision=hi)

    outs, ci = [], 0
    for g in range(module.cluster):
        cin_g = module.gc_in_list[g]
        wg = module.gc_weights[g][:, :, None, None]
        outs.append(lax.conv_general_dilated(h[:, ci:ci + cin_g], wg, (1, 1),
                                             ((0, 0), (0, 0)), dimension_numbers=dn,
                                             precision=hi))
        ci += cin_g
    h = jnp.concatenate(outs, axis=1)
    h = _bn_ref(h, module.bn2, module.eps)

    if module.in_planes == module.out_planes:
        out = shortcut + h
    else:
        out = jnp.concatenate([shortcut, h], axis=1)
    out = jnp.maximum(out, 0.0)
    return channel_shuffle(out, module.cluster)


# ----------------------------------- main ------------------------------------

if __name__ == "__main__":
    key = jax.random.PRNGKey(0)
    kx1, kx2, km1, km2 = jax.random.split(key, 4)

    n, c, h, w = 2, 8, 16, 16

    # Config 1: identity branch (in == out -> residual add), stride 1.
    x1 = jax.random.normal(kx1, (n, c, h, w), jnp.float32)
    m1 = ConvUnit(in_planes=8, out_planes=8, stride=1, pad=1, cluster=2, stage=1, key=km1)
    y1 = jax.block_until_ready(jax.jit(m1.__call__)(x1))
    r1 = jax.block_until_ready(conv_unit_ref(m1, x1))
    assert y1.shape == (n, 8, h, w), y1.shape
    assert jnp.allclose(y1, r1, atol=1e-4, rtol=1e-4), float(jnp.max(jnp.abs(y1 - r1)))

    # Config 2: downsample branch (in != out -> concat with avg-pooled shortcut), stride 2.
    x2 = jax.random.normal(kx2, (n, c, h, w), jnp.float32)
    m2 = ConvUnit(in_planes=8, out_planes=16, stride=2, pad=1, cluster=4, stage=2, key=km2)
    y2 = jax.block_until_ready(jax.jit(m2.__call__)(x2))
    r2 = jax.block_until_ready(conv_unit_ref(m2, x2))
    assert y2.shape == (n, 16, h // 2, w // 2), y2.shape
    assert jnp.allclose(y2, r2, atol=1e-4, rtol=1e-4), float(jnp.max(jnp.abs(y2 - r2)))

    print("KERNEL_OK")
</pallas_src>

<mosaic_0001>
module attributes {stable_mosaic.version = 11 : i64} {
  func.func @_pw_bn_kernel(%arg0: i32, %arg1: i32, %arg2: memref<1x8x256xf32, #tpu.memory_space<vmem>>, %arg3: memref<16x8xf32, #tpu.memory_space<vmem>>, %arg4: memref<16x1xf32, #tpu.memory_space<vmem>>, %arg5: memref<16x1xf32, #tpu.memory_space<vmem>>, %arg6: memref<1x16x256xf32, #tpu.memory_space<vmem>>) attributes {dimension_semantics = [#tpu.dimension_semantics<parallel>, #tpu.dimension_semantics<parallel>], iteration_bounds = array<i64: 2, 1>, scalar_prefetch = 0 : i64, scratch_operands = 0 : i64, tpu.core_type = #tpu.core_type<tc>, window_params = [{transform_indices = @transform_0, window_bounds = array<i64: 1, 8, 256>}, {pipeline_mode = #tpu.pipeline_mode<synchronous>, transform_indices = @transform_1, window_bounds = array<i64: 16, 8>}, {pipeline_mode = #tpu.pipeline_mode<synchronous>, transform_indices = @transform_2, window_bounds = array<i64: 16, 1>}, {pipeline_mode = #tpu.pipeline_mode<synchronous>, transform_indices = @transform_3, window_bounds = array<i64: 16, 1>}, {transform_indices = @transform_4, window_bounds = array<i64: 1, 16, 256>}]} {
    %c0 = arith.constant 0 : index
    %c0_0 = arith.constant 0 : index
    %0 = vector.load %arg3[%c0, %c0_0] : memref<16x8xf32, #tpu.memory_space<vmem>>, vector<16x8xf32>
    %c0_1 = arith.constant 0 : index
    %c0_2 = arith.constant 0 : index
    %c0_3 = arith.constant 0 : index
    %1 = vector.load %arg2[%c0_1, %c0_2, %c0_3] : memref<1x8x256xf32, #tpu.memory_space<vmem>>, vector<1x8x256xf32>
    %2 = vector.shape_cast %1 : vector<1x8x256xf32> to vector<8x256xf32>
    %cst = arith.constant dense<0.000000e+00> : vector<16x256xf32>
    %3 = tpu.matmul %0, %2, %cst {dimension_numbers = #tpu.dot_dimension_numbers<[1], [0], [0], [1], [0, 0, 1, 1], [], []>, precision = #tpu.contract_precision<fp32>} : vector<16x8xf32>, vector<8x256xf32>, vector<16x256xf32> -> vector<16x256xf32>
    %c0_4 = arith.constant 0 : index
    %c0_5 = arith.constant 0 : index
    %4 = vector.load %arg4[%c0_4, %c0_5] : memref<16x1xf32, #tpu.memory_space<vmem>>, vector<16x1xf32>
    %5 = vector.broadcast %4 : vector<16x1xf32> to vector<16x256xf32>
    %6 = arith.mulf %3, %5 : vector<16x256xf32>
    %c0_6 = arith.constant 0 : index
    %c0_7 = arith.constant 0 : index
    %7 = vector.load %arg5[%c0_6, %c0_7] : memref<16x1xf32, #tpu.memory_space<vmem>>, vector<16x1xf32>
    %8 = vector.broadcast %7 : vector<16x1xf32> to vector<16x256xf32>
    %9 = arith.addf %6, %8 : vector<16x256xf32>
    %cst_8 = arith.constant 0.000000e+00 : f32
    %10 = vector.broadcast %cst_8 : f32 to vector<16x256xf32>
    %11 = arith.maximumf %9, %10 : vector<16x256xf32>
    %c0_9 = arith.constant 0 : index
    %c0_10 = arith.constant 0 : index
    %c0_11 = arith.constant 0 : index
    %12 = vector.load %arg6[%c0_9, %c0_10, %c0_11] : memref<1x16x256xf32, #tpu.memory_space<vmem>>, vector<1x16x256xf32>
    %13 = vector.shape_cast %12 : vector<1x16x256xf32> to vector<16x256xf32>
    %14 = vector.shape_cast %11 : vector<16x256xf32> to vector<1x16x256xf32>
    tpu.vector_store %arg6[%c0_9, %c0_10, %c0_11], %14 {strides = array<i32>} : memref<1x16x256xf32, #tpu.memory_space<vmem>>, vector<1x16x256xf32>,
    return
  }
  func.func @transform_0(%arg0: i32, %arg1: i32) -> (i32, i32, i32) {
    %c0_i32 = arith.constant 0 : i32
    %c0_i32_0 = arith.constant 0 : i32
    return %arg0, %c0_i32, %arg1 : i32, i32, i32
  }
  func.func @transform_1(%arg0: i32, %arg1: i32) -> (i32, i32) {
    %c0_i32 = arith.constant 0 : i32
    %c0_i32_0 = arith.constant 0 : i32
    %c0_i32_1 = arith.constant 0 : i32
    return %c0_i32, %c0_i32_0 : i32, i32
  }
  func.func @transform_2(%arg0: i32, %arg1: i32) -> (i32, i32) {
    %c0_i32 = arith.constant 0 : i32
    %c0_i32_0 = arith.constant 0 : i32
    %c0_i32_1 = arith.constant 0 : i32
    return %c0_i32, %c0_i32_0 : i32, i32
  }
  func.func @transform_3(%arg0: i32, %arg1: i32) -> (i32, i32) {
    %c0_i32 = arith.constant 0 : i32
    %c0_i32_0 = arith.constant 0 : i32
    %c0_i32_1 = arith.constant 0 : i32
    return %c0_i32, %c0_i32_0 : i32, i32
  }
  func.func @transform_4(%arg0: i32, %arg1: i32) -> (i32, i32, i32) {
    %c0_i32 = arith.constant 0 : i32
    %c0_i32_0 = arith.constant 0 : i32
    return %arg0, %c0_i32, %arg1 : i32, i32, i32
  }
}

module attributes {stable_mosaic.version = 11 : i64} {
  func.func @_dw3x3_kernel(%arg0: i32, %arg1: memref<1x16x18x18xf32, #tpu.memory_space<vmem>>, %arg2: memref<9x16x1x1xf32, #tpu.memory_space<vmem>>, %arg3: memref<1x16x16x16xf32, #tpu.memory_space<vmem>>) attributes {dimension_semantics = [#tpu.dimension_semantics<parallel>], iteration_bounds = array<i64: 2>, scalar_prefetch = 0 : i64, scratch_operands = 0 : i64, tpu.core_type = #tpu.core_type<tc>, window_params = [{transform_indices = @transform_0, window_bounds = array<i64: 1, 16, 18, 18>}, {pipeline_mode = #tpu.pipeline_mode<synchronous>, transform_indices = @transform_1, window_bounds = array<i64: 9, 16, 1, 1>}, {transform_indices = @transform_2, window_bounds = array<i64: 1, 16, 16, 16>}]} {
    %cst = arith.constant 0.000000e+00 : f32
    %0 = vector.broadcast %cst : f32 to vector<16x16x16xf32>
    %c0 = arith.constant 0 : index
    %c0_0 = arith.constant 0 : index
    %c0_1 = arith.constant 0 : index
    %c0_2 = arith.constant 0 : index
    %1 = vector.load %arg1[%c0, %c0_0, %c0_1, %c0_2] : memref<1x16x18x18xf32, #tpu.memory_space<vmem>>, vector<1x16x16x16xf32>
    %2 = vector.shape_cast %1 : vector<1x16x16x16xf32> to vector<16x16x16xf32>
    %c0_3 = arith.constant 0 : index
    %c0_4 = arith.constant 0 : index
    %c0_5 = arith.constant 0 : index
    %c0_6 = arith.constant 0 : index
    %3 = vector.load %arg2[%c0_3, %c0_4, %c0_5, %c0_6] : memref<9x16x1x1xf32, #tpu.memory_space<vmem>>, vector<1x16x1x1xf32>
    %4 = vector.shape_cast %3 : vector<1x16x1x1xf32> to vector<16x1x1xf32>
    %5 = vector.broadcast %4 : vector<16x1x1xf32> to vector<16x16x16xf32>
    %6 = arith.mulf %2, %5 : vector<16x16x16xf32>
    %7 = arith.addf %0, %6 : vector<16x16x16xf32>
    %c0_7 = arith.constant 0 : index
    %c0_8 = arith.constant 0 : index
    %c0_9 = arith.constant 0 : index
    %c1 = arith.constant 1 : index
    %8 = vector.load %arg1[%c0_7, %c0_8, %c0_9, %c1] : memref<1x16x18x18xf32, #tpu.memory_space<vmem>>, vector<1x16x16x16xf32>
    %9 = vector.shape_cast %8 : vector<1x16x16x16xf32> to vector<16x16x16xf32>
    %c1_10 = arith.constant 1 : index
    %c0_11 = arith.constant 0 : index
    %c0_12 = arith.constant 0 : index
    %c0_13 = arith.constant 0 : index
    %10 = vector.load %arg2[%c1_10, %c0_11, %c0_12, %c0_13] : memref<9x16x1x1xf32, #tpu.memory_space<vmem>>, vector<1x16x1x1xf32>
    %11 = vector.shape_cast %10 : vector<1x16x1x1xf32> to vector<16x1x1xf32>
    %12 = vector.broadcast %11 : vector<16x1x1xf32> to vector<16x16x16xf32>
    %13 = arith.mulf %9, %12 : vector<16x16x16xf32>
    %14 = arith.addf %7, %13 : vector<16x16x16xf32>
    %c0_14 = arith.constant 0 : index
    %c0_15 = arith.constant 0 : index
    %c0_16 = arith.constant 0 : index
    %c2 = arith.constant 2 : index
    %15 = vector.load %arg1[%c0_14, %c0_15, %c0_16, %c2] : memref<1x16x18x18xf32, #tpu.memory_space<vmem>>, vector<1x16x16x16xf32>
    %16 = vector.shape_cast %15 : vector<1x16x16x16xf32> to vector<16x16x16xf32>
    %c2_17 = arith.constant 2 : index
    %c0_18 = arith.constant 0 : index
    %c0_19 = arith.constant 0 : index
    %c0_20 = arith.constant 0 : index
    %17 = vector.load %arg2[%c2_17, %c0_18, %c0_19, %c0_20] : memref<9x16x1x1xf32, #tpu.memory_space<vmem>>, vector<1x16x1x1xf32>
    %18 = vector.shape_cast %17 : vector<1x16x1x1xf32> to vector<16x1x1xf32>
    %19 = vector.broadcast %18 : vector<16x1x1xf32> to vector<16x16x16xf32>
    %20 = arith.mulf %16, %19 : vector<16x16x16xf32>
    %21 = arith.addf %14, %20 : vector<16x16x16xf32>
    %c0_21 = arith.constant 0 : index
    %c0_22 = arith.constant 0 : index
    %c1_23 = arith.constant 1 : index
    %c0_24 = arith.constant 0 : index
    %22 = vector.load %arg1[%c0_21, %c0_22, %c1_23, %c0_24] : memref<1x16x18x18xf32, #tpu.memory_space<vmem>>, vector<1x16x16x16xf32>
    %23 = vector.shape_cast %22 : vector<1x16x16x16xf32> to vector<16x16x16xf32>
    %c3 = arith.constant 3 : index
    %c0_25 = arith.constant 0 : index
    %c0_26 = arith.constant 0 : index
    %c0_27 = arith.constant 0 : index
    %24 = vector.load %arg2[%c3, %c0_25, %c0_26, %c0_27] : memref<9x16x1x1xf32, #tpu.memory_space<vmem>>, vector<1x16x1x1xf32>
    %25 = vector.shape_cast %24 : vector<1x16x1x1xf32> to vector<16x1x1xf32>
    %26 = vector.broadcast %25 : vector<16x1x1xf32> to vector<16x16x16xf32>
    %27 = arith.mulf %23, %26 : vector<16x16x16xf32>
    %28 = arith.addf %21, %27 : vector<16x16x16xf32>
    %c0_28 = arith.constant 0 : index
    %c0_29 = arith.constant 0 : index
    %c1_30 = arith.constant 1 : index
    %c1_31 = arith.constant 1 : index
    %29 = vector.load %arg1[%c0_28, %c0_29, %c1_30, %c1_31] : memref<1x16x18x18xf32, #tpu.memory_space<vmem>>, vector<1x16x16x16xf32>
    %30 = vector.shape_cast %29 : vector<1x16x16x16xf32> to vector<16x16x16xf32>
    %c4 = arith.constant 4 : index
    %c0_32 = arith.constant 0 : index
    %c0_33 = arith.constant 0 : index
    %c0_34 = arith.constant 0 : index
    %31 = vector.load %arg2[%c4, %c0_32, %c0_33, %c0_34] : memref<9x16x1x1xf32, #tpu.memory_space<vmem>>, vector<1x16x1x1xf32>
    %32 = vector.shape_cast %31 : vector<1x16x1x1xf32> to vector<16x1x1xf32>
    %33 = vector.broadcast %32 : vector<16x1x1xf32> to vector<16x16x16xf32>
    %34 = arith.mulf %30, %33 : vector<16x16x16xf32>
    %35 = arith.addf %28, %34 : vector<16x16x16xf32>
    %c0_35 = arith.constant 0 : index
    %c0_36 = arith.constant 0 : index
    %c1_37 = arith.constant 1 : index
    %c2_38 = arith.constant 2 : index
    %36 = vector.load %arg1[%c0_35, %c0_36, %c1_37, %c2_38] : memref<1x16x18x18xf32, #tpu.memory_space<vmem>>, vector<1x16x16x16xf32>
    %37 = vector.shape_cast %36 : vector<1x16x16x16xf32> to vector<16x16x16xf32>
    %c5 = arith.constant 5 : index
    %c0_39 = arith.constant 0 : index
    %c0_40 = arith.constant 0 : index
    %c0_41 = arith.constant 0 : index
    %38 = vector.load %arg2[%c5, %c0_39, %c0_40, %c0_41] : memref<9x16x1x1xf32, #tpu.memory_space<vmem>>, vector<1x16x1x1xf32>
    %39 = vector.shape_cast %38 : vector<1x16x1x1xf32> to vector<16x1x1xf32>
    %40 = vector.broadcast %39 : vector<16x1x1xf32> to vector<16x16x16xf32>
    %41 = arith.mulf %37, %40 : vector<16x16x16xf32>
    %42 = arith.addf %35, %41 : vector<16x16x16xf32>
    %c0_42 = arith.constant 0 : index
    %c0_43 = arith.constant 0 : index
    %c2_44 = arith.constant 2 : index
    %c0_45 = arith.constant 0 : index
    %43 = vector.load %arg1[%c0_42, %c0_43, %c2_44, %c0_45] : memref<1x16x18x18xf32, #tpu.memory_space<vmem>>, vector<1x16x16x16xf32>
    %44 = vector.shape_cast %43 : vector<1x16x16x16xf32> to vector<16x16x16xf32>
    %c6 = arith.constant 6 : index
    %c0_46 = arith.constant 0 : index
    %c0_47 = arith.constant 0 : index
    %c0_48 = arith.constant 0 : index
    %45 = vector.load %arg2[%c6, %c0_46, %c0_47, %c0_48] : memref<9x16x1x1xf32, #tpu.memory_space<vmem>>, vector<1x16x1x1xf32>
    %46 = vector.shape_cast %45 : vector<1x16x1x1xf32> to vector<16x1x1xf32>
    %47 = vector.broadcast %46 : vector<16x1x1xf32> to vector<16x16x16xf32>
    %48 = arith.mulf %44, %47 : vector<16x16x16xf32>
    %49 = arith.addf %42, %48 : vector<16x16x16xf32>
    %c0_49 = arith.constant 0 : index
    %c0_50 = arith.constant 0 : index
    %c2_51 = arith.constant 2 : index
    %c1_52 = arith.constant 1 : index
    %50 = vector.load %arg1[%c0_49, %c0_50, %c2_51, %c1_52] : memref<1x16x18x18xf32, #tpu.memory_space<vmem>>, vector<1x16x16x16xf32>
    %51 = vector.shape_cast %50 : vector<1x16x16x16xf32> to vector<16x16x16xf32>
    %c7 = arith.constant 7 : index
    %c0_53 = arith.constant 0 : index
    %c0_54 = arith.constant 0 : index
    %c0_55 = arith.constant 0 : index
    %52 = vector.load %arg2[%c7, %c0_53, %c0_54, %c0_55] : memref<9x16x1x1xf32, #tpu.memory_space<vmem>>, vector<1x16x1x1xf32>
    %53 = vector.shape_cast %52 : vector<1x16x1x1xf32> to vector<16x1x1xf32>
    %54 = vector.broadcast %53 : vector<16x1x1xf32> to vector<16x16x16xf32>
    %55 = arith.mulf %51, %54 : vector<16x16x16xf32>
    %56 = arith.addf %49, %55 : vector<16x16x16xf32>
    %c0_56 = arith.constant 0 : index
    %c0_57 = arith.constant 0 : index
    %c2_58 = arith.constant 2 : index
    %c2_59 = arith.constant 2 : index
    %57 = vector.load %arg1[%c0_56, %c0_57, %c2_58, %c2_59] : memref<1x16x18x18xf32, #tpu.memory_space<vmem>>, vector<1x16x16x16xf32>
    %58 = vector.shape_cast %57 : vector<1x16x16x16xf32> to vector<16x16x16xf32>
    %c8 = arith.constant 8 : index
    %c0_60 = arith.constant 0 : index
    %c0_61 = arith.constant 0 : index
    %c0_62 = arith.constant 0 : index
    %59 = vector.load %arg2[%c8, %c0_60, %c0_61, %c0_62] : memref<9x16x1x1xf32, #tpu.memory_space<vmem>>, vector<1x16x1x1xf32>
    %60 = vector.shape_cast %59 : vector<1x16x1x1xf32> to vector<16x1x1xf32>
    %61 = vector.broadcast %60 : vector<16x1x1xf32> to vector<16x16x16xf32>
    %62 = arith.mulf %58, %61 : vector<16x16x16xf32>
    %63 = arith.addf %56, %62 : vector<16x16x16xf32>
    %c0_63 = arith.constant 0 : index
    %c0_64 = arith.constant 0 : index
    %c0_65 = arith.constant 0 : index
    %c0_66 = arith.constant 0 : index
    %64 = vector.load %arg3[%c0_63, %c0_64, %c0_65, %c0_66] : memref<1x16x16x16xf32, #tpu.memory_space<vmem>>, vector<1x16x16x16xf32>
    %65 = vector.shape_cast %64 : vector<1x16x16x16xf32> to vector<16x16x16xf32>
    %66 = vector.shape_cast %63 : vector<16x16x16xf32> to vector<1x16x16x16xf32>
    tpu.vector_store %arg3[%c0_63, %c0_64, %c0_65, %c0_66], %66 {strides = array<i32>} : memref<1x16x16x16xf32, #tpu.memory_space<vmem>>, vector<1x16x16x16xf32>,
    return
  }
  func.func @transform_0(%arg0: i32) -> (i32, i32, i32, i32) {
    %c0_i32 = arith.constant 0 : i32
    %c0_i32_0 = arith.constant 0 : i32
    %c0_i32_1 = arith.constant 0 : i32
    %c0_i32_2 = arith.constant 0 : i32
    return %arg0, %c0_i32, %c0_i32_0, %c0_i32_1 : i32, i32, i32, i32
  }
  func.func @transform_1(%arg0: i32) -> (i32, i32, i32, i32) {
    %c0_i32 = arith.constant 0 : i32
    %c0_i32_0 = arith.constant 0 : i32
    %c0_i32_1 = arith.constant 0 : i32
    %c0_i32_2 = arith.constant 0 : i32
    %c0_i32_3 = arith.constant 0 : i32
    return %c0_i32, %c0_i32_0, %c0_i32_1, %c0_i32_2 : i32, i32, i32, i32
  }
  func.func @transform_2(%arg0: i32) -> (i32, i32, i32, i32) {
    %c0_i32 = arith.constant 0 : i32
    %c0_i32_0 = arith.constant 0 : i32
    %c0_i32_1 = arith.constant 0 : i32
    %c0_i32_2 = arith.constant 0 : i32
    return %arg0, %c0_i32, %c0_i32_0, %c0_i32_1 : i32, i32, i32, i32
  }
}

module attributes {stable_mosaic.version = 11 : i64} {
  func.func @_pw_bn_kernel(%arg0: i32, %arg1: i32, %arg2: memref<1x16x256xf32, #tpu.memory_space<vmem>>, %arg3: memref<8x16xf32, #tpu.memory_space<vmem>>, %arg4: memref<8x1xf32, #tpu.memory_space<vmem>>, %arg5: memref<8x1xf32, #tpu.memory_space<vmem>>, %arg6: memref<1x8x256xf32, #tpu.memory_space<vmem>>) attributes {dimension_semantics = [#tpu.dimension_semantics<parallel>, #tpu.dimension_semantics<parallel>], iteration_bounds = array<i64: 2, 1>, scalar_prefetch = 0 : i64, scratch_operands = 0 : i64, tpu.core_type = #tpu.core_type<tc>, window_params = [{transform_indices = @transform_0, window_bounds = array<i64: 1, 16, 256>}, {pipeline_mode = #tpu.pipeline_mode<synchronous>, transform_indices = @transform_1, window_bounds = array<i64: 8, 16>}, {pipeline_mode = #tpu.pipeline_mode<synchronous>, transform_indices = @transform_2, window_bounds = array<i64: 8, 1>}, {pipeline_mode = #tpu.pipeline_mode<synchronous>, transform_indices = @transform_3, window_bounds = array<i64: 8, 1>}, {transform_indices = @transform_4, window_bounds = array<i64: 1, 8, 256>}]} {
    %c0 = arith.constant 0 : index
    %c0_0 = arith.constant 0 : index
    %0 = vector.load %arg3[%c0, %c0_0] : memref<8x16xf32, #tpu.memory_space<vmem>>, vector<8x16xf32>
    %c0_1 = arith.constant 0 : index
    %c0_2 = arith.constant 0 : index
    %c0_3 = arith.constant 0 : index
    %1 = vector.load %arg2[%c0_1, %c0_2, %c0_3] : memref<1x16x256xf32, #tpu.memory_space<vmem>>, vector<1x16x256xf32>
    %2 = vector.shape_cast %1 : vector<1x16x256xf32> to vector<16x256xf32>
    %cst = arith.constant dense<0.000000e+00> : vector<8x256xf32>
    %3 = tpu.matmul %0, %2, %cst {dimension_numbers = #tpu.dot_dimension_numbers<[1], [0], [0], [1], [0, 0, 1, 1], [], []>, precision = #tpu.contract_precision<fp32>} : vector<8x16xf32>, vector<16x256xf32>, vector<8x256xf32> -> vector<8x256xf32>
    %c0_4 = arith.constant 0 : index
    %c0_5 = arith.constant 0 : index
    %4 = vector.load %arg4[%c0_4, %c0_5] : memref<8x1xf32, #tpu.memory_space<vmem>>, vector<8x1xf32>
    %5 = vector.broadcast %4 : vector<8x1xf32> to vector<8x256xf32>
    %6 = arith.mulf %3, %5 : vector<8x256xf32>
    %c0_6 = arith.constant 0 : index
    %c0_7 = arith.constant 0 : index
    %7 = vector.load %arg5[%c0_6, %c0_7] : memref<8x1xf32, #tpu.memory_space<vmem>>, vector<8x1xf32>
    %8 = vector.broadcast %7 : vector<8x1xf32> to vector<8x256xf32>
    %9 = arith.addf %6, %8 : vector<8x256xf32>
    %c0_8 = arith.constant 0 : index
    %c0_9 = arith.constant 0 : index
    %c0_10 = arith.constant 0 : index
    %10 = vector.load %arg6[%c0_8, %c0_9, %c0_10] : memref<1x8x256xf32, #tpu.memory_space<vmem>>, vector<1x8x256xf32>
    %11 = vector.shape_cast %10 : vector<1x8x256xf32> to vector<8x256xf32>
    %12 = vector.shape_cast %9 : vector<8x256xf32> to vector<1x8x256xf32>
    tpu.vector_store %arg6[%c0_8, %c0_9, %c0_10], %12 {strides = array<i32>} : memref<1x8x256xf32, #tpu.memory_space<vmem>>, vector<1x8x256xf32>,
    return
  }
  func.func @transform_0(%arg0: i32, %arg1: i32) -> (i32, i32, i32) {
    %c0_i32 = arith.constant 0 : i32
    %c0_i32_0 = arith.constant 0 : i32
    return %arg0, %c0_i32, %arg1 : i32, i32, i32
  }
  func.func @transform_1(%arg0: i32, %arg1: i32) -> (i32, i32) {
    %c0_i32 = arith.constant 0 : i32
    %c0_i32_0 = arith.constant 0 : i32
    %c0_i32_1 = arith.constant 0 : i32
    return %c0_i32, %c0_i32_0 : i32, i32
  }
  func.func @transform_2(%arg0: i32, %arg1: i32) -> (i32, i32) {
    %c0_i32 = arith.constant 0 : i32
    %c0_i32_0 = arith.constant 0 : i32
    %c0_i32_1 = arith.constant 0 : i32
    return %c0_i32, %c0_i32_0 : i32, i32
  }
  func.func @transform_3(%arg0: i32, %arg1: i32) -> (i32, i32) {
    %c0_i32 = arith.constant 0 : i32
    %c0_i32_0 = arith.constant 0 : i32
    %c0_i32_1 = arith.constant 0 : i32
    return %c0_i32, %c0_i32_0 : i32, i32
  }
  func.func @transform_4(%arg0: i32, %arg1: i32) -> (i32, i32, i32) {
    %c0_i32 = arith.constant 0 : i32
    %c0_i32_0 = arith.constant 0 : i32
    return %arg0, %c0_i32, %arg1 : i32, i32, i32
  }
}

</mosaic_0001>

<llo_original>
// kernel: a_call__.3
$region0: #{a_call__.3}
  #allocation0 [shape = 'u32[]', space=smem, size = 0x4, offset = 0x4, fixed_abs, tag = 'smem constant byte address 0x4 - core index']
  #allocation1 [shape = 'u32[144,128]{1,0:T(1,128)}', space=vmem, size = 0x12000, scoped, tag = 'internal scratch']
  %s0 = inlined_call_operand.vmem [shape: f32[2,8,256], index: 0, kind: input, shape index: {}]
  %s1 = inlined_call_operand.vmem [shape: f32[16,8], index: 1, kind: input, shape index: {}]
  %s2 = inlined_call_operand.vmem [shape: f32[16,1], index: 2, kind: input, shape index: {}]
  %s3 = inlined_call_operand.vmem [shape: f32[16,1], index: 3, kind: input, shape index: {}]
  %s4 = inlined_call_operand.vmem [shape: f32[2,16,256], index: 4, kind: output, shape index: {}]
  %s5 = sld [smem:[#allocation0]]
  $region49: #{a_call__.3} parent=0
    _
  %s7 = ssub.s32 1, %s5
  %s8 = scalar_select 0, %s7, %s5
  loop: start=0, step=1, limit=4
  $region2: #{a_call__.3} parent=0 // loop_pre_header
    _
  $region3: #{a_call__.3} parent=0 // loop_header
    %s10 = sphi 0, %s14
    %p11 = scmp.ge.s32.totalorder %s10, 4
    %s17 = sphi 0, %s29
    %s18 = sphi 0, %s25
    %s19 = sphi 0, %s17
    %s20 = sphi 0, %s18
    %s21 = sphi 0, %s19
    %s22 = sphi 0, %s20
    %s34 = sphi 0, %s36
    %s37 = sphi 0, %s34
    %s38 = sphi 0, %s37
    %s54 = sphi 0, %s38
    %s58 = sphi 0, %s58
    %s60 = sphi 0, %s58
    %s61 = sphi 0, %s60
    %s75 = sphi 0, %s61
    %s79 = sphi 0, %s79
    %s81 = sphi 0, %s79
    %s82 = sphi 0, %s81
    %s96 = sphi 0, %s82
    %s100 = sphi 0, %s100
    %s102 = sphi 0, %s100
    %s103 = sphi 0, %s102
    %s117 = sphi 0, %s103
    %s125 = sphi 0, %s127
    %s128 = sphi 0, %s125
    %s129 = sphi 0, %s128
    %s145 = sphi 0, %s129
  $region4: #{a_call__.3} parent=0 // loop_header_branch
    %13 = sbr.rel (%p11) target = $region8
  $region5: #{a_call__.3} parent=0 // loop_body
    %s15 = ssub.s32 %s10, 1
    %s16 = ssub.s32 %s10, 2
    %s23 = sadd.s32 1, %s18
    %p24 = scmp.ge.s32.totalorder %s23, 1
    %s25 = scalar_select %p24, 0, %s23
    %s26 = sadd.s32 1, %s17
    %s27 = scalar_select %p24, %s26, %s17
    %p28 = scmp.ge.s32.totalorder %s27, 2
    %s29 = scalar_select %p28, 0, %s27
    %s30 = ssub.s32 %s17, %s29
    %s31 = ssub.s32 %s18, %s25
    %s32 = sor.u32 %s30, %s31
    %p33 = scmp.eq.s32.totalorder %s32, 0
    %s35 = sadd.s32 %s34, 1
    %s36 = scalar_select %p33, %s34, %s35
    %p39 = pneg %p33
    %p40 = scmp.eq.s32.totalorder %s10, 1
    %p41 = por %p39, %p40
    %p42 = scmp.ne.s32.totalorder %s34, %s37
    %p43 = scmp.eq.s32.totalorder %s10, 0
    %p44 = por %p42, %p43
    %p45 = scmp.ne.s32.totalorder %s34, %s37
    %p46 = scmp.eq.s32.totalorder %s15, 1
    %p47 = por %p45, %p46
    %p48 = scmp.ne.s32.totalorder %s37, %s38
    %p49 = scmp.eq.s32.totalorder %s15, 0
    %p50 = por %p48, %p49
    %p51 = scmp.ne.s32.totalorder %s37, %s38
    %p52 = scmp.eq.s32.totalorder %s16, 1
    %p53 = por %p51, %p52
    %p55 = scmp.ne.s32.totalorder %s38, %s54
    %p56 = scmp.eq.s32.totalorder %s16, 0
    %p57 = por %p55, %p56
    %s59 = sadd.s32 %s58, 1
    %p62 = scmp.eq.s32.totalorder %s10, 1
    %p63 = scmp.ne.s32.totalorder %s58, %s60
    %p64 = scmp.eq.s32.totalorder %s10, 0
    %p65 = por %p63, %p64
    %p66 = scmp.ne.s32.totalorder %s58, %s60
    %p67 = scmp.eq.s32.totalorder %s15, 1
    %p68 = por %p66, %p67
    %p69 = scmp.ne.s32.totalorder %s60, %s61
    %p70 = scmp.eq.s32.totalorder %s15, 0
    %p71 = por %p69, %p70
    %p72 = scmp.ne.s32.totalorder %s60, %s61
    %p73 = scmp.eq.s32.totalorder %s16, 1
    %p74 = por %p72, %p73
    %p76 = scmp.ne.s32.totalorder %s61, %s75
    %p77 = scmp.eq.s32.totalorder %s16, 0
    %p78 = por %p76, %p77
    %s80 = sadd.s32 %s79, 1
    %p83 = scmp.eq.s32.totalorder %s10, 1
    %p84 = scmp.ne.s32.totalorder %s79, %s81
    %p85 = scmp.eq.s32.totalorder %s10, 0
    %p86 = por %p84, %p85
    %p87 = scmp.ne.s32.totalorder %s79, %s81
    %p88 = scmp.eq.s32.totalorder %s15, 1
    %p89 = por %p87, %p88
    %p90 = scmp.ne.s32.totalorder %s81, %s82
    %p91 = scmp.eq.s32.totalorder %s15, 0
    %p92 = por %p90, %p91
    %p93 = scmp.ne.s32.totalorder %s81, %s82
    %p94 = scmp.eq.s32.totalorder %s16, 1
    %p95 = por %p93, %p94
    %p97 = scmp.ne.s32.totalorder %s82, %s96
    %p98 = scmp.eq.s32.totalorder %s16, 0
    %p99 = por %p97, %p98
    %s101 = sadd.s32 %s100, 1
    %p104 = scmp.eq.s32.totalorder %s10, 1
    %p105 = scmp.ne.s32.totalorder %s100, %s102
    %p106 = scmp.eq.s32.totalorder %s10, 0
    %p107 = por %p105, %p106
    %p108 = scmp.ne.s32.totalorder %s100, %s102
    %p109 = scmp.eq.s32.totalorder %s15, 1
    %p110 = por %p108, %p109
    %p111 = scmp.ne.s32.totalorder %s102, %s103
    %p112 = scmp.eq.s32.totalorder %s15, 0
    %p113 = por %p111, %p112
    %p114 = scmp.ne.s32.totalorder %s102, %s103
    %p115 = scmp.eq.s32.totalorder %s16, 1
    %p116 = por %p114, %p115
    %p118 = scmp.ne.s32.totalorder %s103, %s117
    %p119 = scmp.eq.s32.totalorder %s16, 0
    %p120 = por %p118, %p119
    %s121 = ssub.s32 %s17, %s29
    %s122 = ssub.s32 %s18, %s25
    %s123 = sor.u32 %s121, %s122
    %p124 = scmp.eq.s32.totalorder %s123, 0
    %s126 = sadd.s32 %s125, 1
    %s127 = scalar_select %p124, %s125, %s126
    %p130 = pneg %p124
    %p131 = scmp.eq.s32.totalorder %s10, 1
    %p132 = por %p130, %p131
    %p133 = scmp.ne.s32.totalorder %s125, %s128
    %p134 = scmp.eq.s32.totalorder %s10, 0
    %p135 = por %p133, %p134
    %p136 = scmp.ne.s32.totalorder %s125, %s128
    %p137 = scmp.eq.s32.totalorder %s15, 1
    %p138 = por %p136, %p137
    %p139 = scmp.ne.s32.totalorder %s128, %s129
    %p140 = scmp.eq.s32.totalorder %s15, 0
    %p141 = por %p139, %p140
    %p142 = scmp.ne.s32.totalorder %s128, %s129
    %p143 = scmp.eq.s32.totalorder %s16, 1
    %p144 = por %p142, %p143
    %p146 = scmp.ne.s32.totalorder %s129, %s145
    %p147 = scmp.eq.s32.totalorder %s16, 0
    %p148 = por %p146, %p147
    %p149 = scmp.le.s32.totalorder 1, %s10
    %p150 = scmp.lt.s32.totalorder %s10, 3
    %p151 = pnand %p149, %p150
    %p152 = pneg %p151
    // Predicated region
    $region9: #{a_call__.3} parent=5 // pred_check
      _
    $region10: #{a_call__.3} parent=5 // pred_check_branch
      %154 = sbr.rel (%p151) target = $region12
    $region11: #{a_call__.3} parent=5 // pred_region
      %s155 = ssub.s32 %s10, 1
      // Predicated region
      $region13: #{a_call__.3} parent=11 // pred_check
        %p156 = pneg %p71
      $region14: #{a_call__.3} parent=11 // pred_check_branch
        %158 = sbr.rel (%p156) target = $region16
      $region15: #{a_call__.3} parent=11 // pred_region
        _
      $region16: #{a_call__.3} parent=11 // pred_fallthru
        _
      // Predicated region
      $region17: #{a_call__.3} parent=11 // pred_check
        %p159 = pneg %p92
      $region18: #{a_call__.3} parent=11 // pred_check_branch
        %161 = sbr.rel (%p159) target = $region20
      $region19: #{a_call__.3} parent=11 // pred_region
        _
      $region20: #{a_call__.3} parent=11 // pred_fallthru
        _
      // Predicated region
      $region21: #{a_call__.3} parent=11 // pred_check
        %p162 = pneg %p113
      $region22: #{a_call__.3} parent=11 // pred_check_branch
        %164 = sbr.rel (%p162) target = $region24
      $region23: #{a_call__.3} parent=11 // pred_region
        _
      $region24: #{a_call__.3} parent=11 // pred_fallthru
        _
    $region12: #{a_call__.3} parent=5 // pred_fallthru
      _
    %p165 = scmp.lt.s32.totalorder %s10, 2
    // Predicated region
    $region25: #{a_call__.3} parent=5 // pred_check
      %p166 = pneg %p165
    $region26: #{a_call__.3} parent=5 // pred_check_branch
      %168 = sbr.rel (%p166) target = $region28
    $region27: #{a_call__.3} parent=5 // pred_region
      // Predicated region
      $region29: #{a_call__.3} parent=27 // pred_check
        %p169 = pneg %p44
      $region30: #{a_call__.3} parent=27 // pred_check_branch
        %171 = sbr.rel (%p169) target = $region32
      $region31: #{a_call__.3} parent=27 // pred_region
        %s172 = smul.u32 2, %s18
        %p173 = scmp.lt.s32.totalorder %s17, 1
        %s174 = scalar_select %p173, %s17, 1
        %p175 = scmp.lt.s32.totalorder %s172, 1
        %s176 = scalar_select %p175, %s172, 1
        %s177 = smul.addr %s174, 2
        %s178 = sadd.s32 %s176, %s177
        %s179 = smul.addr %s178, 8
        %s180 = scalar_lea.vmem %s0, %s179
        %s181 = smul.u32 2, %s18
      $region32: #{a_call__.3} parent=27 // pred_fallthru
        _
    $region28: #{a_call__.3} parent=5 // pred_fallthru
      _
    %p182 = scmp.le.s32.totalorder 1, %s10
    %p183 = scmp.lt.s32.totalorder %s10, 3
    %p184 = pnand %p182, %p183
    %p185 = pneg %p184
    // Predicated region
    $region33: #{a_call__.3} parent=5 // pred_check
      _
    $region34: #{a_call__.3} parent=5 // pred_check_branch
      %187 = sbr.rel (%p184) target = $region36
    $region35: #{a_call__.3} parent=5 // pred_region
      %s188 = ssub.s32 %s10, 1
      %s189 = smul.u32 2, %s20
      %p190 = scmp.lt.s32.totalorder %s19, 1
      %s191 = scalar_select %p190, %s19, 1
      %p192 = scmp.lt.s32.totalorder %s189, 1
      %s193 = scalar_select %p192, %s189, 1
      %s194 = smul.addr %s191, 2
      %s195 = sadd.s32 %s193, %s194
      %s196 = smul.addr %s195, 8
      %s197 = scalar_lea.vmem %s0, %s196
      %p198 = pneg %p50
      %p199 = pneg %p47
      %p200 = pneg %p71
      %p201 = pneg %p68
      %p202 = pneg %p92
      %p203 = pneg %p89
      %p204 = pneg %p113
      %p205 = pneg %p110
      %p206 = pneg %p141
      %p207 = pneg %p138
      %s208 = smul.u32 2, %s20
      %p209 = scmp.lt.s32.totalorder %s19, 1
      %s210 = scalar_select %p209, %s19, 1
      %p211 = scmp.lt.s32.totalorder %s208, 1
      %s212 = scalar_select %p211, %s208, 1
      %s213 = smul.addr %s210, 4
      %s214 = sadd.s32 %s212, %s213
      %s215 = smul.addr %s214, 8
      %s216 = scalar_lea.vmem %s4, %s215
      %s217 = smul.u32 2, %s20
      %p218 = scmp.lt.s32.totalorder %s19, 1
      %s219 = scalar_select %p218, %s19, 1
      %p220 = scmp.lt.s32.totalorder %s217, 1
      %s221 = scalar_select %p220, %s217, 1
      %s222 = smul.addr %s219, 2
      %s223 = sadd.s32 %s221, %s222
      %s224 = smul.addr %s223, 8
      %s225 = scalar_lea.vmem %s0, %s224
      %s226 = smul.u32 2, %s20
      %s227 = smul.u32 2, %s20
      %p228 = scmp.lt.s32.totalorder %s19, 1
      %s229 = scalar_select %p228, %s19, 1
      %p230 = scmp.lt.s32.totalorder %s227, 1
      %s231 = scalar_select %p230, %s227, 1
      %s232 = smul.addr %s229, 4
      %s233 = sadd.s32 %s231, %s232
      %s234 = smul.addr %s233, 8
      %s235 = scalar_lea.vmem %s4, %s234
      %s236 = smul.u32 2, %s20
      %v237 = vld [vmem:[%s1] sm:$0xff]
      %v238 = vld [vmem:[%s1 + $0x8] sm:$0xff]
      %v239 = vld [vmem:[%s225] sm:$0xff]
      %v240 = vld [vmem:[%s225 + $0x8] sm:$0xff]
      %vm241 = vcmask 64512
      %v243 = vsel %vm241, %v237, 0
      %v246 = vsel %vm241, %v238, 0
      %v248 = vand.u32 %v240, 4294901760
      %249 = vmatprep.subr.mxu0 %v248
      %v250 = vand.u32 %v239, 4294901760
      %251 = vmatpush1.msra.mxu0 %v250
      %252 = vmatprep.subr.mxu0 0.0
      %253 = vmatpush1.msra.mxu0 0.0
      %254 = vmatprep.subr.mxu0 0.0
      %255 = vmatpush1.msra.mxu0 0.0
      %256 = vmatprep.subr.mxu0 0.0
      %257 = vmatpush1.msra.mxu0 0.0
      %258 = vmatprep.subr.mxu0 0.0
      %259 = vmatpush1.msra.mxu0 0.0
      %260 = vmatprep.subr.mxu0 0.0
      %261 = vmatpush1.msra.mxu0 0.0
      %262 = vmatprep.subr.mxu0 0.0
      %263 = vmatpush1.msra.mxu0 0.0
      %264 = vmatprep.subr.mxu0 0.0
      %265 = vmatpush1.msra.mxu0 0.0
      %266 = vmatprep.subr.mxu0 0.0
      %267 = vmatpush1.msra.mxu0 0.0
      %268 = vmatprep.subr.mxu0 0.0
      %269 = vmatpush1.msra.mxu0 0.0
      %270 = vmatprep.subr.mxu0 0.0
      %271 = vmatpush1.msra.mxu0 0.0
      %272 = vmatprep.subr.mxu0 0.0
      %273 = vmatpush1.msra.mxu0 0.0
      %274 = vmatprep.subr.mxu0 0.0
      %275 = vmatpush1.msra.mxu0 0.0
      %276 = vmatprep.subr.mxu0 0.0
      %277 = vmatpush1.msra.mxu0 0.0
      %278 = vmatprep.subr.mxu0 0.0
      %279 = vmatpush1.msra.mxu0 0.0
      %280 = vmatprep.subr.mxu0 0.0
      %281 = vmatpush1.msra.mxu0 0.0
      %282 = vmatprep.subr.mxu0 0.0
      %283 = vmatpush1.msra.mxu0 0.0
      %284 = vmatprep.subr.mxu0 0.0
      %285 = vmatpush1.msra.mxu0 0.0
      %286 = vmatprep.subr.mxu0 0.0
      %287 = vmatpush1.msra.mxu0 0.0
      %288 = vmatprep.subr.mxu0 0.0
      %289 = vmatpush1.msra.mxu0 0.0
      %290 = vmatprep.subr.mxu0 0.0
      %291 = vmatpush1.msra.mxu0 0.0
      %292 = vmatprep.subr.mxu0 0.0
      %293 = vmatpush1.msra.mxu0 0.0
      %294 = vmatprep.subr.mxu0 0.0
      %295 = vmatpush1.msra.mxu0 0.0
      %296 = vmatprep.subr.mxu0 0.0
      %297 = vmatpush1.msra.mxu0 0.0
      %298 = vmatprep.subr.mxu0 0.0
      %299 = vmatpush1.msra.mxu0 0.0
      %300 = vmatprep.subr.mxu0 0.0
      %301 = vmatpush1.msra.mxu0 0.0
      %302 = vmatprep.subr.mxu0 0.0
      %303 = vmatpush1.msra.mxu0 0.0
      %304 = vmatprep.subr.mxu0 0.0
      %305 = vmatpush1.msra.mxu0 0.0
      %306 = vmatprep.subr.mxu0 0.0
      %307 = vmatpush1.msra.mxu0 0.0
      %308 = vmatprep.subr.mxu0 0.0
      %309 = vmatpush1.msra.mxu0 0.0
      %310 = vmatprep.subr.mxu0 0.0
      %311 = vmatpush1.msra.mxu0 0.0
      %312 = vmatprep.subr.mxu0 0.0
      %313 = vmatpush1.msra.mxu0 0.0
      %314 = vmatprep.mubr.f32.mxu0 0.0
      %v315 = vand.u32 %v243, 4294901760
      %v316 = vsub.f32 %v243, %v315
      %v317 = vand.u32 %v316, 4294901760
      %v318 = vsub.f32 %v316, %v317
      %v319 = vand.u32 %v318, 4294901760
      %320 = vmatmul.mubr.f32.gmra.mrb[0].mxu0 %v319
      %v321 = vpop.f32.mrb[0].mxu0
      %v322 = vadd.f32 0.0, %v321
      %v323 = vpop.f32.mrb[0].mxu0
      %v324 = vadd.f32 0.0, %v323
      %325 = vmatprep.mubr.f32.mxu0 0.0
      %v326 = vand.u32 %v246, 4294901760
      %v327 = vsub.f32 %v246, %v326
      %v328 = vand.u32 %v327, 4294901760
      %v329 = vsub.f32 %v327, %v328
      %v330 = vand.u32 %v329, 4294901760
      %331 = vmatmul.mubr.f32.gmra.mrb[0].mxu0 %v330
      %v332 = vpop.f32.mrb[0].mxu0
      %v333 = vadd.f32 0.0, %v332
      %v334 = vpop.f32.mrb[0].mxu0
      %v335 = vadd.f32 0.0, %v334
      %336 = vdwg.mxu0
      %v337 = vand.u32 %v240, 4294901760
      %v338 = vsub.f32 %v240, %v337
      %v339 = vand.u32 %v338, 4294901760
      %v340 = vsub.f32 %v338, %v339
      %v341 = vand.u32 %v340, 4294901760
      %342 = vmatprep.subr.mxu0 %v341
      %v343 = vand.u32 %v239, 4294901760
      %v344 = vsub.f32 %v239, %v343
      %v345 = vand.u32 %v344, 4294901760
      %v346 = vsub.f32 %v344, %v345
      %v347 = vand.u32 %v346, 4294901760
      %348 = vmatpush1.msra.mxu0 %v347
      %349 = vmatprep.subr.mxu0 0.0
      %350 = vmatpush1.msra.mxu0 0.0
      %351 = vmatprep.subr.mxu0 0.0
      %352 = vmatpush1.msra.mxu0 0.0
      %353 = vmatprep.subr.mxu0 0.0
      %354 = vmatpush1.msra.mxu0 0.0
      %355 = vmatprep.subr.mxu0 0.0
      %356 = vmatpush1.msra.mxu0 0.0
      %357 = vmatprep.subr.mxu0 0.0
      %358 = vmatpush1.msra.mxu0 0.0
      %359 = vmatprep.subr.mxu0 0.0
      %360 = vmatpush1.msra.mxu0 0.0
      %361 = vmatprep.subr.mxu0 0.0
      %362 = vmatpush1.msra.mxu0 0.0
      %363 = vmatprep.subr.mxu0 0.0
      %364 = vmatpush1.msra.mxu0 0.0
      %365 = vmatprep.subr.mxu0 0.0
      %366 = vmatpush1.msra.mxu0 0.0
      %367 = vmatprep.subr.mxu0 0.0
      %368 = vmatpush1.msra.mxu0 0.0
      %369 = vmatprep.subr.mxu0 0.0
      %370 = vmatpush1.msra.mxu0 0.0
      %371 = vmatprep.subr.mxu0 0.0
      %372 = vmatpush1.msra.mxu0 0.0
      %373 = vmatprep.subr.mxu0 0.0
      %374 = vmatpush1.msra.mxu0 0.0
      %375 = vmatprep.subr.mxu0 0.0
      %376 = vmatpush1.msra.mxu0 0.0
      %377 = vmatprep.subr.mxu0 0.0
      %378 = vmatpush1.msra.mxu0 0.0
      %379 = vmatprep.subr.mxu0 0.0
      %380 = vmatpush1.msra.mxu0 0.0
      %381 = vmatprep.subr.mxu0 0.0
      %382 = vmatpush1.msra.mxu0 0.0
      %383 = vmatprep.subr.mxu0 0.0
      %384 = vmatpush1.msra.mxu0 0.0
      %385 = vmatprep.subr.mxu0 0.0
      %386 = vmatpush1.msra.mxu0 0.0
      %387 = vmatprep.subr.mxu0 0.0
      %388 = vmatpush1.msra.mxu0 0.0
      %389 = vmatprep.subr.mxu0 0.0
      %390 = vmatpush1.msra.mxu0 0.0
      %391 = vmatprep.subr.mxu0 0.0
      %392 = vmatpush1.msra.mxu0 0.0
      %393 = vmatprep.subr.mxu0 0.0
      %394 = vmatpush1.msra.mxu0 0.0
      %395 = vmatprep.subr.mxu0 0.0
      %396 = vmatpush1.msra.mxu0 0.0
      %397 = vmatprep.subr.mxu0 0.0
      %398 = vmatpush1.msra.mxu0 0.0
      %399 = vmatprep.subr.mxu0 0.0
      %400 = vmatpush1.msra.mxu0 0.0
      %401 = vmatprep.subr.mxu0 0.0
      %402 = vmatpush1.msra.mxu0 0.0
      %403 = vmatprep.subr.mxu0 0.0
      %404 = vmatpush1.msra.mxu0 0.0
      %405 = vmatprep.subr.mxu0 0.0
      %406 = vmatpush1.msra.mxu0 0.0
      %407 = vmatprep.subr.mxu0 0.0
      %408 = vmatpush1.msra.mxu0 0.0
      %409 = vmatprep.subr.mxu0 0.0
      %410 = vmatpush1.msra.mxu0 0.0
      %411 = vmatprep.mubr.f32.mxu0 0.0
      %v412 = vand.u32 %v243, 4294901760
      %413 = vmatmul.mubr.f32.gmra.mrb[0].mxu0 %v412
      %v414 = vpop.f32.mrb[0].mxu0
      %v415 = vadd.f32 %v322, %v414
      %v416 = vpop.f32.mrb[0].mxu0
      %v417 = vadd.f32 %v324, %v416
      %418 = vmatprep.mubr.f32.mxu0 0.0
      %v419 = vand.u32 %v246, 4294901760
      %420 = vmatmul.mubr.f32.gmra.mrb[0].mxu0 %v419
      %v421 = vpop.f32.mrb[0].mxu0
      %v422 = vadd.f32 %v333, %v421
      %v423 = vpop.f32.mrb[0].mxu0
      %v424 = vadd.f32 %v335, %v423
      %425 = vdwg.mxu0
      %v426 = vand.u32 %v240, 4294901760
      %v427 = vsub.f32 %v240, %v426
      %428 = vmatprep.subr.mxu0 %v427
      %v429 = vand.u32 %v239, 4294901760
      %v430 = vsub.f32 %v239, %v429
      %431 = vmatpush1.msra.mxu0 %v430
      %432 = vmatprep.subr.mxu0 0.0
      %433 = vmatpush1.msra.mxu0 0.0
      %434 = vmatprep.subr.mxu0 0.0
      %435 = vmatpush1.msra.mxu0 0.0
      %436 = vmatprep.subr.mxu0 0.0
      %437 = vmatpush1.msra.mxu0 0.0
      %438 = vmatprep.subr.mxu0 0.0
      %439 = vmatpush1.msra.mxu0 0.0
      %440 = vmatprep.subr.mxu0 0.0
      %441 = vmatpush1.msra.mxu0 0.0
      %442 = vmatprep.subr.mxu0 0.0
      %443 = vmatpush1.msra.mxu0 0.0
      %444 = vmatprep.subr.mxu0 0.0
      %445 = vmatpush1.msra.mxu0 0.0
      %446 = vmatprep.subr.mxu0 0.0
      %447 = vmatpush1.msra.mxu0 0.0
      %448 = vmatprep.subr.mxu0 0.0
      %449 = vmatpush1.msra.mxu0 0.0
      %450 = vmatprep.subr.mxu0 0.0
      %451 = vmatpush1.msra.mxu0 0.0
      %452 = vmatprep.subr.mxu0 0.0
      %453 = vmatpush1.msra.mxu0 0.0
      %454 = vmatprep.subr.mxu0 0.0
      %455 = vmatpush1.msra.mxu0 0.0
      %456 = vmatprep.subr.mxu0 0.0
      %457 = vmatpush1.msra.mxu0 0.0
      %458 = vmatprep.subr.mxu0 0.0
      %459 = vmatpush1.msra.mxu0 0.0
      %460 = vmatprep.subr.mxu0 0.0
      %461 = vmatpush1.msra.mxu0 0.0
      %462 = vmatprep.subr.mxu0 0.0
      %463 = vmatpush1.msra.mxu0 0.0
      %464 = vmatprep.subr.mxu0 0.0
      %465 = vmatpush1.msra.mxu0 0.0
      %466 = vmatprep.subr.mxu0 0.0
      %467 = vmatpush1.msra.mxu0 0.0
      %468 = vmatprep.subr.mxu0 0.0
      %469 = vmatpush1.msra.mxu0 0.0
      %470 = vmatprep.subr.mxu0 0.0
      %471 = vmatpush1.msra.mxu0 0.0
      %472 = vmatprep.subr.mxu0 0.0
      %473 = vmatpush1.msra.mxu0 0.0
      %474 = vmatprep.subr.mxu0 0.0
      %475 = vmatpush1.msra.mxu0 0.0
      %476 = vmatprep.subr.mxu0 0.0
      %477 = vmatpush1.msra.mxu0 0.0
      %478 = vmatprep.subr.mxu0 0.0
      %479 = vmatpush1.msra.mxu0 0.0
      %480 = vmatprep.subr.mxu0 0.0
      %481 = vmatpush1.msra.mxu0 0.0
      %482 = vmatprep.subr.mxu0 0.0
      %483 = vmatpush1.msra.mxu0 0.0
      %484 = vmatprep.subr.mxu0 0.0
      %485 = vmatpush1.msra.mxu0 0.0
      %486 = vmatprep.subr.mxu0 0.0
      %487 = vmatpush1.msra.mxu0 0.0
      %488 = vmatprep.subr.mxu0 0.0
      %489 = vmatpush1.msra.mxu0 0.0
      %490 = vmatprep.subr.mxu0 0.0
      %491 = vmatpush1.msra.mxu0 0.0
      %492 = vmatprep.subr.mxu0 0.0
      %493 = vmatpush1.msra.mxu0 0.0
      %494 = vmatprep.mubr.f32.mxu0 0.0
      %v495 = vand.u32 %v243, 4294901760
      %v496 = vsub.f32 %v243, %v495
      %497 = vmatmul.mubr.f32.gmra.mrb[0].mxu0 %v496
      %v498 = vpop.f32.mrb[0].mxu0
      %v499 = vadd.f32 %v415, %v498
      %v500 = vpop.f32.mrb[0].mxu0
      %v501 = vadd.f32 %v417, %v500
      %502 = vmatprep.mubr.f32.mxu0 0.0
      %v503 = vand.u32 %v246, 4294901760
      %v504 = vsub.f32 %v246, %v503
      %505 = vmatmul.mubr.f32.gmra.mrb[0].mxu0 %v504
      %v506 = vpop.f32.mrb[0].mxu0
      %v507 = vadd.f32 %v422, %v506
      %v508 = vpop.f32.mrb[0].mxu0
      %v509 = vadd.f32 %v424, %v508
      %510 = vdwg.mxu0
      %v511 = vand.u32 %v240, 4294901760
      %512 = vmatprep.subr.mxu0 %v511
      %v513 = vand.u32 %v239, 4294901760
      %514 = vmatpush1.msra.mxu0 %v513
      %515 = vmatprep.subr.mxu0 0.0
      %516 = vmatpush1.msra.mxu0 0.0
      %517 = vmatprep.subr.mxu0 0.0
      %518 = vmatpush1.msra.mxu0 0.0
      %519 = vmatprep.subr.mxu0 0.0
      %520 = vmatpush1.msra.mxu0 0.0
      %521 = vmatprep.subr.mxu0 0.0
      %522 = vmatpush1.msra.mxu0 0.0
      %523 = vmatprep.subr.mxu0 0.0
      %524 = vmatpush1.msra.mxu0 0.0
      %525 = vmatprep.subr.mxu0 0.0
      %526 = vmatpush1.msra.mxu0 0.0
      %527 = vmatprep.subr.mxu0 0.0
      %528 = vmatpush1.msra.mxu0 0.0
      %529 = vmatprep.subr.mxu0 0.0
      %530 = vmatpush1.msra.mxu0 0.0
      %531 = vmatprep.subr.mxu0 0.0
      %532 = vmatpush1.msra.mxu0 0.0
      %533 = vmatprep.subr.mxu0 0.0
      %534 = vmatpush1.msra.mxu0 0.0
      %535 = vmatprep.subr.mxu0 0.0
      %536 = vmatpush1.msra.mxu0 0.0
      %537 = vmatprep.subr.mxu0 0.0
      %538 = vmatpush1.msra.mxu0 0.0
      %539 = vmatprep.subr.mxu0 0.0
      %540 = vmatpush1.msra.mxu0 0.0
      %541 = vmatprep.subr.mxu0 0.0
      %542 = vmatpush1.msra.mxu0 0.0
      %543 = vmatprep.subr.mxu0 0.0
      %544 = vmatpush1.msra.mxu0 0.0
      %545 = vmatprep.subr.mxu0 0.0
      %546 = vmatpush1.msra.mxu0 0.0
      %547 = vmatprep.subr.mxu0 0.0
      %548 = vmatpush1.msra.mxu0 0.0
      %549 = vmatprep.subr.mxu0 0.0
      %550 = vmatpush1.msra.mxu0 0.0
      %551 = vmatprep.subr.mxu0 0.0
      %552 = vmatpush1.msra.mxu0 0.0
      %553 = vmatprep.subr.mxu0 0.0
      %554 = vmatpush1.msra.mxu0 0.0
      %555 = vmatprep.subr.mxu0 0.0
      %556 = vmatpush1.msra.mxu0 0.0
      %557 = vmatprep.subr.mxu0 0.0
      %558 = vmatpush1.msra.mxu0 0.0
      %559 = vmatprep.subr.mxu0 0.0
      %560 = vmatpush1.msra.mxu0 0.0
      %561 = vmatprep.subr.mxu0 0.0
      %562 = vmatpush1.msra.mxu0 0.0
      %563 = vmatprep.subr.mxu0 0.0
      %564 = vmatpush1.msra.mxu0 0.0
      %565 = vmatprep.subr.mxu0 0.0
      %566 = vmatpush1.msra.mxu0 0.0
      %567 = vmatprep.subr.mxu0 0.0
      %568 = vmatpush1.msra.mxu0 0.0
      %569 = vmatprep.subr.mxu0 0.0
      %570 = vmatpush1.msra.mxu0 0.0
      %571 = vmatprep.subr.mxu0 0.0
      %572 = vmatpush1.msra.mxu0 0.0
      %573 = vmatprep.subr.mxu0 0.0
      %574 = vmatpush1.msra.mxu0 0.0
      %575 = vmatprep.subr.mxu0 0.0
      %576 = vmatpush1.msra.mxu0 0.0
      %577 = vmatprep.mubr.f32.mxu0 0.0
      %v578 = vand.u32 %v243, 4294901760
      %v579 = vsub.f32 %v243, %v578
      %v580 = vand.u32 %v579, 4294901760
      %581 = vmatmul.mubr.f32.gmra.mrb[0].mxu0 %v580
      %v582 = vpop.f32.mrb[0].mxu0
      %v583 = vadd.f32 %v499, %v582
      %v584 = vpop.f32.mrb[0].mxu0
      %v585 = vadd.f32 %v501, %v584
      %586 = vmatprep.mubr.f32.mxu0 0.0
      %v587 = vand.u32 %v246, 4294901760
      %v588 = vsub.f32 %v246, %v587
      %v589 = vand.u32 %v588, 4294901760
      %590 = vmatmul.mubr.f32.gmra.mrb[0].mxu0 %v589
      %v591 = vpop.f32.mrb[0].mxu0
      %v592 = vadd.f32 %v507, %v591
      %v593 = vpop.f32.mrb[0].mxu0
      %v594 = vadd.f32 %v509, %v593
      %595 = vdwg.mxu0
      %v596 = vand.u32 %v240, 4294901760
      %v597 = vsub.f32 %v240, %v596
      %v598 = vand.u32 %v597, 4294901760
      %599 = vmatprep.subr.mxu0 %v598
      %v600 = vand.u32 %v239, 4294901760
      %v601 = vsub.f32 %v239, %v600
      %v602 = vand.u32 %v601, 4294901760
      %603 = vmatpush1.msra.mxu0 %v602
      %604 = vmatprep.subr.mxu0 0.0
      %605 = vmatpush1.msra.mxu0 0.0
      %606 = vmatprep.subr.mxu0 0.0
      %607 = vmatpush1.msra.mxu0 0.0
      %608 = vmatprep.subr.mxu0 0.0
      %609 = vmatpush1.msra.mxu0 0.0
      %610 = vmatprep.subr.mxu0 0.0
      %611 = vmatpush1.msra.mxu0 0.0
      %612 = vmatprep.subr.mxu0 0.0
      %613 = vmatpush1.msra.mxu0 0.0
      %614 = vmatprep.subr.mxu0 0.0
      %615 = vmatpush1.msra.mxu0 0.0
      %616 = vmatprep.subr.mxu0 0.0
      %617 = vmatpush1.msra.mxu0 0.0
      %618 = vmatprep.subr.mxu0 0.0
      %619 = vmatpush1.msra.mxu0 0.0
      %620 = vmatprep.subr.mxu0 0.0
      %621 = vmatpush1.msra.mxu0 0.0
      %622 = vmatprep.subr.mxu0 0.0
      %623 = vmatpush1.msra.mxu0 0.0
      %624 = vmatprep.subr.mxu0 0.0
      %625 = vmatpush1.msra.mxu0 0.0
      %626 = vmatprep.subr.mxu0 0.0
      %627 = vmatpush1.msra.mxu0 0.0
      %628 = vmatprep.subr.mxu0 0.0
      %629 = vmatpush1.msra.mxu0 0.0
      %630 = vmatprep.subr.mxu0 0.0
      %631 = vmatpush1.msra.mxu0 0.0
      %632 = vmatprep.subr.mxu0 0.0
      %633 = vmatpush1.msra.mxu0 0.0
      %634 = vmatprep.subr.mxu0 0.0
      %635 = vmatpush1.msra.mxu0 0.0
      %636 = vmatprep.subr.mxu0 0.0
      %637 = vmatpush1.msra.mxu0 0.0
      %638 = vmatprep.subr.mxu0 0.0
      %639 = vmatpush1.msra.mxu0 0.0
      %640 = vmatprep.subr.mxu0 0.0
      %641 = vmatpush1.msra.mxu0 0.0
      %642 = vmatprep.subr.mxu0 0.0
      %643 = vmatpush1.msra.mxu0 0.0
      %644 = vmatprep.subr.mxu0 0.0
      %645 = vmatpush1.msra.mxu0 0.0
      %646 = vmatprep.subr.mxu0 0.0
      %647 = vmatpush1.msra.mxu0 0.0
      %648 = vmatprep.subr.mxu0 0.0
      %649 = vmatpush1.msra.mxu0 0.0
      %650 = vmatprep.subr.mxu0 0.0
      %651 = vmatpush1.msra.mxu0 0.0
      %652 = vmatprep.subr.mxu0 0.0
      %653 = vmatpush1.msra.mxu0 0.0
      %654 = vmatprep.subr.mxu0 0.0
      %655 = vmatpush1.msra.mxu0 0.0
      %656 = vmatprep.subr.mxu0 0.0
      %657 = vmatpush1.msra.mxu0 0.0
      %658 = vmatprep.subr.mxu0 0.0
      %659 = vmatpush1.msra.mxu0 0.0
      %660 = vmatprep.subr.mxu0 0.0
      %661 = vmatpush1.msra.mxu0 0.0
      %662 = vmatprep.subr.mxu0 0.0
      %663 = vmatpush1.msra.mxu0 0.0
      %664 = vmatprep.subr.mxu0 0.0
      %665 = vmatpush1.msra.mxu0 0.0
      %666 = vmatprep.mubr.f32.mxu0 0.0
      %v667 = vand.u32 %v243, 4294901760
      %668 = vmatmul.mubr.f32.gmra.mrb[0].mxu0 %v667
      %v669 = vpop.f32.mrb[0].mxu0
      %v670 = vadd.f32 %v583, %v669
      %v671 = vpop.f32.mrb[0].mxu0
      %v672 = vadd.f32 %v585, %v671
      %673 = vmatprep.mubr.f32.mxu0 0.0
      %v674 = vand.u32 %v246, 4294901760
      %675 = vmatmul.mubr.f32.gmra.mrb[0].mxu0 %v674
      %v676 = vpop.f32.mrb[0].mxu0
      %v677 = vadd.f32 %v592, %v676
      %v678 = vpop.f32.mrb[0].mxu0
      %v679 = vadd.f32 %v594, %v678
      %680 = vdwg.mxu0
      %v681 = vand.u32 %v240, 4294901760
      %682 = vmatprep.subr.mxu0 %v681
      %v683 = vand.u32 %v239, 4294901760
      %684 = vmatpush1.msra.mxu0 %v683
      %685 = vmatprep.subr.mxu0 0.0
      %686 = vmatpush1.msra.mxu0 0.0
      %687 = vmatprep.subr.mxu0 0.0
      %688 = vmatpush1.msra.mxu0 0.0
      %689 = vmatprep.subr.mxu0 0.0
      %690 = vmatpush1.msra.mxu0 0.0
      %691 = vmatprep.subr.mxu0 0.0
      %692 = vmatpush1.msra.mxu0 0.0
      %693 = vmatprep.subr.mxu0 0.0
      %694 = vmatpush1.msra.mxu0 0.0
      %695 = vmatprep.subr.mxu0 0.0
      %696 = vmatpush1.msra.mxu0 0.0
      %697 = vmatprep.subr.mxu0 0.0
      %698 = vmatpush1.msra.mxu0 0.0
      %699 = vmatprep.subr.mxu0 0.0
      %700 = vmatpush1.msra.mxu0 0.0
      %701 = vmatprep.subr.mxu0 0.0
      %702 = vmatpush1.msra.mxu0 0.0
      %703 = vmatprep.subr.mxu0 0.0
      %704 = vmatpush1.msra.mxu0 0.0
      %705 = vmatprep.subr.mxu0 0.0
      %706 = vmatpush1.msra.mxu0 0.0
      %707 = vmatprep.subr.mxu0 0.0
      %708 = vmatpush1.msra.mxu0 0.0
      %709 = vmatprep.subr.mxu0 0.0
      %710 = vmatpush1.msra.mxu0 0.0
      %711 = vmatprep.subr.mxu0 0.0
      %712 = vmatpush1.msra.mxu0 0.0
      %713 = vmatprep.subr.mxu0 0.0
      %714 = vmatpush1.msra.mxu0 0.0
      %715 = vmatprep.subr.mxu0 0.0
      %716 = vmatpush1.msra.mxu0 0.0
      %717 = vmatprep.subr.mxu0 0.0
      %718 = vmatpush1.msra.mxu0 0.0
      %719 = vmatprep.subr.mxu0 0.0
      %720 = vmatpush1.msra.mxu0 0.0
      %721 = vmatprep.subr.mxu0 0.0
      %722 = vmatpush1.msra.mxu0 0.0
      %723 = vmatprep.subr.mxu0 0.0
      %724 = vmatpush1.msra.mxu0 0.0
      %725 = vmatprep.subr.mxu0 0.0
      %726 = vmatpush1.msra.mxu0 0.0
      %727 = vmatprep.subr.mxu0 0.0
      %728 = vmatpush1.msra.mxu0 0.0
      %729 = vmatprep.subr.mxu0 0.0
      %730 = vmatpush1.msra.mxu0 0.0
      %731 = vmatprep.subr.mxu0 0.0
      %732 = vmatpush1.msra.mxu0 0.0
      %733 = vmatprep.subr.mxu0 0.0
      %734 = vmatpush1.msra.mxu0 0.0
      %735 = vmatprep.subr.mxu0 0.0
      %736 = vmatpush1.msra.mxu0 0.0
      %737 = vmatprep.subr.mxu0 0.0
      %738 = vmatpush1.msra.mxu0 0.0
      %739 = vmatprep.subr.mxu0 0.0
      %740 = vmatpush1.msra.mxu0 0.0
      %741 = vmatprep.subr.mxu0 0.0
      %742 = vmatpush1.msra.mxu0 0.0
      %743 = vmatprep.subr.mxu0 0.0
      %744 = vmatpush1.msra.mxu0 0.0
      %745 = vmatprep.subr.mxu0 0.0
      %746 = vmatpush1.msra.mxu0 0.0
      %747 = vmatprep.mubr.f32.mxu0 0.0
      %v748 = vand.u32 %v243, 4294901760
      %749 = vmatmul.mubr.f32.gmra.mrb[0].mxu0 %v748
      %v750 = vpop.f32.mrb[0].mxu0
      %v751 = vadd.f32 %v670, %v750
      %v752 = vpop.f32.mrb[0].mxu0
      %v753 = vadd.f32 %v672, %v752
      %754 = vmatprep.mubr.f32.mxu0 0.0
      %v755 = vand.u32 %v246, 4294901760
      %756 = vmatmul.mubr.f32.gmra.mrb[0].mxu0 %v755
      %v757 = vpop.f32.mrb[0].mxu0
      %v758 = vadd.f32 %v677, %v757
      %v759 = vpop.f32.mrb[0].mxu0
      %v760 = vadd.f32 %v679, %v759
      %761 = vdwg.mxu0
      %v762 = vld [vmem:[%s2] sm:$0xff]
      %v763 = vld [vmem:[%s2 + $0x8] sm:$0xff]
      %765 = vset.pattern.permute.xlu0 0
      %766 = vperm.xlu0 %765, %v762
      %v767 = vpop.permute.xlu0 %766
      %770 = vset.pattern.permute.xlu0 0
      %771 = vperm.xlu0 %770, %v763
      %v772 = vpop.permute.xlu0 %771
      %v774 = vmul.f32 %v751, %v767
      %v775 = vmul.f32 %v753, %v767
      %v776 = vmul.f32 %v758, %v772
      %v777 = vmul.f32 %v760, %v772
      %v778 = vld [vmem:[%s3] sm:$0xff]
      %v779 = vld [vmem:[%s3 + $0x8] sm:$0xff]
      %781 = vset.pattern.permute.xlu0 0
      %782 = vperm.xlu0 %781, %v778
      %v783 = vpop.permute.xlu0 %782
      %786 = vset.pattern.permute.xlu0 0
      %787 = vperm.xlu0 %786, %v779
      %v788 = vpop.permute.xlu0 %787
      %v790 = vadd.f32 %v774, %v783
      %v791 = vadd.f32 %v775, %v783
      %v792 = vadd.f32 %v776, %v788
      %v793 = vadd.f32 %v777, %v788
      %v794 = vmax.f32 %v790, 0.0
      %v795 = vmax.f32 %v791, 0.0
      %v796 = vmax.f32 %v792, 0.0
      %v797 = vmax.f32 %v793, 0.0
      %798 = vst [vmem:[%s235] sm:$0xff] %v794
      %799 = vst [vmem:[%s235 + $0x8] sm:$0xff] %v795
      %800 = vst [vmem:[%s235 + $0x10] sm:$0xff] %v796
      %801 = vst [vmem:[%s235 + $0x18] sm:$0xff] %v797
      %s802 = smul.u32 2, %s20
      %p803 = scmp.lt.s32.totalorder %s19, 1
      %s804 = scalar_select %p803, %s19, 1
      %p805 = scmp.lt.s32.totalorder %s802, 1
      %s806 = scalar_select %p805, %s802, 1
      %s807 = smul.addr %s804, 4
      %s808 = sadd.s32 %s806, %s807
      %s809 = smul.addr %s808, 8
      %s810 = scalar_lea.vmem %s4, %s809
      // Predicated region
      $region37: #{a_call__.3} parent=35 // pred_check
        %p811 = pneg %p138
      $region38: #{a_call__.3} parent=35 // pred_check_branch
        %813 = sbr.rel (%p811) target = $region40
      $region39: #{a_call__.3} parent=35 // pred_region
        %s814 = smul.u32 2, %s20
      $region40: #{a_call__.3} parent=35 // pred_fallthru
        _
    $region36: #{a_call__.3} parent=5 // pred_fallthru
      _
    %p815 = scmp.le.s32.totalorder 2, %s10
    // Predicated region
    $region41: #{a_call__.3} parent=5 // pred_check
      %p816 = pneg %p815
    $region42: #{a_call__.3} parent=5 // pred_check_branch
      %818 = sbr.rel (%p816) target = $region44
    $region43: #{a_call__.3} parent=5 // pred_region
      %s819 = ssub.s32 %s10, 2
      // Predicated region
      $region45: #{a_call__.3} parent=43 // pred_check
        %p820 = pneg %p144
      $region46: #{a_call__.3} parent=43 // pred_check_branch
        %822 = sbr.rel (%p820) target = $region48
      $region47: #{a_call__.3} parent=43 // pred_region
        %s823 = smul.u32 2, %s22
        %p824 = scmp.lt.s32.totalorder %s21, 1
        %s825 = scalar_select %p824, %s21, 1
        %p826 = scmp.lt.s32.totalorder %s823, 1
        %s827 = scalar_select %p826, %s823, 1
        %s828 = smul.addr %s825, 4
        %s829 = sadd.s32 %s827, %s828
        %s830 = smul.addr %s829, 8
        %s831 = scalar_lea.vmem %s4, %s830
      $region48: #{a_call__.3} parent=43 // pred_fallthru
        _
    $region44: #{a_call__.3} parent=5 // pred_fallthru
      _
  $region6: #{a_call__.3} parent=0 // loop_footer
    %s14 = sadd.s32 1, %s10
  $region7: #{a_call__.3} parent=0 // loop_footer_branch
    %9 = sbr.rel target = $region3
  $region8: #{a_call__.3} parent=0 // loop_exit
    _

// kernel: a_call__.5
$region0: #{a_call__.5}
  #allocation0 [shape = 'u32[]', space=smem, size = 0x4, offset = 0x4, fixed_abs, tag = 'smem constant byte address 0x4 - core index']
  #allocation1 [shape = 'u32[144,128]{1,0:T(1,128)}', space=vmem, size = 0x12000, scoped, tag = 'internal scratch']
  %s0 = inlined_call_operand.vmem [shape: f32[2,16,256], index: 0, kind: input, shape index: {}]
  %s1 = inlined_call_operand.vmem [shape: f32[8,16], index: 1, kind: input, shape index: {}]
  %s2 = inlined_call_operand.vmem [shape: f32[8,1], index: 2, kind: input, shape index: {}]
  %s3 = inlined_call_operand.vmem [shape: f32[8,1], index: 3, kind: input, shape index: {}]
  %s4 = inlined_call_operand.vmem [shape: f32[2,8,256], index: 4, kind: output, shape index: {}]
  %s5 = sld [smem:[#allocation0]]
  $region49: #{a_call__.5} parent=0
    _
  %s7 = ssub.s32 1, %s5
  %s8 = scalar_select 0, %s7, %s5
  loop: start=0, step=1, limit=4
  $region2: #{a_call__.5} parent=0 // loop_pre_header
    _
  $region3: #{a_call__.5} parent=0 // loop_header
    %s10 = sphi 0, %s14
    %p11 = scmp.ge.s32.totalorder %s10, 4
    %s17 = sphi 0, %s29
    %s18 = sphi 0, %s25
    %s19 = sphi 0, %s17
    %s20 = sphi 0, %s18
    %s21 = sphi 0, %s19
    %s22 = sphi 0, %s20
    %s34 = sphi 0, %s36
    %s37 = sphi 0, %s34
    %s38 = sphi 0, %s37
    %s54 = sphi 0, %s38
    %s58 = sphi 0, %s58
    %s60 = sphi 0, %s58
    %s61 = sphi 0, %s60
    %s75 = sphi 0, %s61
    %s79 = sphi 0, %s79
    %s81 = sphi 0, %s79
    %s82 = sphi 0, %s81
    %s96 = sphi 0, %s82
    %s100 = sphi 0, %s100
    %s102 = sphi 0, %s100
    %s103 = sphi 0, %s102
    %s117 = sphi 0, %s103
    %s125 = sphi 0, %s127
    %s128 = sphi 0, %s125
    %s129 = sphi 0, %s128
    %s145 = sphi 0, %s129
  $region4: #{a_call__.5} parent=0 // loop_header_branch
    %13 = sbr.rel (%p11) target = $region8
  $region5: #{a_call__.5} parent=0 // loop_body
    %s15 = ssub.s32 %s10, 1
    %s16 = ssub.s32 %s10, 2
    %s23 = sadd.s32 1, %s18
    %p24 = scmp.ge.s32.totalorder %s23, 1
    %s25 = scalar_select %p24, 0, %s23
    %s26 = sadd.s32 1, %s17
    %s27 = scalar_select %p24, %s26, %s17
    %p28 = scmp.ge.s32.totalorder %s27, 2
    %s29 = scalar_select %p28, 0, %s27
    %s30 = ssub.s32 %s17, %s29
    %s31 = ssub.s32 %s18, %s25
    %s32 = sor.u32 %s30, %s31
    %p33 = scmp.eq.s32.totalorder %s32, 0
    %s35 = sadd.s32 %s34, 1
    %s36 = scalar_select %p33, %s34, %s35
    %p39 = pneg %p33
    %p40 = scmp.eq.s32.totalorder %s10, 1
    %p41 = por %p39, %p40
    %p42 = scmp.ne.s32.totalorder %s34, %s37
    %p43 = scmp.eq.s32.totalorder %s10, 0
    %p44 = por %p42, %p43
    %p45 = scmp.ne.s32.totalorder %s34, %s37
    %p46 = scmp.eq.s32.totalorder %s15, 1
    %p47 = por %p45, %p46
    %p48 = scmp.ne.s32.totalorder %s37, %s38
    %p49 = scmp.eq.s32.totalorder %s15, 0
    %p50 = por %p48, %p49
    %p51 = scmp.ne.s32.totalorder %s37, %s38
    %p52 = scmp.eq.s32.totalorder %s16, 1
    %p53 = por %p51, %p52
    %p55 = scmp.ne.s32.totalorder %s38, %s54
    %p56 = scmp.eq.s32.totalorder %s16, 0
    %p57 = por %p55, %p56
    %s59 = sadd.s32 %s58, 1
    %p62 = scmp.eq.s32.totalorder %s10, 1
    %p63 = scmp.ne.s32.totalorder %s58, %s60
    %p64 = scmp.eq.s32.totalorder %s10, 0
    %p65 = por %p63, %p64
    %p66 = scmp.ne.s32.totalorder %s58, %s60
    %p67 = scmp.eq.s32.totalorder %s15, 1
    %p68 = por %p66, %p67
    %p69 = scmp.ne.s32.totalorder %s60, %s61
    %p70 = scmp.eq.s32.totalorder %s15, 0
    %p71 = por %p69, %p70
    %p72 = scmp.ne.s32.totalorder %s60, %s61
    %p73 = scmp.eq.s32.totalorder %s16, 1
    %p74 = por %p72, %p73
    %p76 = scmp.ne.s32.totalorder %s61, %s75
    %p77 = scmp.eq.s32.totalorder %s16, 0
    %p78 = por %p76, %p77
    %s80 = sadd.s32 %s79, 1
    %p83 = scmp.eq.s32.totalorder %s10, 1
    %p84 = scmp.ne.s32.totalorder %s79, %s81
    %p85 = scmp.eq.s32.totalorder %s10, 0
    %p86 = por %p84, %p85
    %p87 = scmp.ne.s32.totalorder %s79, %s81
    %p88 = scmp.eq.s32.totalorder %s15, 1
    %p89 = por %p87, %p88
    %p90 = scmp.ne.s32.totalorder %s81, %s82
    %p91 = scmp.eq.s32.totalorder %s15, 0
    %p92 = por %p90, %p91
    %p93 = scmp.ne.s32.totalorder %s81, %s82
    %p94 = scmp.eq.s32.totalorder %s16, 1
    %p95 = por %p93, %p94
    %p97 = scmp.ne.s32.totalorder %s82, %s96
    %p98 = scmp.eq.s32.totalorder %s16, 0
    %p99 = por %p97, %p98
    %s101 = sadd.s32 %s100, 1
    %p104 = scmp.eq.s32.totalorder %s10, 1
    %p105 = scmp.ne.s32.totalorder %s100, %s102
    %p106 = scmp.eq.s32.totalorder %s10, 0
    %p107 = por %p105, %p106
    %p108 = scmp.ne.s32.totalorder %s100, %s102
    %p109 = scmp.eq.s32.totalorder %s15, 1
    %p110 = por %p108, %p109
    %p111 = scmp.ne.s32.totalorder %s102, %s103
    %p112 = scmp.eq.s32.totalorder %s15, 0
    %p113 = por %p111, %p112
    %p114 = scmp.ne.s32.totalorder %s102, %s103
    %p115 = scmp.eq.s32.totalorder %s16, 1
    %p116 = por %p114, %p115
    %p118 = scmp.ne.s32.totalorder %s103, %s117
    %p119 = scmp.eq.s32.totalorder %s16, 0
    %p120 = por %p118, %p119
    %s121 = ssub.s32 %s17, %s29
    %s122 = ssub.s32 %s18, %s25
    %s123 = sor.u32 %s121, %s122
    %p124 = scmp.eq.s32.totalorder %s123, 0
    %s126 = sadd.s32 %s125, 1
    %s127 = scalar_select %p124, %s125, %s126
    %p130 = pneg %p124
    %p131 = scmp.eq.s32.totalorder %s10, 1
    %p132 = por %p130, %p131
    %p133 = scmp.ne.s32.totalorder %s125, %s128
    %p134 = scmp.eq.s32.totalorder %s10, 0
    %p135 = por %p133, %p134
    %p136 = scmp.ne.s32.totalorder %s125, %s128
    %p137 = scmp.eq.s32.totalorder %s15, 1
    %p138 = por %p136, %p137
    %p139 = scmp.ne.s32.totalorder %s128, %s129
    %p140 = scmp.eq.s32.totalorder %s15, 0
    %p141 = por %p139, %p140
    %p142 = scmp.ne.s32.totalorder %s128, %s129
    %p143 = scmp.eq.s32.totalorder %s16, 1
    %p144 = por %p142, %p143
    %p146 = scmp.ne.s32.totalorder %s129, %s145
    %p147 = scmp.eq.s32.totalorder %s16, 0
    %p148 = por %p146, %p147
    %p149 = scmp.le.s32.totalorder 1, %s10
    %p150 = scmp.lt.s32.totalorder %s10, 3
    %p151 = pnand %p149, %p150
    %p152 = pneg %p151
    // Predicated region
    $region9: #{a_call__.5} parent=5 // pred_check
      _
    $region10: #{a_call__.5} parent=5 // pred_check_branch
      %154 = sbr.rel (%p151) target = $region12
    $region11: #{a_call__.5} parent=5 // pred_region
      %s155 = ssub.s32 %s10, 1
      // Predicated region
      $region13: #{a_call__.5} parent=11 // pred_check
        %p156 = pneg %p71
      $region14: #{a_call__.5} parent=11 // pred_check_branch
        %158 = sbr.rel (%p156) target = $region16
      $region15: #{a_call__.5} parent=11 // pred_region
        _
      $region16: #{a_call__.5} parent=11 // pred_fallthru
        _
      // Predicated region
      $region17: #{a_call__.5} parent=11 // pred_check
        %p159 = pneg %p92
      $region18: #{a_call__.5} parent=11 // pred_check_branch
        %161 = sbr.rel (%p159) target = $region20
      $region19: #{a_call__.5} parent=11 // pred_region
        _
      $region20: #{a_call__.5} parent=11 // pred_fallthru
        _
      // Predicated region
      $region21: #{a_call__.5} parent=11 // pred_check
        %p162 = pneg %p113
      $region22: #{a_call__.5} parent=11 // pred_check_branch
        %164 = sbr.rel (%p162) target = $region24
      $region23: #{a_call__.5} parent=11 // pred_region
        _
      $region24: #{a_call__.5} parent=11 // pred_fallthru
        _
    $region12: #{a_call__.5} parent=5 // pred_fallthru
      _
    %p165 = scmp.lt.s32.totalorder %s10, 2
    // Predicated region
    $region25: #{a_call__.5} parent=5 // pred_check
      %p166 = pneg %p165
    $region26: #{a_call__.5} parent=5 // pred_check_branch
      %168 = sbr.rel (%p166) target = $region28
    $region27: #{a_call__.5} parent=5 // pred_region
      // Predicated region
      $region29: #{a_call__.5} parent=27 // pred_check
        %p169 = pneg %p44
      $region30: #{a_call__.5} parent=27 // pred_check_branch
        %171 = sbr.rel (%p169) target = $region32
      $region31: #{a_call__.5} parent=27 // pred_region
        %s172 = smul.u32 2, %s18
        %p173 = scmp.lt.s32.totalorder %s17, 1
        %s174 = scalar_select %p173, %s17, 1
        %p175 = scmp.lt.s32.totalorder %s172, 1
        %s176 = scalar_select %p175, %s172, 1
        %s177 = smul.addr %s174, 4
        %s178 = sadd.s32 %s176, %s177
        %s179 = smul.addr %s178, 8
        %s180 = scalar_lea.vmem %s0, %s179
        %s181 = smul.u32 2, %s18
      $region32: #{a_call__.5} parent=27 // pred_fallthru
        _
    $region28: #{a_call__.5} parent=5 // pred_fallthru
      _
    %p182 = scmp.le.s32.totalorder 1, %s10
    %p183 = scmp.lt.s32.totalorder %s10, 3
    %p184 = pnand %p182, %p183
    %p185 = pneg %p184
    // Predicated region
    $region33: #{a_call__.5} parent=5 // pred_check
      _
    $region34: #{a_call__.5} parent=5 // pred_check_branch
      %187 = sbr.rel (%p184) target = $region36
    $region35: #{a_call__.5} parent=5 // pred_region
      %s188 = ssub.s32 %s10, 1
      %s189 = smul.u32 2, %s20
      %p190 = scmp.lt.s32.totalorder %s19, 1
      %s191 = scalar_select %p190, %s19, 1
      %p192 = scmp.lt.s32.totalorder %s189, 1
      %s193 = scalar_select %p192, %s189, 1
      %s194 = smul.addr %s191, 4
      %s195 = sadd.s32 %s193, %s194
      %s196 = smul.addr %s195, 8
      %s197 = scalar_lea.vmem %s0, %s196
      %p198 = pneg %p50
      %p199 = pneg %p47
      %p200 = pneg %p71
      %p201 = pneg %p68
      %p202 = pneg %p92
      %p203 = pneg %p89
      %p204 = pneg %p113
      %p205 = pneg %p110
      %p206 = pneg %p141
      %p207 = pneg %p138
      %s208 = smul.u32 2, %s20
      %p209 = scmp.lt.s32.totalorder %s19, 1
      %s210 = scalar_select %p209, %s19, 1
      %p211 = scmp.lt.s32.totalorder %s208, 1
      %s212 = scalar_select %p211, %s208, 1
      %s213 = smul.addr %s210, 2
      %s214 = sadd.s32 %s212, %s213
      %s215 = smul.addr %s214, 8
      %s216 = scalar_lea.vmem %s4, %s215
      %s217 = smul.u32 2, %s20
      %p218 = scmp.lt.s32.totalorder %s19, 1
      %s219 = scalar_select %p218, %s19, 1
      %p220 = scmp.lt.s32.totalorder %s217, 1
      %s221 = scalar_select %p220, %s217, 1
      %s222 = smul.addr %s219, 4
      %s223 = sadd.s32 %s221, %s222
      %s224 = smul.addr %s223, 8
      %s225 = scalar_lea.vmem %s0, %s224
      %s226 = smul.u32 2, %s20
      %s227 = smul.u32 2, %s20
      %p228 = scmp.lt.s32.totalorder %s19, 1
      %s229 = scalar_select %p228, %s19, 1
      %p230 = scmp.lt.s32.totalorder %s227, 1
      %s231 = scalar_select %p230, %s227, 1
      %s232 = smul.addr %s229, 2
      %s233 = sadd.s32 %s231, %s232
      %s234 = smul.addr %s233, 8
      %s235 = scalar_lea.vmem %s4, %s234
      %s236 = smul.u32 2, %s20
      %v237 = vld [vmem:[%s1] sm:$0xff]
      %v238 = vld [vmem:[%s225] sm:$0xff]
      %v239 = vld [vmem:[%s225 + $0x8] sm:$0xff]
      %v240 = vld [vmem:[%s225 + $0x10] sm:$0xff]
      %v241 = vld [vmem:[%s225 + $0x18] sm:$0xff]
      %vm242 = vcmask 130048
      %v244 = vsel %vm242, %v237, 0
      %v246 = vand.u32 %v239, 4294901760
      %247 = vmatprep.subr.mxu0 %v246
      %v248 = vand.u32 %v238, 4294901760
      %249 = vmatpush1.msra.mxu0 %v248
      %v250 = vand.u32 %v241, 4294901760
      %251 = vmatprep.subr.mxu0 %v250
      %v252 = vand.u32 %v240, 4294901760
      %253 = vmatpush1.msra.mxu0 %v252
      %254 = vmatprep.subr.mxu0 0.0
      %255 = vmatpush1.msra.mxu0 0.0
      %256 = vmatprep.subr.mxu0 0.0
      %257 = vmatpush1.msra.mxu0 0.0
      %258 = vmatprep.subr.mxu0 0.0
      %259 = vmatpush1.msra.mxu0 0.0
      %260 = vmatprep.subr.mxu0 0.0
      %261 = vmatpush1.msra.mxu0 0.0
      %262 = vmatprep.subr.mxu0 0.0
      %263 = vmatpush1.msra.mxu0 0.0
      %264 = vmatprep.subr.mxu0 0.0
      %265 = vmatpush1.msra.mxu0 0.0
      %266 = vmatprep.subr.mxu0 0.0
      %267 = vmatpush1.msra.mxu0 0.0
      %268 = vmatprep.subr.mxu0 0.0
      %269 = vmatpush1.msra.mxu0 0.0
      %270 = vmatprep.subr.mxu0 0.0
      %271 = vmatpush1.msra.mxu0 0.0
      %272 = vmatprep.subr.mxu0 0.0
      %273 = vmatpush1.msra.mxu0 0.0
      %274 = vmatprep.subr.mxu0 0.0
      %275 = vmatpush1.msra.mxu0 0.0
      %276 = vmatprep.subr.mxu0 0.0
      %277 = vmatpush1.msra.mxu0 0.0
      %278 = vmatprep.subr.mxu0 0.0
      %279 = vmatpush1.msra.mxu0 0.0
      %280 = vmatprep.subr.mxu0 0.0
      %281 = vmatpush1.msra.mxu0 0.0
      %282 = vmatprep.subr.mxu0 0.0
      %283 = vmatpush1.msra.mxu0 0.0
      %284 = vmatprep.subr.mxu0 0.0
      %285 = vmatpush1.msra.mxu0 0.0
      %286 = vmatprep.subr.mxu0 0.0
      %287 = vmatpush1.msra.mxu0 0.0
      %288 = vmatprep.subr.mxu0 0.0
      %289 = vmatpush1.msra.mxu0 0.0
      %290 = vmatprep.subr.mxu0 0.0
      %291 = vmatpush1.msra.mxu0 0.0
      %292 = vmatprep.subr.mxu0 0.0
      %293 = vmatpush1.msra.mxu0 0.0
      %294 = vmatprep.subr.mxu0 0.0
      %295 = vmatpush1.msra.mxu0 0.0
      %296 = vmatprep.subr.mxu0 0.0
      %297 = vmatpush1.msra.mxu0 0.0
      %298 = vmatprep.subr.mxu0 0.0
      %299 = vmatpush1.msra.mxu0 0.0
      %300 = vmatprep.subr.mxu0 0.0
      %301 = vmatpush1.msra.mxu0 0.0
      %302 = vmatprep.subr.mxu0 0.0
      %303 = vmatpush1.msra.mxu0 0.0
      %304 = vmatprep.subr.mxu0 0.0
      %305 = vmatpush1.msra.mxu0 0.0
      %306 = vmatprep.subr.mxu0 0.0
      %307 = vmatpush1.msra.mxu0 0.0
      %308 = vmatprep.subr.mxu0 0.0
      %309 = vmatpush1.msra.mxu0 0.0
      %310 = vmatprep.subr.mxu0 0.0
      %311 = vmatpush1.msra.mxu0 0.0
      %312 = vmatprep.subr.mxu0 0.0
      %313 = vmatpush1.msra.mxu0 0.0
      %314 = vmatprep.mubr.f32.mxu0 0.0
      %v315 = vand.u32 %v244, 4294901760
      %v316 = vsub.f32 %v244, %v315
      %v317 = vand.u32 %v316, 4294901760
      %v318 = vsub.f32 %v316, %v317
      %v319 = vand.u32 %v318, 4294901760
      %320 = vmatmul.mubr.f32.gmra.mrb[0].mxu0 %v319
      %v321 = vpop.f32.mrb[0].mxu0
      %v322 = vadd.f32 0.0, %v321
      %v323 = vpop.f32.mrb[0].mxu0
      %v324 = vadd.f32 0.0, %v323
      %325 = vdwg.mxu0
      %v326 = vand.u32 %v239, 4294901760
      %v327 = vsub.f32 %v239, %v326
      %v328 = vand.u32 %v327, 4294901760
      %v329 = vsub.f32 %v327, %v328
      %v330 = vand.u32 %v329, 4294901760
      %331 = vmatprep.subr.mxu0 %v330
      %v332 = vand.u32 %v238, 4294901760
      %v333 = vsub.f32 %v238, %v332
      %v334 = vand.u32 %v333, 4294901760
      %v335 = vsub.f32 %v333, %v334
      %v336 = vand.u32 %v335, 4294901760
      %337 = vmatpush1.msra.mxu0 %v336
      %v338 = vand.u32 %v241, 4294901760
      %v339 = vsub.f32 %v241, %v338
      %v340 = vand.u32 %v339, 4294901760
      %v341 = vsub.f32 %v339, %v340
      %v342 = vand.u32 %v341, 4294901760
      %343 = vmatprep.subr.mxu0 %v342
      %v344 = vand.u32 %v240, 4294901760
      %v345 = vsub.f32 %v240, %v344
      %v346 = vand.u32 %v345, 4294901760
      %v347 = vsub.f32 %v345, %v346
      %v348 = vand.u32 %v347, 4294901760
      %349 = vmatpush1.msra.mxu0 %v348
      %350 = vmatprep.subr.mxu0 0.0
      %351 = vmatpush1.msra.mxu0 0.0
      %352 = vmatprep.subr.mxu0 0.0
      %353 = vmatpush1.msra.mxu0 0.0
      %354 = vmatprep.subr.mxu0 0.0
      %355 = vmatpush1.msra.mxu0 0.0
      %356 = vmatprep.subr.mxu0 0.0
      %357 = vmatpush1.msra.mxu0 0.0
      %358 = vmatprep.subr.mxu0 0.0
      %359 = vmatpush1.msra.mxu0 0.0
      %360 = vmatprep.subr.mxu0 0.0
      %361 = vmatpush1.msra.mxu0 0.0
      %362 = vmatprep.subr.mxu0 0.0
      %363 = vmatpush1.msra.mxu0 0.0
      %364 = vmatprep.subr.mxu0 0.0
      %365 = vmatpush1.msra.mxu0 0.0
      %366 = vmatprep.subr.mxu0 0.0
      %367 = vmatpush1.msra.mxu0 0.0
      %368 = vmatprep.subr.mxu0 0.0
      %369 = vmatpush1.msra.mxu0 0.0
      %370 = vmatprep.subr.mxu0 0.0
      %371 = vmatpush1.msra.mxu0 0.0
      %372 = vmatprep.subr.mxu0 0.0
      %373 = vmatpush1.msra.mxu0 0.0
      %374 = vmatprep.subr.mxu0 0.0
      %375 = vmatpush1.msra.mxu0 0.0
      %376 = vmatprep.subr.mxu0 0.0
      %377 = vmatpush1.msra.mxu0 0.0
      %378 = vmatprep.subr.mxu0 0.0
      %379 = vmatpush1.msra.mxu0 0.0
      %380 = vmatprep.subr.mxu0 0.0
      %381 = vmatpush1.msra.mxu0 0.0
      %382 = vmatprep.subr.mxu0 0.0
      %383 = vmatpush1.msra.mxu0 0.0
      %384 = vmatprep.subr.mxu0 0.0
      %385 = vmatpush1.msra.mxu0 0.0
      %386 = vmatprep.subr.mxu0 0.0
      %387 = vmatpush1.msra.mxu0 0.0
      %388 = vmatprep.subr.mxu0 0.0
      %389 = vmatpush1.msra.mxu0 0.0
      %390 = vmatprep.subr.mxu0 0.0
      %391 = vmatpush1.msra.mxu0 0.0
      %392 = vmatprep.subr.mxu0 0.0
      %393 = vmatpush1.msra.mxu0 0.0
      %394 = vmatprep.subr.mxu0 0.0
      %395 = vmatpush1.msra.mxu0 0.0
      %396 = vmatprep.subr.mxu0 0.0
      %397 = vmatpush1.msra.mxu0 0.0
      %398 = vmatprep.subr.mxu0 0.0
      %399 = vmatpush1.msra.mxu0 0.0
      %400 = vmatprep.subr.mxu0 0.0
      %401 = vmatpush1.msra.mxu0 0.0
      %402 = vmatprep.subr.mxu0 0.0
      %403 = vmatpush1.msra.mxu0 0.0
      %404 = vmatprep.subr.mxu0 0.0
      %405 = vmatpush1.msra.mxu0 0.0
      %406 = vmatprep.subr.mxu0 0.0
      %407 = vmatpush1.msra.mxu0 0.0
      %408 = vmatprep.subr.mxu0 0.0
      %409 = vmatpush1.msra.mxu0 0.0
      %410 = vmatprep.mubr.f32.mxu0 0.0
      %v411 = vand.u32 %v244, 4294901760
      %412 = vmatmul.mubr.f32.gmra.mrb[0].mxu0 %v411
      %v413 = vpop.f32.mrb[0].mxu0
      %v414 = vadd.f32 %v322, %v413
      %v415 = vpop.f32.mrb[0].mxu0
      %v416 = vadd.f32 %v324, %v415
      %417 = vdwg.mxu0
      %v418 = vand.u32 %v239, 4294901760
      %v419 = vsub.f32 %v239, %v418
      %420 = vmatprep.subr.mxu0 %v419
      %v421 = vand.u32 %v238, 4294901760
      %v422 = vsub.f32 %v238, %v421
      %423 = vmatpush1.msra.mxu0 %v422
      %v424 = vand.u32 %v241, 4294901760
      %v425 = vsub.f32 %v241, %v424
      %426 = vmatprep.subr.mxu0 %v425
      %v427 = vand.u32 %v240, 4294901760
      %v428 = vsub.f32 %v240, %v427
      %429 = vmatpush1.msra.mxu0 %v428
      %430 = vmatprep.subr.mxu0 0.0
      %431 = vmatpush1.msra.mxu0 0.0
      %432 = vmatprep.subr.mxu0 0.0
      %433 = vmatpush1.msra.mxu0 0.0
      %434 = vmatprep.subr.mxu0 0.0
      %435 = vmatpush1.msra.mxu0 0.0
      %436 = vmatprep.subr.mxu0 0.0
      %437 = vmatpush1.msra.mxu0 0.0
      %438 = vmatprep.subr.mxu0 0.0
      %439 = vmatpush1.msra.mxu0 0.0
      %440 = vmatprep.subr.mxu0 0.0
      %441 = vmatpush1.msra.mxu0 0.0
      %442 = vmatprep.subr.mxu0 0.0
      %443 = vmatpush1.msra.mxu0 0.0
      %444 = vmatprep.subr.mxu0 0.0
      %445 = vmatpush1.msra.mxu0 0.0
      %446 = vmatprep.subr.mxu0 0.0
      %447 = vmatpush1.msra.mxu0 0.0
      %448 = vmatprep.subr.mxu0 0.0
      %449 = vmatpush1.msra.mxu0 0.0
      %450 = vmatprep.subr.mxu0 0.0
      %451 = vmatpush1.msra.mxu0 0.0
      %452 = vmatprep.subr.mxu0 0.0
      %453 = vmatpush1.msra.mxu0 0.0
      %454 = vmatprep.subr.mxu0 0.0
      %455 = vmatpush1.msra.mxu0 0.0
      %456 = vmatprep.subr.mxu0 0.0
      %457 = vmatpush1.msra.mxu0 0.0
      %458 = vmatprep.subr.mxu0 0.0
      %459 = vmatpush1.msra.mxu0 0.0
      %460 = vmatprep.subr.mxu0 0.0
      %461 = vmatpush1.msra.mxu0 0.0
      %462 = vmatprep.subr.mxu0 0.0
      %463 = vmatpush1.msra.mxu0 0.0
      %464 = vmatprep.subr.mxu0 0.0
      %465 = vmatpush1.msra.mxu0 0.0
      %466 = vmatprep.subr.mxu0 0.0
      %467 = vmatpush1.msra.mxu0 0.0
      %468 = vmatprep.subr.mxu0 0.0
      %469 = vmatpush1.msra.mxu0 0.0
      %470 = vmatprep.subr.mxu0 0.0
      %471 = vmatpush1.msra.mxu0 0.0
      %472 = vmatprep.subr.mxu0 0.0
      %473 = vmatpush1.msra.mxu0 0.0
      %474 = vmatprep.subr.mxu0 0.0
      %475 = vmatpush1.msra.mxu0 0.0
      %476 = vmatprep.subr.mxu0 0.0
      %477 = vmatpush1.msra.mxu0 0.0
      %478 = vmatprep.subr.mxu0 0.0
      %479 = vmatpush1.msra.mxu0 0.0
      %480 = vmatprep.subr.mxu0 0.0
      %481 = vmatpush1.msra.mxu0 0.0
      %482 = vmatprep.subr.mxu0 0.0
      %483 = vmatpush1.msra.mxu0 0.0
      %484 = vmatprep.subr.mxu0 0.0
      %485 = vmatpush1.msra.mxu0 0.0
      %486 = vmatprep.subr.mxu0 0.0
      %487 = vmatpush1.msra.mxu0 0.0
      %488 = vmatprep.subr.mxu0 0.0
      %489 = vmatpush1.msra.mxu0 0.0
      %490 = vmatprep.mubr.f32.mxu0 0.0
      %v491 = vand.u32 %v244, 4294901760
      %v492 = vsub.f32 %v244, %v491
      %493 = vmatmul.mubr.f32.gmra.mrb[0].mxu0 %v492
      %v494 = vpop.f32.mrb[0].mxu0
      %v495 = vadd.f32 %v414, %v494
      %v496 = vpop.f32.mrb[0].mxu0
      %v497 = vadd.f32 %v416, %v496
      %498 = vdwg.mxu0
      %v499 = vand.u32 %v239, 4294901760
      %500 = vmatprep.subr.mxu0 %v499
      %v501 = vand.u32 %v238, 4294901760
      %502 = vmatpush1.msra.mxu0 %v501
      %v503 = vand.u32 %v241, 4294901760
      %504 = vmatprep.subr.mxu0 %v503
      %v505 = vand.u32 %v240, 4294901760
      %506 = vmatpush1.msra.mxu0 %v505
      %507 = vmatprep.subr.mxu0 0.0
      %508 = vmatpush1.msra.mxu0 0.0
      %509 = vmatprep.subr.mxu0 0.0
      %510 = vmatpush1.msra.mxu0 0.0
      %511 = vmatprep.subr.mxu0 0.0
      %512 = vmatpush1.msra.mxu0 0.0
      %513 = vmatprep.subr.mxu0 0.0
      %514 = vmatpush1.msra.mxu0 0.0
      %515 = vmatprep.subr.mxu0 0.0
      %516 = vmatpush1.msra.mxu0 0.0
      %517 = vmatprep.subr.mxu0 0.0
      %518 = vmatpush1.msra.mxu0 0.0
      %519 = vmatprep.subr.mxu0 0.0
      %520 = vmatpush1.msra.mxu0 0.0
      %521 = vmatprep.subr.mxu0 0.0
      %522 = vmatpush1.msra.mxu0 0.0
      %523 = vmatprep.subr.mxu0 0.0
      %524 = vmatpush1.msra.mxu0 0.0
      %525 = vmatprep.subr.mxu0 0.0
      %526 = vmatpush1.msra.mxu0 0.0
      %527 = vmatprep.subr.mxu0 0.0
      %528 = vmatpush1.msra.mxu0 0.0
      %529 = vmatprep.subr.mxu0 0.0
      %530 = vmatpush1.msra.mxu0 0.0
      %531 = vmatprep.subr.mxu0 0.0
      %532 = vmatpush1.msra.mxu0 0.0
      %533 = vmatprep.subr.mxu0 0.0
      %534 = vmatpush1.msra.mxu0 0.0
      %535 = vmatprep.subr.mxu0 0.0
      %536 = vmatpush1.msra.mxu0 0.0
      %537 = vmatprep.subr.mxu0 0.0
      %538 = vmatpush1.msra.mxu0 0.0
      %539 = vmatprep.subr.mxu0 0.0
      %540 = vmatpush1.msra.mxu0 0.0
      %541 = vmatprep.subr.mxu0 0.0
      %542 = vmatpush1.msra.mxu0 0.0
      %543 = vmatprep.subr.mxu0 0.0
      %544 = vmatpush1.msra.mxu0 0.0
      %545 = vmatprep.subr.mxu0 0.0
      %546 = vmatpush1.msra.mxu0 0.0
      %547 = vmatprep.subr.mxu0 0.0
      %548 = vmatpush1.msra.mxu0 0.0
      %549 = vmatprep.subr.mxu0 0.0
      %550 = vmatpush1.msra.mxu0 0.0
      %551 = vmatprep.subr.mxu0 0.0
      %552 = vmatpush1.msra.mxu0 0.0
      %553 = vmatprep.subr.mxu0 0.0
      %554 = vmatpush1.msra.mxu0 0.0
      %555 = vmatprep.subr.mxu0 0.0
      %556 = vmatpush1.msra.mxu0 0.0
      %557 = vmatprep.subr.mxu0 0.0
      %558 = vmatpush1.msra.mxu0 0.0
      %559 = vmatprep.subr.mxu0 0.0
      %560 = vmatpush1.msra.mxu0 0.0
      %561 = vmatprep.subr.mxu0 0.0
      %562 = vmatpush1.msra.mxu0 0.0
      %563 = vmatprep.subr.mxu0 0.0
      %564 = vmatpush1.msra.mxu0 0.0
      %565 = vmatprep.subr.mxu0 0.0
      %566 = vmatpush1.msra.mxu0 0.0
      %567 = vmatprep.mubr.f32.mxu0 0.0
      %v568 = vand.u32 %v244, 4294901760
      %v569 = vsub.f32 %v244, %v568
      %v570 = vand.u32 %v569, 4294901760
      %571 = vmatmul.mubr.f32.gmra.mrb[0].mxu0 %v570
      %v572 = vpop.f32.mrb[0].mxu0
      %v573 = vadd.f32 %v495, %v572
      %v574 = vpop.f32.mrb[0].mxu0
      %v575 = vadd.f32 %v497, %v574
      %576 = vdwg.mxu0
      %v577 = vand.u32 %v239, 4294901760
      %v578 = vsub.f32 %v239, %v577
      %v579 = vand.u32 %v578, 4294901760
      %580 = vmatprep.subr.mxu0 %v579
      %v581 = vand.u32 %v238, 4294901760
      %v582 = vsub.f32 %v238, %v581
      %v583 = vand.u32 %v582, 4294901760
      %584 = vmatpush1.msra.mxu0 %v583
      %v585 = vand.u32 %v241, 4294901760
      %v586 = vsub.f32 %v241, %v585
      %v587 = vand.u32 %v586, 4294901760
      %588 = vmatprep.subr.mxu0 %v587
      %v589 = vand.u32 %v240, 4294901760
      %v590 = vsub.f32 %v240, %v589
      %v591 = vand.u32 %v590, 4294901760
      %592 = vmatpush1.msra.mxu0 %v591
      %593 = vmatprep.subr.mxu0 0.0
      %594 = vmatpush1.msra.mxu0 0.0
      %595 = vmatprep.subr.mxu0 0.0
      %596 = vmatpush1.msra.mxu0 0.0
      %597 = vmatprep.subr.mxu0 0.0
      %598 = vmatpush1.msra.mxu0 0.0
      %599 = vmatprep.subr.mxu0 0.0
      %600 = vmatpush1.msra.mxu0 0.0
      %601 = vmatprep.subr.mxu0 0.0
      %602 = vmatpush1.msra.mxu0 0.0
      %603 = vmatprep.subr.mxu0 0.0
      %604 = vmatpush1.msra.mxu0 0.0
      %605 = vmatprep.subr.mxu0 0.0
      %606 = vmatpush1.msra.mxu0 0.0
      %607 = vmatprep.subr.mxu0 0.0
      %608 = vmatpush1.msra.mxu0 0.0
      %609 = vmatprep.subr.mxu0 0.0
      %610 = vmatpush1.msra.mxu0 0.0
      %611 = vmatprep.subr.mxu0 0.0
      %612 = vmatpush1.msra.mxu0 0.0
      %613 = vmatprep.subr.mxu0 0.0
      %614 = vmatpush1.msra.mxu0 0.0
      %615 = vmatprep.subr.mxu0 0.0
      %616 = vmatpush1.msra.mxu0 0.0
      %617 = vmatprep.subr.mxu0 0.0
      %618 = vmatpush1.msra.mxu0 0.0
      %619 = vmatprep.subr.mxu0 0.0
      %620 = vmatpush1.msra.mxu0 0.0
      %621 = vmatprep.subr.mxu0 0.0
      %622 = vmatpush1.msra.mxu0 0.0
      %623 = vmatprep.subr.mxu0 0.0
      %624 = vmatpush1.msra.mxu0 0.0
      %625 = vmatprep.subr.mxu0 0.0
      %626 = vmatpush1.msra.mxu0 0.0
      %627 = vmatprep.subr.mxu0 0.0
      %628 = vmatpush1.msra.mxu0 0.0
      %629 = vmatprep.subr.mxu0 0.0
      %630 = vmatpush1.msra.mxu0 0.0
      %631 = vmatprep.subr.mxu0 0.0
      %632 = vmatpush1.msra.mxu0 0.0
      %633 = vmatprep.subr.mxu0 0.0
      %634 = vmatpush1.msra.mxu0 0.0
      %635 = vmatprep.subr.mxu0 0.0
      %636 = vmatpush1.msra.mxu0 0.0
      %637 = vmatprep.subr.mxu0 0.0
      %638 = vmatpush1.msra.mxu0 0.0
      %639 = vmatprep.subr.mxu0 0.0
      %640 = vmatpush1.msra.mxu0 0.0
      %641 = vmatprep.subr.mxu0 0.0
      %642 = vmatpush1.msra.mxu0 0.0
      %643 = vmatprep.subr.mxu0 0.0
      %644 = vmatpush1.msra.mxu0 0.0
      %645 = vmatprep.subr.mxu0 0.0
      %646 = vmatpush1.msra.mxu0 0.0
      %647 = vmatprep.subr.mxu0 0.0
      %648 = vmatpush1.msra.mxu0 0.0
      %649 = vmatprep.subr.mxu0 0.0
      %650 = vmatpush1.msra.mxu0 0.0
      %651 = vmatprep.subr.mxu0 0.0
      %652 = vmatpush1.msra.mxu0 0.0
      %653 = vmatprep.mubr.f32.mxu0 0.0
      %v654 = vand.u32 %v244, 4294901760
      %655 = vmatmul.mubr.f32.gmra.mrb[0].mxu0 %v654
      %v656 = vpop.f32.mrb[0].mxu0
      %v657 = vadd.f32 %v573, %v656
      %v658 = vpop.f32.mrb[0].mxu0
      %v659 = vadd.f32 %v575, %v658
      %660 = vdwg.mxu0
      %v661 = vand.u32 %v239, 4294901760
      %662 = vmatprep.subr.mxu0 %v661
      %v663 = vand.u32 %v238, 4294901760
      %664 = vmatpush1.msra.mxu0 %v663
      %v665 = vand.u32 %v241, 4294901760
      %666 = vmatprep.subr.mxu0 %v665
      %v667 = vand.u32 %v240, 4294901760
      %668 = vmatpush1.msra.mxu0 %v667
      %669 = vmatprep.subr.mxu0 0.0
      %670 = vmatpush1.msra.mxu0 0.0
      %671 = vmatprep.subr.mxu0 0.0
      %672 = vmatpush1.msra.mxu0 0.0
      %673 = vmatprep.subr.mxu0 0.0
      %674 = vmatpush1.msra.mxu0 0.0
      %675 = vmatprep.subr.mxu0 0.0
      %676 = vmatpush1.msra.mxu0 0.0
      %677 = vmatprep.subr.mxu0 0.0
      %678 = vmatpush1.msra.mxu0 0.0
      %679 = vmatprep.subr.mxu0 0.0
      %680 = vmatpush1.msra.mxu0 0.0
      %681 = vmatprep.subr.mxu0 0.0
      %682 = vmatpush1.msra.mxu0 0.0
      %683 = vmatprep.subr.mxu0 0.0
      %684 = vmatpush1.msra.mxu0 0.0
      %685 = vmatprep.subr.mxu0 0.0
      %686 = vmatpush1.msra.mxu0 0.0
      %687 = vmatprep.subr.mxu0 0.0
      %688 = vmatpush1.msra.mxu0 0.0
      %689 = vmatprep.subr.mxu0 0.0
      %690 = vmatpush1.msra.mxu0 0.0
      %691 = vmatprep.subr.mxu0 0.0
      %692 = vmatpush1.msra.mxu0 0.0
      %693 = vmatprep.subr.mxu0 0.0
      %694 = vmatpush1.msra.mxu0 0.0
      %695 = vmatprep.subr.mxu0 0.0
      %696 = vmatpush1.msra.mxu0 0.0
      %697 = vmatprep.subr.mxu0 0.0
      %698 = vmatpush1.msra.mxu0 0.0
      %699 = vmatprep.subr.mxu0 0.0
      %700 = vmatpush1.msra.mxu0 0.0
      %701 = vmatprep.subr.mxu0 0.0
      %702 = vmatpush1.msra.mxu0 0.0
      %703 = vmatprep.subr.mxu0 0.0
      %704 = vmatpush1.msra.mxu0 0.0
      %705 = vmatprep.subr.mxu0 0.0
      %706 = vmatpush1.msra.mxu0 0.0
      %707 = vmatprep.subr.mxu0 0.0
      %708 = vmatpush1.msra.mxu0 0.0
      %709 = vmatprep.subr.mxu0 0.0
      %710 = vmatpush1.msra.mxu0 0.0
      %711 = vmatprep.subr.mxu0 0.0
      %712 = vmatpush1.msra.mxu0 0.0
      %713 = vmatprep.subr.mxu0 0.0
      %714 = vmatpush1.msra.mxu0 0.0
      %715 = vmatprep.subr.mxu0 0.0
      %716 = vmatpush1.msra.mxu0 0.0
      %717 = vmatprep.subr.mxu0 0.0
      %718 = vmatpush1.msra.mxu0 0.0
      %719 = vmatprep.subr.mxu0 0.0
      %720 = vmatpush1.msra.mxu0 0.0
      %721 = vmatprep.subr.mxu0 0.0
      %722 = vmatpush1.msra.mxu0 0.0
      %723 = vmatprep.subr.mxu0 0.0
      %724 = vmatpush1.msra.mxu0 0.0
      %725 = vmatprep.subr.mxu0 0.0
      %726 = vmatpush1.msra.mxu0 0.0
      %727 = vmatprep.subr.mxu0 0.0
      %728 = vmatpush1.msra.mxu0 0.0
      %729 = vmatprep.mubr.f32.mxu0 0.0
      %v730 = vand.u32 %v244, 4294901760
      %731 = vmatmul.mubr.f32.gmra.mrb[0].mxu0 %v730
      %v732 = vpop.f32.mrb[0].mxu0
      %v733 = vadd.f32 %v657, %v732
      %v734 = vpop.f32.mrb[0].mxu0
      %v735 = vadd.f32 %v659, %v734
      %736 = vdwg.mxu0
      %v737 = vld [vmem:[%s2] sm:$0xff]
      %739 = vset.pattern.permute.xlu0 0
      %740 = vperm.xlu0 %739, %v737
      %v741 = vpop.permute.xlu0 %740
      %v743 = vmul.f32 %v733, %v741
      %v744 = vmul.f32 %v735, %v741
      %v745 = vld [vmem:[%s3] sm:$0xff]
      %747 = vset.pattern.permute.xlu0 0
      %748 = vperm.xlu0 %747, %v745
      %v749 = vpop.permute.xlu0 %748
      %v751 = vadd.f32 %v743, %v749
      %v752 = vadd.f32 %v744, %v749
      %753 = vst [vmem:[%s235] sm:$0xff] %v751
      %754 = vst [vmem:[%s235 + $0x8] sm:$0xff] %v752
      %s755 = smul.u32 2, %s20
      %p756 = scmp.lt.s32.totalorder %s19, 1
      %s757 = scalar_select %p756, %s19, 1
      %p758 = scmp.lt.s32.totalorder %s755, 1
      %s759 = scalar_select %p758, %s755, 1
      %s760 = smul.addr %s757, 2
      %s761 = sadd.s32 %s759, %s760
      %s762 = smul.addr %s761, 8
      %s763 = scalar_lea.vmem %s4, %s762
      // Predicated region
      $region37: #{a_call__.5} parent=35 // pred_check
        %p764 = pneg %p138
      $region38: #{a_call__.5} parent=35 // pred_check_branch
        %766 = sbr.rel (%p764) target = $region40
      $region39: #{a_call__.5} parent=35 // pred_region
        %s767 = smul.u32 2, %s20
      $region40: #{a_call__.5} parent=35 // pred_fallthru
        _
    $region36: #{a_call__.5} parent=5 // pred_fallthru
      _
    %p768 = scmp.le.s32.totalorder 2, %s10
    // Predicated region
    $region41: #{a_call__.5} parent=5 // pred_check
      %p769 = pneg %p768
    $region42: #{a_call__.5} parent=5 // pred_check_branch
      %771 = sbr.rel (%p769) target = $region44
    $region43: #{a_call__.5} parent=5 // pred_region
      %s772 = ssub.s32 %s10, 2
      // Predicated region
      $region45: #{a_call__.5} parent=43 // pred_check
        %p773 = pneg %p144
      $region46: #{a_call__.5} parent=43 // pred_check_branch
        %775 = sbr.rel (%p773) target = $region48
      $region47: #{a_call__.5} parent=43 // pred_region
        %s776 = smul.u32 2, %s22
        %p777 = scmp.lt.s32.totalorder %s21, 1
        %s778 = scalar_select %p777, %s21, 1
        %p779 = scmp.lt.s32.totalorder %s776, 1
        %s780 = scalar_select %p779, %s776, 1
        %s781 = smul.addr %s778, 2
        %s782 = sadd.s32 %s780, %s781
        %s783 = smul.addr %s782, 8
        %s784 = scalar_lea.vmem %s4, %s783
      $region48: #{a_call__.5} parent=43 // pred_fallthru
        _
    $region44: #{a_call__.5} parent=5 // pred_fallthru
      _
  $region6: #{a_call__.5} parent=0 // loop_footer
    %s14 = sadd.s32 1, %s10
  $region7: #{a_call__.5} parent=0 // loop_footer_branch
    %9 = sbr.rel target = $region3
  $region8: #{a_call__.5} parent=0 // loop_exit
    _

// kernel: a_call__.4
$region0: #{a_call__.4}
  #allocation0 [shape = 'u32[]', space=smem, size = 0x4, offset = 0x4, fixed_abs, tag = 'smem constant byte address 0x4 - core index']
  #allocation1 [shape = 'u32[144,128]{1,0:T(1,128)}', space=vmem, size = 0x12000, scoped, tag = 'internal scratch']
  %s0 = inlined_call_operand.vmem [shape: f32[2,16,18,18], index: 0, kind: input, shape index: {}]
  %s1 = inlined_call_operand.vmem [shape: f32[9,16,1,1], index: 1, kind: input, shape index: {}]
  %s2 = inlined_call_operand.vmem [shape: f32[2,16,16,16], index: 2, kind: output, shape index: {}]
  %s3 = sld [smem:[#allocation0]]
  $region41: #{a_call__.4} parent=0
    _
  %s5 = ssub.s32 1, %s3
  %s6 = scalar_select 0, %s5, %s3
  loop: start=0, step=1, limit=4
  $region2: #{a_call__.4} parent=0 // loop_pre_header
    _
  $region3: #{a_call__.4} parent=0 // loop_header
    %s8 = sphi 0, %s12
    %p9 = scmp.ge.s32.totalorder %s8, 4
    %s18 = sphi 0, %s20
    %s21 = sphi 0, %s18
    %s22 = sphi 0, %s21
    %s38 = sphi 0, %s22
    %s42 = sphi 0, %s42
    %s44 = sphi 0, %s42
    %s45 = sphi 0, %s44
    %s59 = sphi 0, %s45
    %s65 = sphi 0, %s67
    %s68 = sphi 0, %s65
    %s69 = sphi 0, %s68
    %s85 = sphi 0, %s69
  $region4: #{a_call__.4} parent=0 // loop_header_branch
    %11 = sbr.rel (%p9) target = $region8
  $region5: #{a_call__.4} parent=0 // loop_body
    %s13 = ssub.s32 %s8, 1
    %s14 = ssub.s32 %s8, 2
    %s15 = sadd.s32 %s8, 1
    %s16 = ssub.s32 %s8, %s15
    %p17 = scmp.eq.s32.totalorder %s16, 0
    %s19 = sadd.s32 %s18, 1
    %s20 = scalar_select %p17, %s18, %s19
    %p23 = pneg %p17
    %p24 = scmp.eq.s32.totalorder %s8, 1
    %p25 = por %p23, %p24
    %p26 = scmp.ne.s32.totalorder %s18, %s21
    %p27 = scmp.eq.s32.totalorder %s8, 0
    %p28 = por %p26, %p27
    %p29 = scmp.ne.s32.totalorder %s18, %s21
    %p30 = scmp.eq.s32.totalorder %s13, 1
    %p31 = por %p29, %p30
    %p32 = scmp.ne.s32.totalorder %s21, %s22
    %p33 = scmp.eq.s32.totalorder %s13, 0
    %p34 = por %p32, %p33
    %p35 = scmp.ne.s32.totalorder %s21, %s22
    %p36 = scmp.eq.s32.totalorder %s14, 1
    %p37 = por %p35, %p36
    %p39 = scmp.ne.s32.totalorder %s22, %s38
    %p40 = scmp.eq.s32.totalorder %s14, 0
    %p41 = por %p39, %p40
    %s43 = sadd.s32 %s42, 1
    %p46 = scmp.eq.s32.totalorder %s8, 1
    %p47 = scmp.ne.s32.totalorder %s42, %s44
    %p48 = scmp.eq.s32.totalorder %s8, 0
    %p49 = por %p47, %p48
    %p50 = scmp.ne.s32.totalorder %s42, %s44
    %p51 = scmp.eq.s32.totalorder %s13, 1
    %p52 = por %p50, %p51
    %p53 = scmp.ne.s32.totalorder %s44, %s45
    %p54 = scmp.eq.s32.totalorder %s13, 0
    %p55 = por %p53, %p54
    %p56 = scmp.ne.s32.totalorder %s44, %s45
    %p57 = scmp.eq.s32.totalorder %s14, 1
    %p58 = por %p56, %p57
    %p60 = scmp.ne.s32.totalorder %s45, %s59
    %p61 = scmp.eq.s32.totalorder %s14, 0
    %p62 = por %p60, %p61
    %s63 = ssub.s32 %s8, %s15
    %p64 = scmp.eq.s32.totalorder %s63, 0
    %s66 = sadd.s32 %s65, 1
    %s67 = scalar_select %p64, %s65, %s66
    %p70 = pneg %p64
    %p71 = scmp.eq.s32.totalorder %s8, 1
    %p72 = por %p70, %p71
    %p73 = scmp.ne.s32.totalorder %s65, %s68
    %p74 = scmp.eq.s32.totalorder %s8, 0
    %p75 = por %p73, %p74
    %p76 = scmp.ne.s32.totalorder %s65, %s68
    %p77 = scmp.eq.s32.totalorder %s13, 1
    %p78 = por %p76, %p77
    %p79 = scmp.ne.s32.totalorder %s68, %s69
    %p80 = scmp.eq.s32.totalorder %s13, 0
    %p81 = por %p79, %p80
    %p82 = scmp.ne.s32.totalorder %s68, %s69
    %p83 = scmp.eq.s32.totalorder %s14, 1
    %p84 = por %p82, %p83
    %p86 = scmp.ne.s32.totalorder %s69, %s85
    %p87 = scmp.eq.s32.totalorder %s14, 0
    %p88 = por %p86, %p87
    %p89 = scmp.le.s32.totalorder 1, %s8
    %p90 = scmp.lt.s32.totalorder %s8, 3
    %p91 = pnand %p89, %p90
    %p92 = pneg %p91
    // Predicated region
    $region9: #{a_call__.4} parent=5 // pred_check
      _
    $region10: #{a_call__.4} parent=5 // pred_check_branch
      %94 = sbr.rel (%p91) target = $region12
    $region11: #{a_call__.4} parent=5 // pred_region
      %s95 = ssub.s32 %s8, 1
      // Predicated region
      $region13: #{a_call__.4} parent=11 // pred_check
        %p96 = pneg %p55
      $region14: #{a_call__.4} parent=11 // pred_check_branch
        %98 = sbr.rel (%p96) target = $region16
      $region15: #{a_call__.4} parent=11 // pred_region
        _
      $region16: #{a_call__.4} parent=11 // pred_fallthru
        _
    $region12: #{a_call__.4} parent=5 // pred_fallthru
      _
    %p99 = scmp.lt.s32.totalorder %s8, 2
    // Predicated region
    $region17: #{a_call__.4} parent=5 // pred_check
      %p100 = pneg %p99
    $region18: #{a_call__.4} parent=5 // pred_check_branch
      %102 = sbr.rel (%p100) target = $region20
    $region19: #{a_call__.4} parent=5 // pred_region
      // Predicated region
      $region21: #{a_call__.4} parent=19 // pred_check
        %p103 = pneg %p28
      $region22: #{a_call__.4} parent=19 // pred_check_branch
        %105 = sbr.rel (%p103) target = $region24
      $region23: #{a_call__.4} parent=19 // pred_region
        %p106 = scmp.lt.s32.totalorder %s8, 1
        %s107 = scalar_select %p106, %s8, 1
        %s108 = smul.addr %s107, 48
        %s109 = smul.addr %s108, 8
        %s110 = scalar_lea.vmem %s0, %s109
      $region24: #{a_call__.4} parent=19 // pred_fallthru
        _
    $region20: #{a_call__.4} parent=5 // pred_fallthru
      _
    %p111 = scmp.le.s32.totalorder 1, %s8
    %p112 = scmp.lt.s32.totalorder %s8, 3
    %p113 = pnand %p111, %p112
    %p114 = pneg %p113
    // Predicated region
    $region25: #{a_call__.4} parent=5 // pred_check
      _
    $region26: #{a_call__.4} parent=5 // pred_check_branch
      %116 = sbr.rel (%p113) target = $region28
    $region27: #{a_call__.4} parent=5 // pred_region
      %s117 = ssub.s32 %s8, 1
      %p118 = scmp.lt.s32.totalorder %s13, 1
      %s119 = scalar_select %p118, %s13, 1
      %s120 = smul.addr %s119, 48
      %s121 = smul.addr %s120, 8
      %s122 = scalar_lea.vmem %s0, %s121
      %p123 = pneg %p34
      %p124 = pneg %p31
      %p125 = pneg %p55
      %p126 = pneg %p52
      %p127 = pneg %p81
      %p128 = pneg %p78
      %p129 = scmp.lt.s32.totalorder %s13, 1
      %s130 = scalar_select %p129, %s13, 1
      %s131 = smul.addr %s130, 32
      %s132 = smul.addr %s131, 8
      %s133 = scalar_lea.vmem %s2, %s132
      %p134 = scmp.lt.s32.totalorder %s13, 1
      %s135 = scalar_select %p134, %s13, 1
      %s136 = smul.addr %s135, 48
      %s137 = smul.addr %s136, 8
      %s138 = scalar_lea.vmem %s0, %s137
      %p139 = scmp.lt.s32.totalorder %s13, 1
      %s140 = scalar_select %p139, %s13, 1
      %s141 = smul.addr %s140, 32
      %s142 = smul.addr %s141, 8
      %s143 = scalar_lea.vmem %s2, %s142
      %v144 = vld [vmem:[%s138] sm:$0xff]
      %v145 = vld [vmem:[%s138 + $0x8] sm:$0xff]
      %v146 = vld [vmem:[%s138 + $0x18] sm:$0xff]
      %v147 = vld [vmem:[%s138 + $0x20] sm:$0xff]
      %v148 = vld [vmem:[%s138 + $0x30] sm:$0xff]
      %v149 = vld [vmem:[%s138 + $0x38] sm:$0xff]
      %v150 = vld [vmem:[%s138 + $0x48] sm:$0xff]
      %v151 = vld [vmem:[%s138 + $0x50] sm:$0xff]
      %v152 = vld [vmem:[%s138 + $0x60] sm:$0xff]
      %v153 = vld [vmem:[%s138 + $0x68] sm:$0xff]
      %v154 = vld [vmem:[%s138 + $0x78] sm:$0xff]
      %v155 = vld [vmem:[%s138 + $0x80] sm:$0xff]
      %v156 = vld [vmem:[%s138 + $0x90] sm:$0xff]
      %v157 = vld [vmem:[%s138 + $0x98] sm:$0xff]
      %v158 = vld [vmem:[%s138 + $0xa8] sm:$0xff]
      %v159 = vld [vmem:[%s138 + $0xb0] sm:$0xff]
      %v160 = vld [vmem:[%s138 + $0xc0] sm:$0xff]
      %v161 = vld [vmem:[%s138 + $0xc8] sm:$0xff]
      %v162 = vld [vmem:[%s138 + $0xd8] sm:$0xff]
      %v163 = vld [vmem:[%s138 + $0xe0] sm:$0xff]
      %v164 = vld [vmem:[%s138 + $0xf0] sm:$0xff]
      %v165 = vld [vmem:[%s138 + $0xf8] sm:$0xff]
      %v166 = vld [vmem:[%s138 + $0x108] sm:$0xff]
      %v167 = vld [vmem:[%s138 + $0x110] sm:$0xff]
      %v168 = vld [vmem:[%s138 + $0x120] sm:$0xff]
      %v169 = vld [vmem:[%s138 + $0x128] sm:$0xff]
      %v170 = vld [vmem:[%s138 + $0x138] sm:$0xff]
      %v171 = vld [vmem:[%s138 + $0x140] sm:$0xff]
      %v172 = vld [vmem:[%s138 + $0x150] sm:$0xff]
      %v173 = vld [vmem:[%s138 + $0x158] sm:$0xff]
      %v174 = vld [vmem:[%s138 + $0x168] sm:$0xff]
      %v175 = vld [vmem:[%s138 + $0x170] sm:$0xff]
      %v176 = vld [vmem:[%s1] sm:$0x1]
      %v177 = vld [vmem:[%s1 + $0x1] sm:$0x1]
      %v178 = vld [vmem:[%s1 + $0x2] sm:$0x1]
      %v179 = vld [vmem:[%s1 + $0x3] sm:$0x1]
      %v180 = vld [vmem:[%s1 + $0x4] sm:$0x1]
      %v181 = vld [vmem:[%s1 + $0x5] sm:$0x1]
      %v182 = vld [vmem:[%s1 + $0x6] sm:$0x1]
      %v183 = vld [vmem:[%s1 + $0x7] sm:$0x1]
      %v184 = vld [vmem:[%s1 + $0x8] sm:$0x1]
      %v185 = vld [vmem:[%s1 + $0x9] sm:$0x1]
      %v186 = vld [vmem:[%s1 + $0xa] sm:$0x1]
      %v187 = vld [vmem:[%s1 + $0xb] sm:$0x1]
      %v188 = vld [vmem:[%s1 + $0xc] sm:$0x1]
      %v189 = vld [vmem:[%s1 + $0xd] sm:$0x1]
      %v190 = vld [vmem:[%s1 + $0xe] sm:$0x1]
      %v191 = vld [vmem:[%s1 + $0xf] sm:$0x1]
      %v208 = vlaneseq
      %v209 = vshrl.u32 %v208, 7
      %v210 = vsub.s32 0, %v209
      %v211 = vrot.slane %v176, %v210
      %v212 = vlaneseq
      %v213 = vshrl.u32 %v212, 7
      %v214 = vsub.s32 0, %v213
      %v215 = vrot.slane %v177, %v214
      %v216 = vlaneseq
      %v217 = vshrl.u32 %v216, 7
      %v218 = vsub.s32 0, %v217
      %v219 = vrot.slane %v178, %v218
      %v220 = vlaneseq
      %v221 = vshrl.u32 %v220, 7
      %v222 = vsub.s32 0, %v221
      %v223 = vrot.slane %v179, %v222
      %v224 = vlaneseq
      %v225 = vshrl.u32 %v224, 7
      %v226 = vsub.s32 0, %v225
      %v227 = vrot.slane %v180, %v226
      %v228 = vlaneseq
      %v229 = vshrl.u32 %v228, 7
      %v230 = vsub.s32 0, %v229
      %v231 = vrot.slane %v181, %v230
      %v232 = vlaneseq
      %v233 = vshrl.u32 %v232, 7
      %v234 = vsub.s32 0, %v233
      %v235 = vrot.slane %v182, %v234
      %v236 = vlaneseq
      %v237 = vshrl.u32 %v236, 7
      %v238 = vsub.s32 0, %v237
      %v239 = vrot.slane %v183, %v238
      %v240 = vlaneseq
      %v241 = vshrl.u32 %v240, 7
      %v242 = vsub.s32 0, %v241
      %v243 = vrot.slane %v184, %v242
      %v244 = vlaneseq
      %v245 = vshrl.u32 %v244, 7
      %v246 = vsub.s32 0, %v245
      %v247 = vrot.slane %v185, %v246
      %v248 = vlaneseq
      %v249 = vshrl.u32 %v248, 7
      %v250 = vsub.s32 0, %v249
      %v251 = vrot.slane %v186, %v250
      %v252 = vlaneseq
      %v253 = vshrl.u32 %v252, 7
      %v254 = vsub.s32 0, %v253
      %v255 = vrot.slane %v187, %v254
      %v256 = vlaneseq
      %v257 = vshrl.u32 %v256, 7
      %v258 = vsub.s32 0, %v257
      %v259 = vrot.slane %v188, %v258
      %v260 = vlaneseq
      %v261 = vshrl.u32 %v260, 7
      %v262 = vsub.s32 0, %v261
      %v263 = vrot.slane %v189, %v262
      %v264 = vlaneseq
      %v265 = vshrl.u32 %v264, 7
      %v266 = vsub.s32 0, %v265
      %v267 = vrot.slane %v190, %v266
      %v268 = vlaneseq
      %v269 = vshrl.u32 %v268, 7
      %v270 = vsub.s32 0, %v269
      %v271 = vrot.slane %v191, %v270
      %272 = vset.pattern.permute.xlu0 0
      %273 = vperm.xlu0 %272, %v211
      %v274 = vpop.permute.xlu0 %273
      %276 = vset.pattern.permute.xlu0 0
      %277 = vperm.xlu0 %276, %v215
      %v278 = vpop.permute.xlu0 %277
      %280 = vset.pattern.permute.xlu0 0
      %281 = vperm.xlu0 %280, %v219
      %v282 = vpop.permute.xlu0 %281
      %284 = vset.pattern.permute.xlu0 0
      %285 = vperm.xlu0 %284, %v223
      %v286 = vpop.permute.xlu0 %285
      %288 = vset.pattern.permute.xlu0 0
      %289 = vperm.xlu0 %288, %v227
      %v290 = vpop.permute.xlu0 %289
      %292 = vset.pattern.permute.xlu0 0
      %293 = vperm.xlu0 %292, %v231
      %v294 = vpop.permute.xlu0 %293
      %296 = vset.pattern.permute.xlu0 0
      %297 = vperm.xlu0 %296, %v235
      %v298 = vpop.permute.xlu0 %297
      %300 = vset.pattern.permute.xlu0 0
      %301 = vperm.xlu0 %300, %v239
      %v302 = vpop.permute.xlu0 %301
      %304 = vset.pattern.permute.xlu0 0
      %305 = vperm.xlu0 %304, %v243
      %v306 = vpop.permute.xlu0 %305
      %308 = vset.pattern.permute.xlu0 0
      %309 = vperm.xlu0 %308, %v247
      %v310 = vpop.permute.xlu0 %309
      %312 = vset.pattern.permute.xlu0 0
      %313 = vperm.xlu0 %312, %v251
      %v314 = vpop.permute.xlu0 %313
      %316 = vset.pattern.permute.xlu0 0
      %317 = vperm.xlu0 %316, %v255
      %v318 = vpop.permute.xlu0 %317
      %320 = vset.pattern.permute.xlu0 0
      %321 = vperm.xlu0 %320, %v259
      %v322 = vpop.permute.xlu0 %321
      %324 = vset.pattern.permute.xlu0 0
      %325 = vperm.xlu0 %324, %v263
      %v326 = vpop.permute.xlu0 %325
      %328 = vset.pattern.permute.xlu0 0
      %329 = vperm.xlu0 %328, %v267
      %v330 = vpop.permute.xlu0 %329
      %332 = vset.pattern.permute.xlu0 0
      %333 = vperm.xlu0 %332, %v271
      %v334 = vpop.permute.xlu0 %333
      %v336 = vmul.f32 %v144, %v274
      %v337 = vmul.f32 %v145, %v274
      %v338 = vmul.f32 %v146, %v278
      %v339 = vmul.f32 %v147, %v278
      %v340 = vmul.f32 %v148, %v282
      %v341 = vmul.f32 %v149, %v282
      %v342 = vmul.f32 %v150, %v286
      %v343 = vmul.f32 %v151, %v286
      %v344 = vmul.f32 %v152, %v290
      %v345 = vmul.f32 %v153, %v290
      %v346 = vmul.f32 %v154, %v294
      %v347 = vmul.f32 %v155, %v294
      %v348 = vmul.f32 %v156, %v298
      %v349 = vmul.f32 %v157, %v298
      %v350 = vmul.f32 %v158, %v302
      %v351 = vmul.f32 %v159, %v302
      %v352 = vmul.f32 %v160, %v306
      %v353 = vmul.f32 %v161, %v306
      %v354 = vmul.f32 %v162, %v310
      %v355 = vmul.f32 %v163, %v310
      %v356 = vmul.f32 %v164, %v314
      %v357 = vmul.f32 %v165, %v314
      %v358 = vmul.f32 %v166, %v318
      %v359 = vmul.f32 %v167, %v318
      %v360 = vmul.f32 %v168, %v322
      %v361 = vmul.f32 %v169, %v322
      %v362 = vmul.f32 %v170, %v326
      %v363 = vmul.f32 %v171, %v326
      %v364 = vmul.f32 %v172, %v330
      %v365 = vmul.f32 %v173, %v330
      %v366 = vmul.f32 %v174, %v334
      %v367 = vmul.f32 %v175, %v334
      %v368 = vadd.f32 %v336, 0.0
      %v369 = vadd.f32 %v337, 0.0
      %v370 = vadd.f32 %v338, 0.0
      %v371 = vadd.f32 %v339, 0.0
      %v372 = vadd.f32 %v340, 0.0
      %v373 = vadd.f32 %v341, 0.0
      %v374 = vadd.f32 %v342, 0.0
      %v375 = vadd.f32 %v343, 0.0
      %v376 = vadd.f32 %v344, 0.0
      %v377 = vadd.f32 %v345, 0.0
      %v378 = vadd.f32 %v346, 0.0
      %v379 = vadd.f32 %v347, 0.0
      %v380 = vadd.f32 %v348, 0.0
      %v381 = vadd.f32 %v349, 0.0
      %v382 = vadd.f32 %v350, 0.0
      %v383 = vadd.f32 %v351, 0.0
      %v384 = vadd.f32 %v352, 0.0
      %v385 = vadd.f32 %v353, 0.0
      %v386 = vadd.f32 %v354, 0.0
      %v387 = vadd.f32 %v355, 0.0
      %v388 = vadd.f32 %v356, 0.0
      %v389 = vadd.f32 %v357, 0.0
      %v390 = vadd.f32 %v358, 0.0
      %v391 = vadd.f32 %v359, 0.0
      %v392 = vadd.f32 %v360, 0.0
      %v393 = vadd.f32 %v361, 0.0
      %v394 = vadd.f32 %v362, 0.0
      %v395 = vadd.f32 %v363, 0.0
      %v396 = vadd.f32 %v364, 0.0
      %v397 = vadd.f32 %v365, 0.0
      %v398 = vadd.f32 %v366, 0.0
      %v399 = vadd.f32 %v367, 0.0
      %s400 = scalar_lea.vmem %s1, 16
      %v401 = vld [vmem:[%s400] sm:$0x1]
      %v402 = vld [vmem:[%s400 + $0x1] sm:$0x1]
      %v403 = vld [vmem:[%s400 + $0x2] sm:$0x1]
      %v404 = vld [vmem:[%s400 + $0x3] sm:$0x1]
      %v405 = vld [vmem:[%s400 + $0x4] sm:$0x1]
      %v406 = vld [vmem:[%s400 + $0x5] sm:$0x1]
      %v407 = vld [vmem:[%s400 + $0x6] sm:$0x1]
      %v408 = vld [vmem:[%s400 + $0x7] sm:$0x1]
      %v409 = vld [vmem:[%s400 + $0x8] sm:$0x1]
      %v410 = vld [vmem:[%s400 + $0x9] sm:$0x1]
      %v411 = vld [vmem:[%s400 + $0xa] sm:$0x1]
      %v412 = vld [vmem:[%s400 + $0xb] sm:$0x1]
      %v413 = vld [vmem:[%s400 + $0xc] sm:$0x1]
      %v414 = vld [vmem:[%s400 + $0xd] sm:$0x1]
      %v415 = vld [vmem:[%s400 + $0xe] sm:$0x1]
      %v416 = vld [vmem:[%s400 + $0xf] sm:$0x1]
      %v433 = vlaneseq
      %v434 = vshrl.u32 %v433, 7
      %v435 = vsub.s32 0, %v434
      %v436 = vrot.slane %v401, %v435
      %v437 = vlaneseq
      %v438 = vshrl.u32 %v437, 7
      %v439 = vsub.s32 0, %v438
      %v440 = vrot.slane %v402, %v439
      %v441 = vlaneseq
      %v442 = vshrl.u32 %v441, 7
      %v443 = vsub.s32 0, %v442
      %v444 = vrot.slane %v403, %v443
      %v445 = vlaneseq
      %v446 = vshrl.u32 %v445, 7
      %v447 = vsub.s32 0, %v446
      %v448 = vrot.slane %v404, %v447
      %v449 = vlaneseq
      %v450 = vshrl.u32 %v449, 7
      %v451 = vsub.s32 0, %v450
      %v452 = vrot.slane %v405, %v451
      %v453 = vlaneseq
      %v454 = vshrl.u32 %v453, 7
      %v455 = vsub.s32 0, %v454
      %v456 = vrot.slane %v406, %v455
      %v457 = vlaneseq
      %v458 = vshrl.u32 %v457, 7
      %v459 = vsub.s32 0, %v458
      %v460 = vrot.slane %v407, %v459
      %v461 = vlaneseq
      %v462 = vshrl.u32 %v461, 7
      %v463 = vsub.s32 0, %v462
      %v464 = vrot.slane %v408, %v463
      %v465 = vlaneseq
      %v466 = vshrl.u32 %v465, 7
      %v467 = vsub.s32 0, %v466
      %v468 = vrot.slane %v409, %v467
      %v469 = vlaneseq
      %v470 = vshrl.u32 %v469, 7
      %v471 = vsub.s32 0, %v470
      %v472 = vrot.slane %v410, %v471
      %v473 = vlaneseq
      %v474 = vshrl.u32 %v473, 7
      %v475 = vsub.s32 0, %v474
      %v476 = vrot.slane %v411, %v475
      %v477 = vlaneseq
      %v478 = vshrl.u32 %v477, 7
      %v479 = vsub.s32 0, %v478
      %v480 = vrot.slane %v412, %v479
      %v481 = vlaneseq
      %v482 = vshrl.u32 %v481, 7
      %v483 = vsub.s32 0, %v482
      %v484 = vrot.slane %v413, %v483
      %v485 = vlaneseq
      %v486 = vshrl.u32 %v485, 7
      %v487 = vsub.s32 0, %v486
      %v488 = vrot.slane %v414, %v487
      %v489 = vlaneseq
      %v490 = vshrl.u32 %v489, 7
      %v491 = vsub.s32 0, %v490
      %v492 = vrot.slane %v415, %v491
      %v493 = vlaneseq
      %v494 = vshrl.u32 %v493, 7
      %v495 = vsub.s32 0, %v494
      %v496 = vrot.slane %v416, %v495
      %497 = vset.pattern.permute.xlu0 0
      %498 = vperm.xlu0 %497, %v436
      %v499 = vpop.permute.xlu0 %498
      %501 = vset.pattern.permute.xlu0 0
      %502 = vperm.xlu0 %501, %v440
      %v503 = vpop.permute.xlu0 %502
      %505 = vset.pattern.permute.xlu0 0
      %506 = vperm.xlu0 %505, %v444
      %v507 = vpop.permute.xlu0 %506
      %509 = vset.pattern.permute.xlu0 0
      %510 = vperm.xlu0 %509, %v448
      %v511 = vpop.permute.xlu0 %510
      %513 = vset.pattern.permute.xlu0 0
      %514 = vperm.xlu0 %513, %v452
      %v515 = vpop.permute.xlu0 %514
      %517 = vset.pattern.permute.xlu0 0
      %518 = vperm.xlu0 %517, %v456
      %v519 = vpop.permute.xlu0 %518
      %521 = vset.pattern.permute.xlu0 0
      %522 = vperm.xlu0 %521, %v460
      %v523 = vpop.permute.xlu0 %522
      %525 = vset.pattern.permute.xlu0 0
      %526 = vperm.xlu0 %525, %v464
      %v527 = vpop.permute.xlu0 %526
      %529 = vset.pattern.permute.xlu0 0
      %530 = vperm.xlu0 %529, %v468
      %v531 = vpop.permute.xlu0 %530
      %533 = vset.pattern.permute.xlu0 0
      %534 = vperm.xlu0 %533, %v472
      %v535 = vpop.permute.xlu0 %534
      %537 = vset.pattern.permute.xlu0 0
      %538 = vperm.xlu0 %537, %v476
      %v539 = vpop.permute.xlu0 %538
      %541 = vset.pattern.permute.xlu0 0
      %542 = vperm.xlu0 %541, %v480
      %v543 = vpop.permute.xlu0 %542
      %545 = vset.pattern.permute.xlu0 0
      %546 = vperm.xlu0 %545, %v484
      %v547 = vpop.permute.xlu0 %546
      %549 = vset.pattern.permute.xlu0 0
      %550 = vperm.xlu0 %549, %v488
      %v551 = vpop.permute.xlu0 %550
      %553 = vset.pattern.permute.xlu0 0
      %554 = vperm.xlu0 %553, %v492
      %v555 = vpop.permute.xlu0 %554
      %557 = vset.pattern.permute.xlu0 0
      %558 = vperm.xlu0 %557, %v496
      %v559 = vpop.permute.xlu0 %558
      %v561 = vmul.f32 %v144, %v499
      %v562 = vmul.f32 %v145, %v499
      %v563 = vmul.f32 %v146, %v503
      %v564 = vmul.f32 %v147, %v503
      %v565 = vmul.f32 %v148, %v507
      %v566 = vmul.f32 %v149, %v507
      %v567 = vmul.f32 %v150, %v511
      %v568 = vmul.f32 %v151, %v511
      %v569 = vmul.f32 %v152, %v515
      %v570 = vmul.f32 %v153, %v515
      %v571 = vmul.f32 %v154, %v519
      %v572 = vmul.f32 %v155, %v519
      %v573 = vmul.f32 %v156, %v523
      %v574 = vmul.f32 %v157, %v523
      %v575 = vmul.f32 %v158, %v527
      %v576 = vmul.f32 %v159, %v527
      %v577 = vmul.f32 %v160, %v531
      %v578 = vmul.f32 %v161, %v531
      %v579 = vmul.f32 %v162, %v535
      %v580 = vmul.f32 %v163, %v535
      %v581 = vmul.f32 %v164, %v539
      %v582 = vmul.f32 %v165, %v539
      %v583 = vmul.f32 %v166, %v543
      %v584 = vmul.f32 %v167, %v543
      %v585 = vmul.f32 %v168, %v547
      %v586 = vmul.f32 %v169, %v547
      %v587 = vmul.f32 %v170, %v551
      %v588 = vmul.f32 %v171, %v551
      %v589 = vmul.f32 %v172, %v555
      %v590 = vmul.f32 %v173, %v555
      %v591 = vmul.f32 %v174, %v559
      %v592 = vmul.f32 %v175, %v559
      %625 = vrot.lane.b32.xlu0 %v561, 127
      %v626 = vpop.permute.xlu0 %625
      %627 = vrot.lane.b32.xlu0 %v562, 127
      %v628 = vpop.permute.xlu0 %627
      %629 = vrot.lane.b32.xlu0 %v563, 127
      %v630 = vpop.permute.xlu0 %629
      %631 = vrot.lane.b32.xlu0 %v564, 127
      %v632 = vpop.permute.xlu0 %631
      %633 = vrot.lane.b32.xlu0 %v565, 127
      %v634 = vpop.permute.xlu0 %633
      %635 = vrot.lane.b32.xlu0 %v566, 127
      %v636 = vpop.permute.xlu0 %635
      %637 = vrot.lane.b32.xlu0 %v567, 127
      %v638 = vpop.permute.xlu0 %637
      %639 = vrot.lane.b32.xlu0 %v568, 127
      %v640 = vpop.permute.xlu0 %639
      %641 = vrot.lane.b32.xlu0 %v569, 127
      %v642 = vpop.permute.xlu0 %641
      %643 = vrot.lane.b32.xlu0 %v570, 127
      %v644 = vpop.permute.xlu0 %643
      %645 = vrot.lane.b32.xlu0 %v571, 127
      %v646 = vpop.permute.xlu0 %645
      %647 = vrot.lane.b32.xlu0 %v572, 127
      %v648 = vpop.permute.xlu0 %647
      %649 = vrot.lane.b32.xlu0 %v573, 127
      %v650 = vpop.permute.xlu0 %649
      %651 = vrot.lane.b32.xlu0 %v574, 127
      %v652 = vpop.permute.xlu0 %651
      %653 = vrot.lane.b32.xlu0 %v575, 127
      %v654 = vpop.permute.xlu0 %653
      %655 = vrot.lane.b32.xlu0 %v576, 127
      %v656 = vpop.permute.xlu0 %655
      %657 = vrot.lane.b32.xlu0 %v577, 127
      %v658 = vpop.permute.xlu0 %657
      %659 = vrot.lane.b32.xlu0 %v578, 127
      %v660 = vpop.permute.xlu0 %659
      %661 = vrot.lane.b32.xlu0 %v579, 127
      %v662 = vpop.permute.xlu0 %661
      %663 = vrot.lane.b32.xlu0 %v580, 127
      %v664 = vpop.permute.xlu0 %663
      %665 = vrot.lane.b32.xlu0 %v581, 127
      %v666 = vpop.permute.xlu0 %665
      %667 = vrot.lane.b32.xlu0 %v582, 127
      %v668 = vpop.permute.xlu0 %667
      %669 = vrot.lane.b32.xlu0 %v583, 127
      %v670 = vpop.permute.xlu0 %669
      %671 = vrot.lane.b32.xlu0 %v584, 127
      %v672 = vpop.permute.xlu0 %671
      %673 = vrot.lane.b32.xlu0 %v585, 127
      %v674 = vpop.permute.xlu0 %673
      %675 = vrot.lane.b32.xlu0 %v586, 127
      %v676 = vpop.permute.xlu0 %675
      %677 = vrot.lane.b32.xlu0 %v587, 127
      %v678 = vpop.permute.xlu0 %677
      %679 = vrot.lane.b32.xlu0 %v588, 127
      %v680 = vpop.permute.xlu0 %679
      %681 = vrot.lane.b32.xlu0 %v589, 127
      %v682 = vpop.permute.xlu0 %681
      %683 = vrot.lane.b32.xlu0 %v590, 127
      %v684 = vpop.permute.xlu0 %683
      %685 = vrot.lane.b32.xlu0 %v591, 127
      %v686 = vpop.permute.xlu0 %685
      %687 = vrot.lane.b32.xlu0 %v592, 127
      %v688 = vpop.permute.xlu0 %687
      %v721 = vadd.f32 %v368, %v626
      %v722 = vadd.f32 %v369, %v628
      %v723 = vadd.f32 %v370, %v630
      %v724 = vadd.f32 %v371, %v632
      %v725 = vadd.f32 %v372, %v634
      %v726 = vadd.f32 %v373, %v636
      %v727 = vadd.f32 %v374, %v638
      %v728 = vadd.f32 %v375, %v640
      %v729 = vadd.f32 %v376, %v642
      %v730 = vadd.f32 %v377, %v644
      %v731 = vadd.f32 %v378, %v646
      %v732 = vadd.f32 %v379, %v648
      %v733 = vadd.f32 %v380, %v650
      %v734 = vadd.f32 %v381, %v652
      %v735 = vadd.f32 %v382, %v654
      %v736 = vadd.f32 %v383, %v656
      %v737 = vadd.f32 %v384, %v658
      %v738 = vadd.f32 %v385, %v660
      %v739 = vadd.f32 %v386, %v662
      %v740 = vadd.f32 %v387, %v664
      %v741 = vadd.f32 %v388, %v666
      %v742 = vadd.f32 %v389, %v668
      %v743 = vadd.f32 %v390, %v670
      %v744 = vadd.f32 %v391, %v672
      %v745 = vadd.f32 %v392, %v674
      %v746 = vadd.f32 %v393, %v676
      %v747 = vadd.f32 %v394, %v678
      %v748 = vadd.f32 %v395, %v680
      %v749 = vadd.f32 %v396, %v682
      %v750 = vadd.f32 %v397, %v684
      %v751 = vadd.f32 %v398, %v686
      %v752 = vadd.f32 %v399, %v688
      %s753 = scalar_lea.vmem %s1, 32
      %v754 = vld [vmem:[%s753] sm:$0x1]
      %v755 = vld [vmem:[%s753 + $0x1] sm:$0x1]
      %v756 = vld [vmem:[%s753 + $0x2] sm:$0x1]
      %v757 = vld [vmem:[%s753 + $0x3] sm:$0x1]
      %v758 = vld [vmem:[%s753 + $0x4] sm:$0x1]
      %v759 = vld [vmem:[%s753 + $0x5] sm:$0x1]
      %v760 = vld [vmem:[%s753 + $0x6] sm:$0x1]
      %v761 = vld [vmem:[%s753 + $0x7] sm:$0x1]
      %v762 = vld [vmem:[%s753 + $0x8] sm:$0x1]
      %v763 = vld [vmem:[%s753 + $0x9] sm:$0x1]
      %v764 = vld [vmem:[%s753 + $0xa] sm:$0x1]
      %v765 = vld [vmem:[%s753 + $0xb] sm:$0x1]
      %v766 = vld [vmem:[%s753 + $0xc] sm:$0x1]
      %v767 = vld [vmem:[%s753 + $0xd] sm:$0x1]
      %v768 = vld [vmem:[%s753 + $0xe] sm:$0x1]
      %v769 = vld [vmem:[%s753 + $0xf] sm:$0x1]
      %v786 = vlaneseq
      %v787 = vshrl.u32 %v786, 7
      %v788 = vsub.s32 0, %v787
      %v789 = vrot.slane %v754, %v788
      %v790 = vlaneseq
      %v791 = vshrl.u32 %v790, 7
      %v792 = vsub.s32 0, %v791
      %v793 = vrot.slane %v755, %v792
      %v794 = vlaneseq
      %v795 = vshrl.u32 %v794, 7
      %v796 = vsub.s32 0, %v795
      %v797 = vrot.slane %v756, %v796
      %v798 = vlaneseq
      %v799 = vshrl.u32 %v798, 7
      %v800 = vsub.s32 0, %v799
      %v801 = vrot.slane %v757, %v800
      %v802 = vlaneseq
      %v803 = vshrl.u32 %v802, 7
      %v804 = vsub.s32 0, %v803
      %v805 = vrot.slane %v758, %v804
      %v806 = vlaneseq
      %v807 = vshrl.u32 %v806, 7
      %v808 = vsub.s32 0, %v807
      %v809 = vrot.slane %v759, %v808
      %v810 = vlaneseq
      %v811 = vshrl.u32 %v810, 7
      %v812 = vsub.s32 0, %v811
      %v813 = vrot.slane %v760, %v812
      %v814 = vlaneseq
      %v815 = vshrl.u32 %v814, 7
      %v816 = vsub.s32 0, %v815
      %v817 = vrot.slane %v761, %v816
      %v818 = vlaneseq
      %v819 = vshrl.u32 %v818, 7
      %v820 = vsub.s32 0, %v819
      %v821 = vrot.slane %v762, %v820
      %v822 = vlaneseq
      %v823 = vshrl.u32 %v822, 7
      %v824 = vsub.s32 0, %v823
      %v825 = vrot.slane %v763, %v824
      %v826 = vlaneseq
      %v827 = vshrl.u32 %v826, 7
      %v828 = vsub.s32 0, %v827
      %v829 = vrot.slane %v764, %v828
      %v830 = vlaneseq
      %v831 = vshrl.u32 %v830, 7
      %v832 = vsub.s32 0, %v831
      %v833 = vrot.slane %v765, %v832
      %v834 = vlaneseq
      %v835 = vshrl.u32 %v834, 7
      %v836 = vsub.s32 0, %v835
      %v837 = vrot.slane %v766, %v836
      %v838 = vlaneseq
      %v839 = vshrl.u32 %v838, 7
      %v840 = vsub.s32 0, %v839
      %v841 = vrot.slane %v767, %v840
      %v842 = vlaneseq
      %v843 = vshrl.u32 %v842, 7
      %v844 = vsub.s32 0, %v843
      %v845 = vrot.slane %v768, %v844
      %v846 = vlaneseq
      %v847 = vshrl.u32 %v846, 7
      %v848 = vsub.s32 0, %v847
      %v849 = vrot.slane %v769, %v848
      %850 = vset.pattern.permute.xlu0 0
      %851 = vperm.xlu0 %850, %v789
      %v852 = vpop.permute.xlu0 %851
      %854 = vset.pattern.permute.xlu0 0
      %855 = vperm.xlu0 %854, %v793
      %v856 = vpop.permute.xlu0 %855
      %858 = vset.pattern.permute.xlu0 0
      %859 = vperm.xlu0 %858, %v797
      %v860 = vpop.permute.xlu0 %859
      %862 = vset.pattern.permute.xlu0 0
      %863 = vperm.xlu0 %862, %v801
      %v864 = vpop.permute.xlu0 %863
      %866 = vset.pattern.permute.xlu0 0
      %867 = vperm.xlu0 %866, %v805
      %v868 = vpop.permute.xlu0 %867
      %870 = vset.pattern.permute.xlu0 0
      %871 = vperm.xlu0 %870, %v809
      %v872 = vpop.permute.xlu0 %871
      %874 = vset.pattern.permute.xlu0 0
      %875 = vperm.xlu0 %874, %v813
      %v876 = vpop.permute.xlu0 %875
      %878 = vset.pattern.permute.xlu0 0
      %879 = vperm.xlu0 %878, %v817
      %v880 = vpop.permute.xlu0 %879
      %882 = vset.pattern.permute.xlu0 0
      %883 = vperm.xlu0 %882, %v821
      %v884 = vpop.permute.xlu0 %883
      %886 = vset.pattern.permute.xlu0 0
      %887 = vperm.xlu0 %886, %v825
      %v888 = vpop.permute.xlu0 %887
      %890 = vset.pattern.permute.xlu0 0
      %891 = vperm.xlu0 %890, %v829
      %v892 = vpop.permute.xlu0 %891
      %894 = vset.pattern.permute.xlu0 0
      %895 = vperm.xlu0 %894, %v833
      %v896 = vpop.permute.xlu0 %895
      %898 = vset.pattern.permute.xlu0 0
      %899 = vperm.xlu0 %898, %v837
      %v900 = vpop.permute.xlu0 %899
      %902 = vset.pattern.permute.xlu0 0
      %903 = vperm.xlu0 %902, %v841
      %v904 = vpop.permute.xlu0 %903
      %906 = vset.pattern.permute.xlu0 0
      %907 = vperm.xlu0 %906, %v845
      %v908 = vpop.permute.xlu0 %907
      %910 = vset.pattern.permute.xlu0 0
      %911 = vperm.xlu0 %910, %v849
      %v912 = vpop.permute.xlu0 %911
      %v914 = vmul.f32 %v144, %v852
      %v915 = vmul.f32 %v145, %v852
      %v916 = vmul.f32 %v146, %v856
      %v917 = vmul.f32 %v147, %v856
      %v918 = vmul.f32 %v148, %v860
      %v919 = vmul.f32 %v149, %v860
      %v920 = vmul.f32 %v150, %v864
      %v921 = vmul.f32 %v151, %v864
      %v922 = vmul.f32 %v152, %v868
      %v923 = vmul.f32 %v153, %v868
      %v924 = vmul.f32 %v154, %v872
      %v925 = vmul.f32 %v155, %v872
      %v926 = vmul.f32 %v156, %v876
      %v927 = vmul.f32 %v157, %v876
      %v928 = vmul.f32 %v158, %v880
      %v929 = vmul.f32 %v159, %v880
      %v930 = vmul.f32 %v160, %v884
      %v931 = vmul.f32 %v161, %v884
      %v932 = vmul.f32 %v162, %v888
      %v933 = vmul.f32 %v163, %v888
      %v934 = vmul.f32 %v164, %v892
      %v935 = vmul.f32 %v165, %v892
      %v936 = vmul.f32 %v166, %v896
      %v937 = vmul.f32 %v167, %v896
      %v938 = vmul.f32 %v168, %v900
      %v939 = vmul.f32 %v169, %v900
      %v940 = vmul.f32 %v170, %v904
      %v941 = vmul.f32 %v171, %v904
      %v942 = vmul.f32 %v172, %v908
      %v943 = vmul.f32 %v173, %v908
      %v944 = vmul.f32 %v174, %v912
      %v945 = vmul.f32 %v175, %v912
      %978 = vrot.lane.b32.xlu0 %v914, 126
      %v979 = vpop.permute.xlu0 %978
      %980 = vrot.lane.b32.xlu0 %v915, 126
      %v981 = vpop.permute.xlu0 %980
      %982 = vrot.lane.b32.xlu0 %v916, 126
      %v983 = vpop.permute.xlu0 %982
      %984 = vrot.lane.b32.xlu0 %v917, 126
      %v985 = vpop.permute.xlu0 %984
      %986 = vrot.lane.b32.xlu0 %v918, 126
      %v987 = vpop.permute.xlu0 %986
      %988 = vrot.lane.b32.xlu0 %v919, 126
      %v989 = vpop.permute.xlu0 %988
      %990 = vrot.lane.b32.xlu0 %v920, 126
      %v991 = vpop.permute.xlu0 %990
      %992 = vrot.lane.b32.xlu0 %v921, 126
      %v993 = vpop.permute.xlu0 %992
      %994 = vrot.lane.b32.xlu0 %v922, 126
      %v995 = vpop.permute.xlu0 %994
      %996 = vrot.lane.b32.xlu0 %v923, 126
      %v997 = vpop.permute.xlu0 %996
      %998 = vrot.lane.b32.xlu0 %v924, 126
      %v999 = vpop.permute.xlu0 %998
      %1000 = vrot.lane.b32.xlu0 %v925, 126
      %v1001 = vpop.permute.xlu0 %1000
      %1002 = vrot.lane.b32.xlu0 %v926, 126
      %v1003 = vpop.permute.xlu0 %1002
      %1004 = vrot.lane.b32.xlu0 %v927, 126
      %v1005 = vpop.permute.xlu0 %1004
      %1006 = vrot.lane.b32.xlu0 %v928, 126
      %v1007 = vpop.permute.xlu0 %1006
      %1008 = vrot.lane.b32.xlu0 %v929, 126
      %v1009 = vpop.permute.xlu0 %1008
      %1010 = vrot.lane.b32.xlu0 %v930, 126
      %v1011 = vpop.permute.xlu0 %1010
      %1012 = vrot.lane.b32.xlu0 %v931, 126
      %v1013 = vpop.permute.xlu0 %1012
      %1014 = vrot.lane.b32.xlu0 %v932, 126
      %v1015 = vpop.permute.xlu0 %1014
      %1016 = vrot.lane.b32.xlu0 %v933, 126
      %v1017 = vpop.permute.xlu0 %1016
      %1018 = vrot.lane.b32.xlu0 %v934, 126
      %v1019 = vpop.permute.xlu0 %1018
      %1020 = vrot.lane.b32.xlu0 %v935, 126
      %v1021 = vpop.permute.xlu0 %1020
      %1022 = vrot.lane.b32.xlu0 %v936, 126
      %v1023 = vpop.permute.xlu0 %1022
      %1024 = vrot.lane.b32.xlu0 %v937, 126
      %v1025 = vpop.permute.xlu0 %1024
      %1026 = vrot.lane.b32.xlu0 %v938, 126
      %v1027 = vpop.permute.xlu0 %1026
      %1028 = vrot.lane.b32.xlu0 %v939, 126
      %v1029 = vpop.permute.xlu0 %1028
      %1030 = vrot.lane.b32.xlu0 %v940, 126
      %v1031 = vpop.permute.xlu0 %1030
      %1032 = vrot.lane.b32.xlu0 %v941, 126
      %v1033 = vpop.permute.xlu0 %1032
      %1034 = vrot.lane.b32.xlu0 %v942, 126
      %v1035 = vpop.permute.xlu0 %1034
      %1036 = vrot.lane.b32.xlu0 %v943, 126
      %v1037 = vpop.permute.xlu0 %1036
      %1038 = vrot.lane.b32.xlu0 %v944, 126
      %v1039 = vpop.permute.xlu0 %1038
      %1040 = vrot.lane.b32.xlu0 %v945, 126
      %v1041 = vpop.permute.xlu0 %1040
      %v1074 = vadd.f32 %v721, %v979
      %v1075 = vadd.f32 %v722, %v981
      %v1076 = vadd.f32 %v723, %v983
      %v1077 = vadd.f32 %v724, %v985
      %v1078 = vadd.f32 %v725, %v987
      %v1079 = vadd.f32 %v726, %v989
      %v1080 = vadd.f32 %v727, %v991
      %v1081 = vadd.f32 %v728, %v993
      %v1082 = vadd.f32 %v729, %v995
      %v1083 = vadd.f32 %v730, %v997
      %v1084 = vadd.f32 %v731, %v999
      %v1085 = vadd.f32 %v732, %v1001
      %v1086 = vadd.f32 %v733, %v1003
      %v1087 = vadd.f32 %v734, %v1005
      %v1088 = vadd.f32 %v735, %v1007
      %v1089 = vadd.f32 %v736, %v1009
      %v1090 = vadd.f32 %v737, %v1011
      %v1091 = vadd.f32 %v738, %v1013
      %v1092 = vadd.f32 %v739, %v1015
      %v1093 = vadd.f32 %v740, %v1017
      %v1094 = vadd.f32 %v741, %v1019
      %v1095 = vadd.f32 %v742, %v1021
      %v1096 = vadd.f32 %v743, %v1023
      %v1097 = vadd.f32 %v744, %v1025
      %v1098 = vadd.f32 %v745, %v1027
      %v1099 = vadd.f32 %v746, %v1029
      %v1100 = vadd.f32 %v747, %v1031
      %v1101 = vadd.f32 %v748, %v1033
      %v1102 = vadd.f32 %v749, %v1035
      %v1103 = vadd.f32 %v750, %v1037
      %v1104 = vadd.f32 %v751, %v1039
      %v1105 = vadd.f32 %v752, %v1041
      %v1106 = vld [vmem:[%s138 + $0x1] sm:$0xff]
      %v1107 = vld [vmem:[%s138 + $0x9] sm:$0xff]
      %v1108 = vld [vmem:[%s138 + $0x19] sm:$0xff]
      %v1109 = vld [vmem:[%s138 + $0x21] sm:$0xff]
      %v1110 = vld [vmem:[%s138 + $0x31] sm:$0xff]
      %v1111 = vld [vmem:[%s138 + $0x39] sm:$0xff]
      %v1112 = vld [vmem:[%s138 + $0x49] sm:$0xff]
      %v1113 = vld [vmem:[%s138 + $0x51] sm:$0xff]
      %v1114 = vld [vmem:[%s138 + $0x61] sm:$0xff]
      %v1115 = vld [vmem:[%s138 + $0x69] sm:$0xff]
      %v1116 = vld [vmem:[%s138 + $0x79] sm:$0xff]
      %v1117 = vld [vmem:[%s138 + $0x81] sm:$0xff]
      %v1118 = vld [vmem:[%s138 + $0x91] sm:$0xff]
      %v1119 = vld [vmem:[%s138 + $0x99] sm:$0xff]
      %v1120 = vld [vmem:[%s138 + $0xa9] sm:$0xff]
      %v1121 = vld [vmem:[%s138 + $0xb1] sm:$0xff]
      %v1122 = vld [vmem:[%s138 + $0xc1] sm:$0xff]
      %v1123 = vld [vmem:[%s138 + $0xc9] sm:$0xff]
      %v1124 = vld [vmem:[%s138 + $0xd9] sm:$0xff]
      %v1125 = vld [vmem:[%s138 + $0xe1] sm:$0xff]
      %v1126 = vld [vmem:[%s138 + $0xf1] sm:$0xff]
      %v1127 = vld [vmem:[%s138 + $0xf9] sm:$0xff]
      %v1128 = vld [vmem:[%s138 + $0x109] sm:$0xff]
      %v1129 = vld [vmem:[%s138 + $0x111] sm:$0xff]
      %v1130 = vld [vmem:[%s138 + $0x121] sm:$0xff]
      %v1131 = vld [vmem:[%s138 + $0x129] sm:$0xff]
      %v1132 = vld [vmem:[%s138 + $0x139] sm:$0xff]
      %v1133 = vld [vmem:[%s138 + $0x141] sm:$0xff]
      %v1134 = vld [vmem:[%s138 + $0x151] sm:$0xff]
      %v1135 = vld [vmem:[%s138 + $0x159] sm:$0xff]
      %v1136 = vld [vmem:[%s138 + $0x169] sm:$0xff]
      %v1137 = vld [vmem:[%s138 + $0x171] sm:$0xff]
      %s1138 = scalar_lea.vmem %s1, 48
      %v1139 = vld [vmem:[%s1138] sm:$0x1]
      %v1140 = vld [vmem:[%s1138 + $0x1] sm:$0x1]
      %v1141 = vld [vmem:[%s1138 + $0x2] sm:$0x1]
      %v1142 = vld [vmem:[%s1138 + $0x3] sm:$0x1]
      %v1143 = vld [vmem:[%s1138 + $0x4] sm:$0x1]
      %v1144 = vld [vmem:[%s1138 + $0x5] sm:$0x1]
      %v1145 = vld [vmem:[%s1138 + $0x6] sm:$0x1]
      %v1146 = vld [vmem:[%s1138 + $0x7] sm:$0x1]
      %v1147 = vld [vmem:[%s1138 + $0x8] sm:$0x1]
      %v1148 = vld [vmem:[%s1138 + $0x9] sm:$0x1]
      %v1149 = vld [vmem:[%s1138 + $0xa] sm:$0x1]
      %v1150 = vld [vmem:[%s1138 + $0xb] sm:$0x1]
      %v1151 = vld [vmem:[%s1138 + $0xc] sm:$0x1]
      %v1152 = vld [vmem:[%s1138 + $0xd] sm:$0x1]
      %v1153 = vld [vmem:[%s1138 + $0xe] sm:$0x1]
      %v1154 = vld [vmem:[%s1138 + $0xf] sm:$0x1]
      %v1171 = vlaneseq
      %v1172 = vshrl.u32 %v1171, 7
      %v1173 = vsub.s32 0, %v1172
      %v1174 = vrot.slane %v1139, %v1173
      %v1175 = vlaneseq
      %v1176 = vshrl.u32 %v1175, 7
      %v1177 = vsub.s32 0, %v1176
      %v1178 = vrot.slane %v1140, %v1177
      %v1179 = vlaneseq
      %v1180 = vshrl.u32 %v1179, 7
      %v1181 = vsub.s32 0, %v1180
      %v1182 = vrot.slane %v1141, %v1181
      %v1183 = vlaneseq
      %v1184 = vshrl.u32 %v1183, 7
      %v1185 = vsub.s32 0, %v1184
      %v1186 = vrot.slane %v1142, %v1185
      %v1187 = vlaneseq
      %v1188 = vshrl.u32 %v1187, 7
      %v1189 = vsub.s32 0, %v1188
      %v1190 = vrot.slane %v1143, %v1189
      %v1191 = vlaneseq
      %v1192 = vshrl.u32 %v1191, 7
      %v1193 = vsub.s32 0, %v1192
      %v1194 = vrot.slane %v1144, %v1193
      %v1195 = vlaneseq
      %v1196 = vshrl.u32 %v1195, 7
      %v1197 = vsub.s32 0, %v1196
      %v1198 = vrot.slane %v1145, %v1197
      %v1199 = vlaneseq
      %v1200 = vshrl.u32 %v1199, 7
      %v1201 = vsub.s32 0, %v1200
      %v1202 = vrot.slane %v1146, %v1201
      %v1203 = vlaneseq
      %v1204 = vshrl.u32 %v1203, 7
      %v1205 = vsub.s32 0, %v1204
      %v1206 = vrot.slane %v1147, %v1205
      %v1207 = vlaneseq
      %v1208 = vshrl.u32 %v1207, 7
      %v1209 = vsub.s32 0, %v1208
      %v1210 = vrot.slane %v1148, %v1209
      %v1211 = vlaneseq
      %v1212 = vshrl.u32 %v1211, 7
      %v1213 = vsub.s32 0, %v1212
      %v1214 = vrot.slane %v1149, %v1213
      %v1215 = vlaneseq
      %v1216 = vshrl.u32 %v1215, 7
      %v1217 = vsub.s32 0, %v1216
      %v1218 = vrot.slane %v1150, %v1217
      %v1219 = vlaneseq
      %v1220 = vshrl.u32 %v1219, 7
      %v1221 = vsub.s32 0, %v1220
      %v1222 = vrot.slane %v1151, %v1221
      %v1223 = vlaneseq
      %v1224 = vshrl.u32 %v1223, 7
      %v1225 = vsub.s32 0, %v1224
      %v1226 = vrot.slane %v1152, %v1225
      %v1227 = vlaneseq
      %v1228 = vshrl.u32 %v1227, 7
      %v1229 = vsub.s32 0, %v1228
      %v1230 = vrot.slane %v1153, %v1229
      %v1231 = vlaneseq
      %v1232 = vshrl.u32 %v1231, 7
      %v1233 = vsub.s32 0, %v1232
      %v1234 = vrot.slane %v1154, %v1233
      %1235 = vset.pattern.permute.xlu0 0
      %1236 = vperm.xlu0 %1235, %v1174
      %v1237 = vpop.permute.xlu0 %1236
      %1239 = vset.pattern.permute.xlu0 0
      %1240 = vperm.xlu0 %1239, %v1178
      %v1241 = vpop.permute.xlu0 %1240
      %1243 = vset.pattern.permute.xlu0 0
      %1244 = vperm.xlu0 %1243, %v1182
      %v1245 = vpop.permute.xlu0 %1244
      %1247 = vset.pattern.permute.xlu0 0
      %1248 = vperm.xlu0 %1247, %v1186
      %v1249 = vpop.permute.xlu0 %1248
      %1251 = vset.pattern.permute.xlu0 0
      %1252 = vperm.xlu0 %1251, %v1190
      %v1253 = vpop.permute.xlu0 %1252
      %1255 = vset.pattern.permute.xlu0 0
      %1256 = vperm.xlu0 %1255, %v1194
      %v1257 = vpop.permute.xlu0 %1256
      %1259 = vset.pattern.permute.xlu0 0
      %1260 = vperm.xlu0 %1259, %v1198
      %v1261 = vpop.permute.xlu0 %1260
      %1263 = vset.pattern.permute.xlu0 0
      %1264 = vperm.xlu0 %1263, %v1202
      %v1265 = vpop.permute.xlu0 %1264
      %1267 = vset.pattern.permute.xlu0 0
      %1268 = vperm.xlu0 %1267, %v1206
      %v1269 = vpop.permute.xlu0 %1268
      %1271 = vset.pattern.permute.xlu0 0
      %1272 = vperm.xlu0 %1271, %v1210
      %v1273 = vpop.permute.xlu0 %1272
      %1275 = vset.pattern.permute.xlu0 0
      %1276 = vperm.xlu0 %1275, %v1214
      %v1277 = vpop.permute.xlu0 %1276
      %1279 = vset.pattern.permute.xlu0 0
      %1280 = vperm.xlu0 %1279, %v1218
      %v1281 = vpop.permute.xlu0 %1280
      %1283 = vset.pattern.permute.xlu0 0
      %1284 = vperm.xlu0 %1283, %v1222
      %v1285 = vpop.permute.xlu0 %1284
      %1287 = vset.pattern.permute.xlu0 0
      %1288 = vperm.xlu0 %1287, %v1226
      %v1289 = vpop.permute.xlu0 %1288
      %1291 = vset.pattern.permute.xlu0 0
      %1292 = vperm.xlu0 %1291, %v1230
      %v1293 = vpop.permute.xlu0 %1292
      %1295 = vset.pattern.permute.xlu0 0
      %1296 = vperm.xlu0 %1295, %v1234
      %v1297 = vpop.permute.xlu0 %1296
      %v1299 = vmul.f32 %v1106, %v1237
      %v1300 = vmul.f32 %v1107, %v1237
      %v1301 = vmul.f32 %v1108, %v1241
      %v1302 = vmul.f32 %v1109, %v1241
      %v1303 = vmul.f32 %v1110, %v1245
      %v1304 = vmul.f32 %v1111, %v1245
      %v1305 = vmul.f32 %v1112, %v1249
      %v1306 = vmul.f32 %v1113, %v1249
      %v1307 = vmul.f32 %v1114, %v1253
      %v1308 = vmul.f32 %v1115, %v1253
      %v1309 = vmul.f32 %v1116, %v1257
      %v1310 = vmul.f32 %v1117, %v1257
      %v1311 = vmul.f32 %v1118, %v1261
      %v1312 = vmul.f32 %v1119, %v1261
      %v1313 = vmul.f32 %v1120, %v1265
      %v1314 = vmul.f32 %v1121, %v1265
      %v1315 = vmul.f32 %v1122, %v1269
      %v1316 = vmul.f32 %v1123, %v1269
      %v1317 = vmul.f32 %v1124, %v1273
      %v1318 = vmul.f32 %v1125, %v1273
      %v1319 = vmul.f32 %v1126, %v1277
      %v1320 = vmul.f32 %v1127, %v1277
      %v1321 = vmul.f32 %v1128, %v1281
      %v1322 = vmul.f32 %v1129, %v1281
      %v1323 = vmul.f32 %v1130, %v1285
      %v1324 = vmul.f32 %v1131, %v1285
      %v1325 = vmul.f32 %v1132, %v1289
      %v1326 = vmul.f32 %v1133, %v1289
      %v1327 = vmul.f32 %v1134, %v1293
      %v1328 = vmul.f32 %v1135, %v1293
      %v1329 = vmul.f32 %v1136, %v1297
      %v1330 = vmul.f32 %v1137, %v1297
      %v1331 = vadd.f32 %v1074, %v1299
      %v1332 = vadd.f32 %v1075, %v1300
      %v1333 = vadd.f32 %v1076, %v1301
      %v1334 = vadd.f32 %v1077, %v1302
      %v1335 = vadd.f32 %v1078, %v1303
      %v1336 = vadd.f32 %v1079, %v1304
      %v1337 = vadd.f32 %v1080, %v1305
      %v1338 = vadd.f32 %v1081, %v1306
      %v1339 = vadd.f32 %v1082, %v1307
      %v1340 = vadd.f32 %v1083, %v1308
      %v1341 = vadd.f32 %v1084, %v1309
      %v1342 = vadd.f32 %v1085, %v1310
      %v1343 = vadd.f32 %v1086, %v1311
      %v1344 = vadd.f32 %v1087, %v1312
      %v1345 = vadd.f32 %v1088, %v1313
      %v1346 = vadd.f32 %v1089, %v1314
      %v1347 = vadd.f32 %v1090, %v1315
      %v1348 = vadd.f32 %v1091, %v1316
      %v1349 = vadd.f32 %v1092, %v1317
      %v1350 = vadd.f32 %v1093, %v1318
      %v1351 = vadd.f32 %v1094, %v1319
      %v1352 = vadd.f32 %v1095, %v1320
      %v1353 = vadd.f32 %v1096, %v1321
      %v1354 = vadd.f32 %v1097, %v1322
      %v1355 = vadd.f32 %v1098, %v1323
      %v1356 = vadd.f32 %v1099, %v1324
      %v1357 = vadd.f32 %v1100, %v1325
      %v1358 = vadd.f32 %v1101, %v1326
      %v1359 = vadd.f32 %v1102, %v1327
      %v1360 = vadd.f32 %v1103, %v1328
      %v1361 = vadd.f32 %v1104, %v1329
      %v1362 = vadd.f32 %v1105, %v1330
      %s1363 = scalar_lea.vmem %s1, 64
      %v1364 = vld [vmem:[%s1363] sm:$0x1]
      %v1365 = vld [vmem:[%s1363 + $0x1] sm:$0x1]
      %v1366 = vld [vmem:[%s1363 + $0x2] sm:$0x1]
      %v1367 = vld [vmem:[%s1363 + $0x3] sm:$0x1]
      %v1368 = vld [vmem:[%s1363 + $0x4] sm:$0x1]
      %v1369 = vld [vmem:[%s1363 + $0x5] sm:$0x1]
      %v1370 = vld [vmem:[%s1363 + $0x6] sm:$0x1]
      %v1371 = vld [vmem:[%s1363 + $0x7] sm:$0x1]
      %v1372 = vld [vmem:[%s1363 + $0x8] sm:$0x1]
      %v1373 = vld [vmem:[%s1363 + $0x9] sm:$0x1]
      %v1374 = vld [vmem:[%s1363 + $0xa] sm:$0x1]
      %v1375 = vld [vmem:[%s1363 + $0xb] sm:$0x1]
      %v1376 = vld [vmem:[%s1363 + $0xc] sm:$0x1]
      %v1377 = vld [vmem:[%s1363 + $0xd] sm:$0x1]
      %v1378 = vld [vmem:[%s1363 + $0xe] sm:$0x1]
      %v1379 = vld [vmem:[%s1363 + $0xf] sm:$0x1]
      %v1396 = vlaneseq
      %v1397 = vshrl.u32 %v1396, 7
      %v1398 = vsub.s32 0, %v1397
      %v1399 = vrot.slane %v1364, %v1398
      %v1400 = vlaneseq
      %v1401 = vshrl.u32 %v1400, 7
      %v1402 = vsub.s32 0, %v1401
      %v1403 = vrot.slane %v1365, %v1402
      %v1404 = vlaneseq
      %v1405 = vshrl.u32 %v1404, 7
      %v1406 = vsub.s32 0, %v1405
      %v1407 = vrot.slane %v1366, %v1406
      %v1408 = vlaneseq
      %v1409 = vshrl.u32 %v1408, 7
      %v1410 = vsub.s32 0, %v1409
      %v1411 = vrot.slane %v1367, %v1410
      %v1412 = vlaneseq
      %v1413 = vshrl.u32 %v1412, 7
      %v1414 = vsub.s32 0, %v1413
      %v1415 = vrot.slane %v1368, %v1414
      %v1416 = vlaneseq
      %v1417 = vshrl.u32 %v1416, 7
      %v1418 = vsub.s32 0, %v1417
      %v1419 = vrot.slane %v1369, %v1418
      %v1420 = vlaneseq
      %v1421 = vshrl.u32 %v1420, 7
      %v1422 = vsub.s32 0, %v1421
      %v1423 = vrot.slane %v1370, %v1422
      %v1424 = vlaneseq
      %v1425 = vshrl.u32 %v1424, 7
      %v1426 = vsub.s32 0, %v1425
      %v1427 = vrot.slane %v1371, %v1426
      %v1428 = vlaneseq
      %v1429 = vshrl.u32 %v1428, 7
      %v1430 = vsub.s32 0, %v1429
      %v1431 = vrot.slane %v1372, %v1430
      %v1432 = vlaneseq
      %v1433 = vshrl.u32 %v1432, 7
      %v1434 = vsub.s32 0, %v1433
      %v1435 = vrot.slane %v1373, %v1434
      %v1436 = vlaneseq
      %v1437 = vshrl.u32 %v1436, 7
      %v1438 = vsub.s32 0, %v1437
      %v1439 = vrot.slane %v1374, %v1438
      %v1440 = vlaneseq
      %v1441 = vshrl.u32 %v1440, 7
      %v1442 = vsub.s32 0, %v1441
      %v1443 = vrot.slane %v1375, %v1442
      %v1444 = vlaneseq
      %v1445 = vshrl.u32 %v1444, 7
      %v1446 = vsub.s32 0, %v1445
      %v1447 = vrot.slane %v1376, %v1446
      %v1448 = vlaneseq
      %v1449 = vshrl.u32 %v1448, 7
      %v1450 = vsub.s32 0, %v1449
      %v1451 = vrot.slane %v1377, %v1450
      %v1452 = vlaneseq
      %v1453 = vshrl.u32 %v1452, 7
      %v1454 = vsub.s32 0, %v1453
      %v1455 = vrot.slane %v1378, %v1454
      %v1456 = vlaneseq
      %v1457 = vshrl.u32 %v1456, 7
      %v1458 = vsub.s32 0, %v1457
      %v1459 = vrot.slane %v1379, %v1458
      %1460 = vset.pattern.permute.xlu0 0
      %1461 = vperm.xlu0 %1460, %v1399
      %v1462 = vpop.permute.xlu0 %1461
      %1464 = vset.pattern.permute.xlu0 0
      %1465 = vperm.xlu0 %1464, %v1403
      %v1466 = vpop.permute.xlu0 %1465
      %1468 = vset.pattern.permute.xlu0 0
      %1469 = vperm.xlu0 %1468, %v1407
      %v1470 = vpop.permute.xlu0 %1469
      %1472 = vset.pattern.permute.xlu0 0
      %1473 = vperm.xlu0 %1472, %v1411
      %v1474 = vpop.permute.xlu0 %1473
      %1476 = vset.pattern.permute.xlu0 0
      %1477 = vperm.xlu0 %1476, %v1415
      %v1478 = vpop.permute.xlu0 %1477
      %1480 = vset.pattern.permute.xlu0 0
      %1481 = vperm.xlu0 %1480, %v1419
      %v1482 = vpop.permute.xlu0 %1481
      %1484 = vset.pattern.permute.xlu0 0
      %1485 = vperm.xlu0 %1484, %v1423
      %v1486 = vpop.permute.xlu0 %1485
      %1488 = vset.pattern.permute.xlu0 0
      %1489 = vperm.xlu0 %1488, %v1427
      %v1490 = vpop.permute.xlu0 %1489
      %1492 = vset.pattern.permute.xlu0 0
      %1493 = vperm.xlu0 %1492, %v1431
      %v1494 = vpop.permute.xlu0 %1493
      %1496 = vset.pattern.permute.xlu0 0
      %1497 = vperm.xlu0 %1496, %v1435
      %v1498 = vpop.permute.xlu0 %1497
      %1500 = vset.pattern.permute.xlu0 0
      %1501 = vperm.xlu0 %1500, %v1439
      %v1502 = vpop.permute.xlu0 %1501
      %1504 = vset.pattern.permute.xlu0 0
      %1505 = vperm.xlu0 %1504, %v1443
      %v1506 = vpop.permute.xlu0 %1505
      %1508 = vset.pattern.permute.xlu0 0
      %1509 = vperm.xlu0 %1508, %v1447
      %v1510 = vpop.permute.xlu0 %1509
      %1512 = vset.pattern.permute.xlu0 0
      %1513 = vperm.xlu0 %1512, %v1451
      %v1514 = vpop.permute.xlu0 %1513
      %1516 = vset.pattern.permute.xlu0 0
      %1517 = vperm.xlu0 %1516, %v1455
      %v1518 = vpop.permute.xlu0 %1517
      %1520 = vset.pattern.permute.xlu0 0
      %1521 = vperm.xlu0 %1520, %v1459
      %v1522 = vpop.permute.xlu0 %1521
      %v1524 = vmul.f32 %v1106, %v1462
      %v1525 = vmul.f32 %v1107, %v1462
      %v1526 = vmul.f32 %v1108, %v1466
      %v1527 = vmul.f32 %v1109, %v1466
      %v1528 = vmul.f32 %v1110, %v1470
      %v1529 = vmul.f32 %v1111, %v1470
      %v1530 = vmul.f32 %v1112, %v1474
      %v1531 = vmul.f32 %v1113, %v1474
      %v1532 = vmul.f32 %v1114, %v1478
      %v1533 = vmul.f32 %v1115, %v1478
      %v1534 = vmul.f32 %v1116, %v1482
      %v1535 = vmul.f32 %v1117, %v1482
      %v1536 = vmul.f32 %v1118, %v1486
      %v1537 = vmul.f32 %v1119, %v1486
      %v1538 = vmul.f32 %v1120, %v1490
      %v1539 = vmul.f32 %v1121, %v1490
      %v1540 = vmul.f32 %v1122, %v1494
      %v1541 = vmul.f32 %v1123, %v1494
      %v1542 = vmul.f32 %v1124, %v1498
      %v1543 = vmul.f32 %v1125, %v1498
      %v1544 = vmul.f32 %v1126, %v1502
      %v1545 = vmul.f32 %v1127, %v1502
      %v1546 = vmul.f32 %v1128, %v1506
      %v1547 = vmul.f32 %v1129, %v1506
      %v1548 = vmul.f32 %v1130, %v1510
      %v1549 = vmul.f32 %v1131, %v1510
      %v1550 = vmul.f32 %v1132, %v1514
      %v1551 = vmul.f32 %v1133, %v1514
      %v1552 = vmul.f32 %v1134, %v1518
      %v1553 = vmul.f32 %v1135, %v1518
      %v1554 = vmul.f32 %v1136, %v1522
      %v1555 = vmul.f32 %v1137, %v1522
      %1588 = vrot.lane.b32.xlu0 %v1524, 127
      %v1589 = vpop.permute.xlu0 %1588
      %1590 = vrot.lane.b32.xlu0 %v1525, 127
      %v1591 = vpop.permute.xlu0 %1590
      %1592 = vrot.lane.b32.xlu0 %v1526, 127
      %v1593 = vpop.permute.xlu0 %1592
      %1594 = vrot.lane.b32.xlu0 %v1527, 127
      %v1595 = vpop.permute.xlu0 %1594
      %1596 = vrot.lane.b32.xlu0 %v1528, 127
      %v1597 = vpop.permute.xlu0 %1596
      %1598 = vrot.lane.b32.xlu0 %v1529, 127
      %v1599 = vpop.permute.xlu0 %1598
      %1600 = vrot.lane.b32.xlu0 %v1530, 127
      %v1601 = vpop.permute.xlu0 %1600
      %1602 = vrot.lane.b32.xlu0 %v1531, 127
      %v1603 = vpop.permute.xlu0 %1602
      %1604 = vrot.lane.b32.xlu0 %v1532, 127
      %v1605 = vpop.permute.xlu0 %1604
      %1606 = vrot.lane.b32.xlu0 %v1533, 127
      %v1607 = vpop.permute.xlu0 %1606
      %1608 = vrot.lane.b32.xlu0 %v1534, 127
      %v1609 = vpop.permute.xlu0 %1608
      %1610 = vrot.lane.b32.xlu0 %v1535, 127
      %v1611 = vpop.permute.xlu0 %1610
      %1612 = vrot.lane.b32.xlu0 %v1536, 127
      %v1613 = vpop.permute.xlu0 %1612
      %1614 = vrot.lane.b32.xlu0 %v1537, 127
      %v1615 = vpop.permute.xlu0 %1614
      %1616 = vrot.lane.b32.xlu0 %v1538, 127
      %v1617 = vpop.permute.xlu0 %1616
      %1618 = vrot.lane.b32.xlu0 %v1539, 127
      %v1619 = vpop.permute.xlu0 %1618
      %1620 = vrot.lane.b32.xlu0 %v1540, 127
      %v1621 = vpop.permute.xlu0 %1620
      %1622 = vrot.lane.b32.xlu0 %v1541, 127
      %v1623 = vpop.permute.xlu0 %1622
      %1624 = vrot.lane.b32.xlu0 %v1542, 127
      %v1625 = vpop.permute.xlu0 %1624
      %1626 = vrot.lane.b32.xlu0 %v1543, 127
      %v1627 = vpop.permute.xlu0 %1626
      %1628 = vrot.lane.b32.xlu0 %v1544, 127
      %v1629 = vpop.permute.xlu0 %1628
      %1630 = vrot.lane.b32.xlu0 %v1545, 127
      %v1631 = vpop.permute.xlu0 %1630
      %1632 = vrot.lane.b32.xlu0 %v1546, 127
      %v1633 = vpop.permute.xlu0 %1632
      %1634 = vrot.lane.b32.xlu0 %v1547, 127
      %v1635 = vpop.permute.xlu0 %1634
      %1636 = vrot.lane.b32.xlu0 %v1548, 127
      %v1637 = vpop.permute.xlu0 %1636
      %1638 = vrot.lane.b32.xlu0 %v1549, 127
      %v1639 = vpop.permute.xlu0 %1638
      %1640 = vrot.lane.b32.xlu0 %v1550, 127
      %v1641 = vpop.permute.xlu0 %1640
      %1642 = vrot.lane.b32.xlu0 %v1551, 127
      %v1643 = vpop.permute.xlu0 %1642
      %1644 = vrot.lane.b32.xlu0 %v1552, 127
      %v1645 = vpop.permute.xlu0 %1644
      %1646 = vrot.lane.b32.xlu0 %v1553, 127
      %v1647 = vpop.permute.xlu0 %1646
      %1648 = vrot.lane.b32.xlu0 %v1554, 127
      %v1649 = vpop.permute.xlu0 %1648
      %1650 = vrot.lane.b32.xlu0 %v1555, 127
      %v1651 = vpop.permute.xlu0 %1650
      %v1684 = vadd.f32 %v1331, %v1589
      %v1685 = vadd.f32 %v1332, %v1591
      %v1686 = vadd.f32 %v1333, %v1593
      %v1687 = vadd.f32 %v1334, %v1595
      %v1688 = vadd.f32 %v1335, %v1597
      %v1689 = vadd.f32 %v1336, %v1599
      %v1690 = vadd.f32 %v1337, %v1601
      %v1691 = vadd.f32 %v1338, %v1603
      %v1692 = vadd.f32 %v1339, %v1605
      %v1693 = vadd.f32 %v1340, %v1607
      %v1694 = vadd.f32 %v1341, %v1609
      %v1695 = vadd.f32 %v1342, %v1611
      %v1696 = vadd.f32 %v1343, %v1613
      %v1697 = vadd.f32 %v1344, %v1615
      %v1698 = vadd.f32 %v1345, %v1617
      %v1699 = vadd.f32 %v1346, %v1619
      %v1700 = vadd.f32 %v1347, %v1621
      %v1701 = vadd.f32 %v1348, %v1623
      %v1702 = vadd.f32 %v1349, %v1625
      %v1703 = vadd.f32 %v1350, %v1627
      %v1704 = vadd.f32 %v1351, %v1629
      %v1705 = vadd.f32 %v1352, %v1631
      %v1706 = vadd.f32 %v1353, %v1633
      %v1707 = vadd.f32 %v1354, %v1635
      %v1708 = vadd.f32 %v1355, %v1637
      %v1709 = vadd.f32 %v1356, %v1639
      %v1710 = vadd.f32 %v1357, %v1641
      %v1711 = vadd.f32 %v1358, %v1643
      %v1712 = vadd.f32 %v1359, %v1645
      %v1713 = vadd.f32 %v1360, %v1647
      %v1714 = vadd.f32 %v1361, %v1649
      %v1715 = vadd.f32 %v1362, %v1651
      %s1716 = scalar_lea.vmem %s1, 80
      %v1717 = vld [vmem:[%s1716] sm:$0x1]
      %v1718 = vld [vmem:[%s1716 + $0x1] sm:$0x1]
      %v1719 = vld [vmem:[%s1716 + $0x2] sm:$0x1]
      %v1720 = vld [vmem:[%s1716 + $0x3] sm:$0x1]
      %v1721 = vld [vmem:[%s1716 + $0x4] sm:$0x1]
      %v1722 = vld [vmem:[%s1716 + $0x5] sm:$0x1]
      %v1723 = vld [vmem:[%s1716 + $0x6] sm:$0x1]
      %v1724 = vld [vmem:[%s1716 + $0x7] sm:$0x1]
      %v1725 = vld [vmem:[%s1716 + $0x8] sm:$0x1]
      %v1726 = vld [vmem:[%s1716 + $0x9] sm:$0x1]
      %v1727 = vld [vmem:[%s1716 + $0xa] sm:$0x1]
      %v1728 = vld [vmem:[%s1716 + $0xb] sm:$0x1]
      %v1729 = vld [vmem:[%s1716 + $0xc] sm:$0x1]
      %v1730 = vld [vmem:[%s1716 + $0xd] sm:$0x1]
      %v1731 = vld [vmem:[%s1716 + $0xe] sm:$0x1]
      %v1732 = vld [vmem:[%s1716 + $0xf] sm:$0x1]
      %v1749 = vlaneseq
      %v1750 = vshrl.u32 %v1749, 7
      %v1751 = vsub.s32 0, %v1750
      %v1752 = vrot.slane %v1717, %v1751
      %v1753 = vlaneseq
      %v1754 = vshrl.u32 %v1753, 7
      %v1755 = vsub.s32 0, %v1754
      %v1756 = vrot.slane %v1718, %v1755
      %v1757 = vlaneseq
      %v1758 = vshrl.u32 %v1757, 7
      %v1759 = vsub.s32 0, %v1758
      %v1760 = vrot.slane %v1719, %v1759
      %v1761 = vlaneseq
      %v1762 = vshrl.u32 %v1761, 7
      %v1763 = vsub.s32 0, %v1762
      %v1764 = vrot.slane %v1720, %v1763
      %v1765 = vlaneseq
      %v1766 = vshrl.u32 %v1765, 7
      %v1767 = vsub.s32 0, %v1766
      %v1768 = vrot.slane %v1721, %v1767
      %v1769 = vlaneseq
      %v1770 = vshrl.u32 %v1769, 7
      %v1771 = vsub.s32 0, %v1770
      %v1772 = vrot.slane %v1722, %v1771
      %v1773 = vlaneseq
      %v1774 = vshrl.u32 %v1773, 7
      %v1775 = vsub.s32 0, %v1774
      %v1776 = vrot.slane %v1723, %v1775
      %v1777 = vlaneseq
      %v1778 = vshrl.u32 %v1777, 7
      %v1779 = vsub.s32 0, %v1778
      %v1780 = vrot.slane %v1724, %v1779
      %v1781 = vlaneseq
      %v1782 = vshrl.u32 %v1781, 7
      %v1783 = vsub.s32 0, %v1782
      %v1784 = vrot.slane %v1725, %v1783
      %v1785 = vlaneseq
      %v1786 = vshrl.u32 %v1785, 7
      %v1787 = vsub.s32 0, %v1786
      %v1788 = vrot.slane %v1726, %v1787
      %v1789 = vlaneseq
      %v1790 = vshrl.u32 %v1789, 7
      %v1791 = vsub.s32 0, %v1790
      %v1792 = vrot.slane %v1727, %v1791
      %v1793 = vlaneseq
      %v1794 = vshrl.u32 %v1793, 7
      %v1795 = vsub.s32 0, %v1794
      %v1796 = vrot.slane %v1728, %v1795
      %v1797 = vlaneseq
      %v1798 = vshrl.u32 %v1797, 7
      %v1799 = vsub.s32 0, %v1798
      %v1800 = vrot.slane %v1729, %v1799
      %v1801 = vlaneseq
      %v1802 = vshrl.u32 %v1801, 7
      %v1803 = vsub.s32 0, %v1802
      %v1804 = vrot.slane %v1730, %v1803
      %v1805 = vlaneseq
      %v1806 = vshrl.u32 %v1805, 7
      %v1807 = vsub.s32 0, %v1806
      %v1808 = vrot.slane %v1731, %v1807
      %v1809 = vlaneseq
      %v1810 = vshrl.u32 %v1809, 7
      %v1811 = vsub.s32 0, %v1810
      %v1812 = vrot.slane %v1732, %v1811
      %1813 = vset.pattern.permute.xlu0 0
      %1814 = vperm.xlu0 %1813, %v1752
      %v1815 = vpop.permute.xlu0 %1814
      %1817 = vset.pattern.permute.xlu0 0
      %1818 = vperm.xlu0 %1817, %v1756
      %v1819 = vpop.permute.xlu0 %1818
      %1821 = vset.pattern.permute.xlu0 0
      %1822 = vperm.xlu0 %1821, %v1760
      %v1823 = vpop.permute.xlu0 %1822
      %1825 = vset.pattern.permute.xlu0 0
      %1826 = vperm.xlu0 %1825, %v1764
      %v1827 = vpop.permute.xlu0 %1826
      %1829 = vset.pattern.permute.xlu0 0
      %1830 = vperm.xlu0 %1829, %v1768
      %v1831 = vpop.permute.xlu0 %1830
      %1833 = vset.pattern.permute.xlu0 0
      %1834 = vperm.xlu0 %1833, %v1772
      %v1835 = vpop.permute.xlu0 %1834
      %1837 = vset.pattern.permute.xlu0 0
      %1838 = vperm.xlu0 %1837, %v1776
      %v1839 = vpop.permute.xlu0 %1838
      %1841 = vset.pattern.permute.xlu0 0
      %1842 = vperm.xlu0 %1841, %v1780
      %v1843 = vpop.permute.xlu0 %1842
      %1845 = vset.pattern.permute.xlu0 0
      %1846 = vperm.xlu0 %1845, %v1784
      %v1847 = vpop.permute.xlu0 %1846
      %1849 = vset.pattern.permute.xlu0 0
      %1850 = vperm.xlu0 %1849, %v1788
      %v1851 = vpop.permute.xlu0 %1850
      %1853 = vset.pattern.permute.xlu0 0
      %1854 = vperm.xlu0 %1853, %v1792
      %v1855 = vpop.permute.xlu0 %1854
      %1857 = vset.pattern.permute.xlu0 0
      %1858 = vperm.xlu0 %1857, %v1796
      %v1859 = vpop.permute.xlu0 %1858
      %1861 = vset.pattern.permute.xlu0 0
      %1862 = vperm.xlu0 %1861, %v1800
      %v1863 = vpop.permute.xlu0 %1862
      %1865 = vset.pattern.permute.xlu0 0
      %1866 = vperm.xlu0 %1865, %v1804
      %v1867 = vpop.permute.xlu0 %1866
      %1869 = vset.pattern.permute.xlu0 0
      %1870 = vperm.xlu0 %1869, %v1808
      %v1871 = vpop.permute.xlu0 %1870
      %1873 = vset.pattern.permute.xlu0 0
      %1874 = vperm.xlu0 %1873, %v1812
      %v1875 = vpop.permute.xlu0 %1874
      %v1877 = vmul.f32 %v1106, %v1815
      %v1878 = vmul.f32 %v1107, %v1815
      %v1879 = vmul.f32 %v1108, %v1819
      %v1880 = vmul.f32 %v1109, %v1819
      %v1881 = vmul.f32 %v1110, %v1823
      %v1882 = vmul.f32 %v1111, %v1823
      %v1883 = vmul.f32 %v1112, %v1827
      %v1884 = vmul.f32 %v1113, %v1827
      %v1885 = vmul.f32 %v1114, %v1831
      %v1886 = vmul.f32 %v1115, %v1831
      %v1887 = vmul.f32 %v1116, %v1835
      %v1888 = vmul.f32 %v1117, %v1835
      %v1889 = vmul.f32 %v1118, %v1839
      %v1890 = vmul.f32 %v1119, %v1839
      %v1891 = vmul.f32 %v1120, %v1843
      %v1892 = vmul.f32 %v1121, %v1843
      %v1893 = vmul.f32 %v1122, %v1847
      %v1894 = vmul.f32 %v1123, %v1847
      %v1895 = vmul.f32 %v1124, %v1851
      %v1896 = vmul.f32 %v1125, %v1851
      %v1897 = vmul.f32 %v1126, %v1855
      %v1898 = vmul.f32 %v1127, %v1855
      %v1899 = vmul.f32 %v1128, %v1859
      %v1900 = vmul.f32 %v1129, %v1859
      %v1901 = vmul.f32 %v1130, %v1863
      %v1902 = vmul.f32 %v1131, %v1863
      %v1903 = vmul.f32 %v1132, %v1867
      %v1904 = vmul.f32 %v1133, %v1867
      %v1905 = vmul.f32 %v1134, %v1871
      %v1906 = vmul.f32 %v1135, %v1871
      %v1907 = vmul.f32 %v1136, %v1875
      %v1908 = vmul.f32 %v1137, %v1875
      %1941 = vrot.lane.b32.xlu0 %v1877, 126
      %v1942 = vpop.permute.xlu0 %1941
      %1943 = vrot.lane.b32.xlu0 %v1878, 126
      %v1944 = vpop.permute.xlu0 %1943
      %1945 = vrot.lane.b32.xlu0 %v1879, 126
      %v1946 = vpop.permute.xlu0 %1945
      %1947 = vrot.lane.b32.xlu0 %v1880, 126
      %v1948 = vpop.permute.xlu0 %1947
      %1949 = vrot.lane.b32.xlu0 %v1881, 126
      %v1950 = vpop.permute.xlu0 %1949
      %1951 = vrot.lane.b32.xlu0 %v1882, 126
      %v1952 = vpop.permute.xlu0 %1951
      %1953 = vrot.lane.b32.xlu0 %v1883, 126
      %v1954 = vpop.permute.xlu0 %1953
      %1955 = vrot.lane.b32.xlu0 %v1884, 126
      %v1956 = vpop.permute.xlu0 %1955
      %1957 = vrot.lane.b32.xlu0 %v1885, 126
      %v1958 = vpop.permute.xlu0 %1957
      %1959 = vrot.lane.b32.xlu0 %v1886, 126
      %v1960 = vpop.permute.xlu0 %1959
      %1961 = vrot.lane.b32.xlu0 %v1887, 126
      %v1962 = vpop.permute.xlu0 %1961
      %1963 = vrot.lane.b32.xlu0 %v1888, 126
      %v1964 = vpop.permute.xlu0 %1963
      %1965 = vrot.lane.b32.xlu0 %v1889, 126
      %v1966 = vpop.permute.xlu0 %1965
      %1967 = vrot.lane.b32.xlu0 %v1890, 126
      %v1968 = vpop.permute.xlu0 %1967
      %1969 = vrot.lane.b32.xlu0 %v1891, 126
      %v1970 = vpop.permute.xlu0 %1969
      %1971 = vrot.lane.b32.xlu0 %v1892, 126
      %v1972 = vpop.permute.xlu0 %1971
      %1973 = vrot.lane.b32.xlu0 %v1893, 126
      %v1974 = vpop.permute.xlu0 %1973
      %1975 = vrot.lane.b32.xlu0 %v1894, 126
      %v1976 = vpop.permute.xlu0 %1975
      %1977 = vrot.lane.b32.xlu0 %v1895, 126
      %v1978 = vpop.permute.xlu0 %1977
      %1979 = vrot.lane.b32.xlu0 %v1896, 126
      %v1980 = vpop.permute.xlu0 %1979
      %1981 = vrot.lane.b32.xlu0 %v1897, 126
      %v1982 = vpop.permute.xlu0 %1981
      %1983 = vrot.lane.b32.xlu0 %v1898, 126
      %v1984 = vpop.permute.xlu0 %1983
      %1985 = vrot.lane.b32.xlu0 %v1899, 126
      %v1986 = vpop.permute.xlu0 %1985
      %1987 = vrot.lane.b32.xlu0 %v1900, 126
      %v1988 = vpop.permute.xlu0 %1987
      %1989 = vrot.lane.b32.xlu0 %v1901, 126
      %v1990 = vpop.permute.xlu0 %1989
      %1991 = vrot.lane.b32.xlu0 %v1902, 126
      %v1992 = vpop.permute.xlu0 %1991
      %1993 = vrot.lane.b32.xlu0 %v1903, 126
      %v1994 = vpop.permute.xlu0 %1993
      %1995 = vrot.lane.b32.xlu0 %v1904, 126
      %v1996 = vpop.permute.xlu0 %1995
      %1997 = vrot.lane.b32.xlu0 %v1905, 126
      %v1998 = vpop.permute.xlu0 %1997
      %1999 = vrot.lane.b32.xlu0 %v1906, 126
      %v2000 = vpop.permute.xlu0 %1999
      %2001 = vrot.lane.b32.xlu0 %v1907, 126
      %v2002 = vpop.permute.xlu0 %2001
      %2003 = vrot.lane.b32.xlu0 %v1908, 126
      %v2004 = vpop.permute.xlu0 %2003
      %v2037 = vadd.f32 %v1684, %v1942
      %v2038 = vadd.f32 %v1685, %v1944
      %v2039 = vadd.f32 %v1686, %v1946
      %v2040 = vadd.f32 %v1687, %v1948
      %v2041 = vadd.f32 %v1688, %v1950
      %v2042 = vadd.f32 %v1689, %v1952
      %v2043 = vadd.f32 %v1690, %v1954
      %v2044 = vadd.f32 %v1691, %v1956
      %v2045 = vadd.f32 %v1692, %v1958
      %v2046 = vadd.f32 %v1693, %v1960
      %v2047 = vadd.f32 %v1694, %v1962
      %v2048 = vadd.f32 %v1695, %v1964
      %v2049 = vadd.f32 %v1696, %v1966
      %v2050 = vadd.f32 %v1697, %v1968
      %v2051 = vadd.f32 %v1698, %v1970
      %v2052 = vadd.f32 %v1699, %v1972
      %v2053 = vadd.f32 %v1700, %v1974
      %v2054 = vadd.f32 %v1701, %v1976
      %v2055 = vadd.f32 %v1702, %v1978
      %v2056 = vadd.f32 %v1703, %v1980
      %v2057 = vadd.f32 %v1704, %v1982
      %v2058 = vadd.f32 %v1705, %v1984
      %v2059 = vadd.f32 %v1706, %v1986
      %v2060 = vadd.f32 %v1707, %v1988
      %v2061 = vadd.f32 %v1708, %v1990
      %v2062 = vadd.f32 %v1709, %v1992
      %v2063 = vadd.f32 %v1710, %v1994
      %v2064 = vadd.f32 %v1711, %v1996
      %v2065 = vadd.f32 %v1712, %v1998
      %v2066 = vadd.f32 %v1713, %v2000
      %v2067 = vadd.f32 %v1714, %v2002
      %v2068 = vadd.f32 %v1715, %v2004
      %v2069 = vld [vmem:[%s138 + $0x2] sm:$0xff]
      %v2070 = vld [vmem:[%s138 + $0xa] sm:$0xff]
      %v2071 = vld [vmem:[%s138 + $0x1a] sm:$0xff]
      %v2072 = vld [vmem:[%s138 + $0x22] sm:$0xff]
      %v2073 = vld [vmem:[%s138 + $0x32] sm:$0xff]
      %v2074 = vld [vmem:[%s138 + $0x3a] sm:$0xff]
      %v2075 = vld [vmem:[%s138 + $0x4a] sm:$0xff]
      %v2076 = vld [vmem:[%s138 + $0x52] sm:$0xff]
      %v2077 = vld [vmem:[%s138 + $0x62] sm:$0xff]
      %v2078 = vld [vmem:[%s138 + $0x6a] sm:$0xff]
      %v2079 = vld [vmem:[%s138 + $0x7a] sm:$0xff]
      %v2080 = vld [vmem:[%s138 + $0x82] sm:$0xff]
      %v2081 = vld [vmem:[%s138 + $0x92] sm:$0xff]
      %v2082 = vld [vmem:[%s138 + $0x9a] sm:$0xff]
      %v2083 = vld [vmem:[%s138 + $0xaa] sm:$0xff]
      %v2084 = vld [vmem:[%s138 + $0xb2] sm:$0xff]
      %v2085 = vld [vmem:[%s138 + $0xc2] sm:$0xff]
      %v2086 = vld [vmem:[%s138 + $0xca] sm:$0xff]
      %v2087 = vld [vmem:[%s138 + $0xda] sm:$0xff]
      %v2088 = vld [vmem:[%s138 + $0xe2] sm:$0xff]
      %v2089 = vld [vmem:[%s138 + $0xf2] sm:$0xff]
      %v2090 = vld [vmem:[%s138 + $0xfa] sm:$0xff]
      %v2091 = vld [vmem:[%s138 + $0x10a] sm:$0xff]
      %v2092 = vld [vmem:[%s138 + $0x112] sm:$0xff]
      %v2093 = vld [vmem:[%s138 + $0x122] sm:$0xff]
      %v2094 = vld [vmem:[%s138 + $0x12a] sm:$0xff]
      %v2095 = vld [vmem:[%s138 + $0x13a] sm:$0xff]
      %v2096 = vld [vmem:[%s138 + $0x142] sm:$0xff]
      %v2097 = vld [vmem:[%s138 + $0x152] sm:$0xff]
      %v2098 = vld [vmem:[%s138 + $0x15a] sm:$0xff]
      %v2099 = vld [vmem:[%s138 + $0x16a] sm:$0xff]
      %v2100 = vld [vmem:[%s138 + $0x172] sm:$0xff]
      %s2101 = scalar_lea.vmem %s1, 96
      %v2102 = vld [vmem:[%s2101] sm:$0x1]
      %v2103 = vld [vmem:[%s2101 + $0x1] sm:$0x1]
      %v2104 = vld [vmem:[%s2101 + $0x2] sm:$0x1]
      %v2105 = vld [vmem:[%s2101 + $0x3] sm:$0x1]
      %v2106 = vld [vmem:[%s2101 + $0x4] sm:$0x1]
      %v2107 = vld [vmem:[%s2101 + $0x5] sm:$0x1]
      %v2108 = vld [vmem:[%s2101 + $0x6] sm:$0x1]
      %v2109 = vld [vmem:[%s2101 + $0x7] sm:$0x1]
      %v2110 = vld [vmem:[%s2101 + $0x8] sm:$0x1]
      %v2111 = vld [vmem:[%s2101 + $0x9] sm:$0x1]
      %v2112 = vld [vmem:[%s2101 + $0xa] sm:$0x1]
      %v2113 = vld [vmem:[%s2101 + $0xb] sm:$0x1]
      %v2114 = vld [vmem:[%s2101 + $0xc] sm:$0x1]
      %v2115 = vld [vmem:[%s2101 + $0xd] sm:$0x1]
      %v2116 = vld [vmem:[%s2101 + $0xe] sm:$0x1]
      %v2117 = vld [vmem:[%s2101 + $0xf] sm:$0x1]
      %v2134 = vlaneseq
      %v2135 = vshrl.u32 %v2134, 7
      %v2136 = vsub.s32 0, %v2135
      %v2137 = vrot.slane %v2102, %v2136
      %v2138 = vlaneseq
      %v2139 = vshrl.u32 %v2138, 7
      %v2140 = vsub.s32 0, %v2139
      %v2141 = vrot.slane %v2103, %v2140
      %v2142 = vlaneseq
      %v2143 = vshrl.u32 %v2142, 7
      %v2144 = vsub.s32 0, %v2143
      %v2145 = vrot.slane %v2104, %v2144
      %v2146 = vlaneseq
      %v2147 = vshrl.u32 %v2146, 7
      %v2148 = vsub.s32 0, %v2147
      %v2149 = vrot.slane %v2105, %v2148
      %v2150 = vlaneseq
      %v2151 = vshrl.u32 %v2150, 7
      %v2152 = vsub.s32 0, %v2151
      %v2153 = vrot.slane %v2106, %v2152
      %v2154 = vlaneseq
      %v2155 = vshrl.u32 %v2154, 7
      %v2156 = vsub.s32 0, %v2155
      %v2157 = vrot.slane %v2107, %v2156
      %v2158 = vlaneseq
      %v2159 = vshrl.u32 %v2158, 7
      %v2160 = vsub.s32 0, %v2159
      %v2161 = vrot.slane %v2108, %v2160
      %v2162 = vlaneseq
      %v2163 = vshrl.u32 %v2162, 7
      %v2164 = vsub.s32 0, %v2163
      %v2165 = vrot.slane %v2109, %v2164
      %v2166 = vlaneseq
      %v2167 = vshrl.u32 %v2166, 7
      %v2168 = vsub.s32 0, %v2167
      %v2169 = vrot.slane %v2110, %v2168
      %v2170 = vlaneseq
      %v2171 = vshrl.u32 %v2170, 7
      %v2172 = vsub.s32 0, %v2171
      %v2173 = vrot.slane %v2111, %v2172
      %v2174 = vlaneseq
      %v2175 = vshrl.u32 %v2174, 7
      %v2176 = vsub.s32 0, %v2175
      %v2177 = vrot.slane %v2112, %v2176
      %v2178 = vlaneseq
      %v2179 = vshrl.u32 %v2178, 7
      %v2180 = vsub.s32 0, %v2179
      %v2181 = vrot.slane %v2113, %v2180
      %v2182 = vlaneseq
      %v2183 = vshrl.u32 %v2182, 7
      %v2184 = vsub.s32 0, %v2183
      %v2185 = vrot.slane %v2114, %v2184
      %v2186 = vlaneseq
      %v2187 = vshrl.u32 %v2186, 7
      %v2188 = vsub.s32 0, %v2187
      %v2189 = vrot.slane %v2115, %v2188
      %v2190 = vlaneseq
      %v2191 = vshrl.u32 %v2190, 7
      %v2192 = vsub.s32 0, %v2191
      %v2193 = vrot.slane %v2116, %v2192
      %v2194 = vlaneseq
      %v2195 = vshrl.u32 %v2194, 7
      %v2196 = vsub.s32 0, %v2195
      %v2197 = vrot.slane %v2117, %v2196
      %2198 = vset.pattern.permute.xlu0 0
      %2199 = vperm.xlu0 %2198, %v2137
      %v2200 = vpop.permute.xlu0 %2199
      %2202 = vset.pattern.permute.xlu0 0
      %2203 = vperm.xlu0 %2202, %v2141
      %v2204 = vpop.permute.xlu0 %2203
      %2206 = vset.pattern.permute.xlu0 0
      %2207 = vperm.xlu0 %2206, %v2145
      %v2208 = vpop.permute.xlu0 %2207
      %2210 = vset.pattern.permute.xlu0 0
      %2211 = vperm.xlu0 %2210, %v2149
      %v2212 = vpop.permute.xlu0 %2211
      %2214 = vset.pattern.permute.xlu0 0
      %2215 = vperm.xlu0 %2214, %v2153
      %v2216 = vpop.permute.xlu0 %2215
      %2218 = vset.pattern.permute.xlu0 0
      %2219 = vperm.xlu0 %2218, %v2157
      %v2220 = vpop.permute.xlu0 %2219
      %2222 = vset.pattern.permute.xlu0 0
      %2223 = vperm.xlu0 %2222, %v2161
      %v2224 = vpop.permute.xlu0 %2223
      %2226 = vset.pattern.permute.xlu0 0
      %2227 = vperm.xlu0 %2226, %v2165
      %v2228 = vpop.permute.xlu0 %2227
      %2230 = vset.pattern.permute.xlu0 0
      %2231 = vperm.xlu0 %2230, %v2169
      %v2232 = vpop.permute.xlu0 %2231
      %2234 = vset.pattern.permute.xlu0 0
      %2235 = vperm.xlu0 %2234, %v2173
      %v2236 = vpop.permute.xlu0 %2235
      %2238 = vset.pattern.permute.xlu0 0
      %2239 = vperm.xlu0 %2238, %v2177
      %v2240 = vpop.permute.xlu0 %2239
      %2242 = vset.pattern.permute.xlu0 0
      %2243 = vperm.xlu0 %2242, %v2181
      %v2244 = vpop.permute.xlu0 %2243
      %2246 = vset.pattern.permute.xlu0 0
      %2247 = vperm.xlu0 %2246, %v2185
      %v2248 = vpop.permute.xlu0 %2247
      %2250 = vset.pattern.permute.xlu0 0
      %2251 = vperm.xlu0 %2250, %v2189
      %v2252 = vpop.permute.xlu0 %2251
      %2254 = vset.pattern.permute.xlu0 0
      %2255 = vperm.xlu0 %2254, %v2193
      %v2256 = vpop.permute.xlu0 %2255
      %2258 = vset.pattern.permute.xlu0 0
      %2259 = vperm.xlu0 %2258, %v2197
      %v2260 = vpop.permute.xlu0 %2259
      %v2262 = vmul.f32 %v2069, %v2200
      %v2263 = vmul.f32 %v2070, %v2200
      %v2264 = vmul.f32 %v2071, %v2204
      %v2265 = vmul.f32 %v2072, %v2204
      %v2266 = vmul.f32 %v2073, %v2208
      %v2267 = vmul.f32 %v2074, %v2208
      %v2268 = vmul.f32 %v2075, %v2212
      %v2269 = vmul.f32 %v2076, %v2212
      %v2270 = vmul.f32 %v2077, %v2216
      %v2271 = vmul.f32 %v2078, %v2216
      %v2272 = vmul.f32 %v2079, %v2220
      %v2273 = vmul.f32 %v2080, %v2220
      %v2274 = vmul.f32 %v2081, %v2224
      %v2275 = vmul.f32 %v2082, %v2224
      %v2276 = vmul.f32 %v2083, %v2228
      %v2277 = vmul.f32 %v2084, %v2228
      %v2278 = vmul.f32 %v2085, %v2232
      %v2279 = vmul.f32 %v2086, %v2232
      %v2280 = vmul.f32 %v2087, %v2236
      %v2281 = vmul.f32 %v2088, %v2236
      %v2282 = vmul.f32 %v2089, %v2240
      %v2283 = vmul.f32 %v2090, %v2240
      %v2284 = vmul.f32 %v2091, %v2244
      %v2285 = vmul.f32 %v2092, %v2244
      %v2286 = vmul.f32 %v2093, %v2248
      %v2287 = vmul.f32 %v2094, %v2248
      %v2288 = vmul.f32 %v2095, %v2252
      %v2289 = vmul.f32 %v2096, %v2252
      %v2290 = vmul.f32 %v2097, %v2256
      %v2291 = vmul.f32 %v2098, %v2256
      %v2292 = vmul.f32 %v2099, %v2260
      %v2293 = vmul.f32 %v2100, %v2260
      %v2294 = vadd.f32 %v2037, %v2262
      %v2295 = vadd.f32 %v2038, %v2263
      %v2296 = vadd.f32 %v2039, %v2264
      %v2297 = vadd.f32 %v2040, %v2265
      %v2298 = vadd.f32 %v2041, %v2266
      %v2299 = vadd.f32 %v2042, %v2267
      %v2300 = vadd.f32 %v2043, %v2268
      %v2301 = vadd.f32 %v2044, %v2269
      %v2302 = vadd.f32 %v2045, %v2270
      %v2303 = vadd.f32 %v2046, %v2271
      %v2304 = vadd.f32 %v2047, %v2272
      %v2305 = vadd.f32 %v2048, %v2273
      %v2306 = vadd.f32 %v2049, %v2274
      %v2307 = vadd.f32 %v2050, %v2275
      %v2308 = vadd.f32 %v2051, %v2276
      %v2309 = vadd.f32 %v2052, %v2277
      %v2310 = vadd.f32 %v2053, %v2278
      %v2311 = vadd.f32 %v2054, %v2279
      %v2312 = vadd.f32 %v2055, %v2280
      %v2313 = vadd.f32 %v2056, %v2281
      %v2314 = vadd.f32 %v2057, %v2282
      %v2315 = vadd.f32 %v2058, %v2283
      %v2316 = vadd.f32 %v2059, %v2284
      %v2317 = vadd.f32 %v2060, %v2285
      %v2318 = vadd.f32 %v2061, %v2286
      %v2319 = vadd.f32 %v2062, %v2287
      %v2320 = vadd.f32 %v2063, %v2288
      %v2321 = vadd.f32 %v2064, %v2289
      %v2322 = vadd.f32 %v2065, %v2290
      %v2323 = vadd.f32 %v2066, %v2291
      %v2324 = vadd.f32 %v2067, %v2292
      %v2325 = vadd.f32 %v2068, %v2293
      %s2326 = scalar_lea.vmem %s1, 112
      %v2327 = vld [vmem:[%s2326] sm:$0x1]
      %v2328 = vld [vmem:[%s2326 + $0x1] sm:$0x1]
      %v2329 = vld [vmem:[%s2326 + $0x2] sm:$0x1]
      %v2330 = vld [vmem:[%s2326 + $0x3] sm:$0x1]
      %v2331 = vld [vmem:[%s2326 + $0x4] sm:$0x1]
      %v2332 = vld [vmem:[%s2326 + $0x5] sm:$0x1]
      %v2333 = vld [vmem:[%s2326 + $0x6] sm:$0x1]
      %v2334 = vld [vmem:[%s2326 + $0x7] sm:$0x1]
      %v2335 = vld [vmem:[%s2326 + $0x8] sm:$0x1]
      %v2336 = vld [vmem:[%s2326 + $0x9] sm:$0x1]
      %v2337 = vld [vmem:[%s2326 + $0xa] sm:$0x1]
      %v2338 = vld [vmem:[%s2326 + $0xb] sm:$0x1]
      %v2339 = vld [vmem:[%s2326 + $0xc] sm:$0x1]
      %v2340 = vld [vmem:[%s2326 + $0xd] sm:$0x1]
      %v2341 = vld [vmem:[%s2326 + $0xe] sm:$0x1]
      %v2342 = vld [vmem:[%s2326 + $0xf] sm:$0x1]
      %v2359 = vlaneseq
      %v2360 = vshrl.u32 %v2359, 7
      %v2361 = vsub.s32 0, %v2360
      %v2362 = vrot.slane %v2327, %v2361
      %v2363 = vlaneseq
      %v2364 = vshrl.u32 %v2363, 7
      %v2365 = vsub.s32 0, %v2364
      %v2366 = vrot.slane %v2328, %v2365
      %v2367 = vlaneseq
      %v2368 = vshrl.u32 %v2367, 7
      %v2369 = vsub.s32 0, %v2368
      %v2370 = vrot.slane %v2329, %v2369
      %v2371 = vlaneseq
      %v2372 = vshrl.u32 %v2371, 7
      %v2373 = vsub.s32 0, %v2372
      %v2374 = vrot.slane %v2330, %v2373
      %v2375 = vlaneseq
      %v2376 = vshrl.u32 %v2375, 7
      %v2377 = vsub.s32 0, %v2376
      %v2378 = vrot.slane %v2331, %v2377
      %v2379 = vlaneseq
      %v2380 = vshrl.u32 %v2379, 7
      %v2381 = vsub.s32 0, %v2380
      %v2382 = vrot.slane %v2332, %v2381
      %v2383 = vlaneseq
      %v2384 = vshrl.u32 %v2383, 7
      %v2385 = vsub.s32 0, %v2384
      %v2386 = vrot.slane %v2333, %v2385
      %v2387 = vlaneseq
      %v2388 = vshrl.u32 %v2387, 7
      %v2389 = vsub.s32 0, %v2388
      %v2390 = vrot.slane %v2334, %v2389
      %v2391 = vlaneseq
      %v2392 = vshrl.u32 %v2391, 7
      %v2393 = vsub.s32 0, %v2392
      %v2394 = vrot.slane %v2335, %v2393
      %v2395 = vlaneseq
      %v2396 = vshrl.u32 %v2395, 7
      %v2397 = vsub.s32 0, %v2396
      %v2398 = vrot.slane %v2336, %v2397
      %v2399 = vlaneseq
      %v2400 = vshrl.u32 %v2399, 7
      %v2401 = vsub.s32 0, %v2400
      %v2402 = vrot.slane %v2337, %v2401
      %v2403 = vlaneseq
      %v2404 = vshrl.u32 %v2403, 7
      %v2405 = vsub.s32 0, %v2404
      %v2406 = vrot.slane %v2338, %v2405
      %v2407 = vlaneseq
      %v2408 = vshrl.u32 %v2407, 7
      %v2409 = vsub.s32 0, %v2408
      %v2410 = vrot.slane %v2339, %v2409
      %v2411 = vlaneseq
      %v2412 = vshrl.u32 %v2411, 7
      %v2413 = vsub.s32 0, %v2412
      %v2414 = vrot.slane %v2340, %v2413
      %v2415 = vlaneseq
      %v2416 = vshrl.u32 %v2415, 7
      %v2417 = vsub.s32 0, %v2416
      %v2418 = vrot.slane %v2341, %v2417
      %v2419 = vlaneseq
      %v2420 = vshrl.u32 %v2419, 7
      %v2421 = vsub.s32 0, %v2420
      %v2422 = vrot.slane %v2342, %v2421
      %2423 = vset.pattern.permute.xlu0 0
      %2424 = vperm.xlu0 %2423, %v2362
      %v2425 = vpop.permute.xlu0 %2424
      %2427 = vset.pattern.permute.xlu0 0
      %2428 = vperm.xlu0 %2427, %v2366
      %v2429 = vpop.permute.xlu0 %2428
      %2431 = vset.pattern.permute.xlu0 0
      %2432 = vperm.xlu0 %2431, %v2370
      %v2433 = vpop.permute.xlu0 %2432
      %2435 = vset.pattern.permute.xlu0 0
      %2436 = vperm.xlu0 %2435, %v2374
      %v2437 = vpop.permute.xlu0 %2436
      %2439 = vset.pattern.permute.xlu0 0
      %2440 = vperm.xlu0 %2439, %v2378
      %v2441 = vpop.permute.xlu0 %2440
      %2443 = vset.pattern.permute.xlu0 0
      %2444 = vperm.xlu0 %2443, %v2382
      %v2445 = vpop.permute.xlu0 %2444
      %2447 = vset.pattern.permute.xlu0 0
      %2448 = vperm.xlu0 %2447, %v2386
      %v2449 = vpop.permute.xlu0 %2448
      %2451 = vset.pattern.permute.xlu0 0
      %2452 = vperm.xlu0 %2451, %v2390
      %v2453 = vpop.permute.xlu0 %2452
      %2455 = vset.pattern.permute.xlu0 0
      %2456 = vperm.xlu0 %2455, %v2394
      %v2457 = vpop.permute.xlu0 %2456
      %2459 = vset.pattern.permute.xlu0 0
      %2460 = vperm.xlu0 %2459, %v2398
      %v2461 = vpop.permute.xlu0 %2460
      %2463 = vset.pattern.permute.xlu0 0
      %2464 = vperm.xlu0 %2463, %v2402
      %v2465 = vpop.permute.xlu0 %2464
      %2467 = vset.pattern.permute.xlu0 0
      %2468 = vperm.xlu0 %2467, %v2406
      %v2469 = vpop.permute.xlu0 %2468
      %2471 = vset.pattern.permute.xlu0 0
      %2472 = vperm.xlu0 %2471, %v2410
      %v2473 = vpop.permute.xlu0 %2472
      %2475 = vset.pattern.permute.xlu0 0
      %2476 = vperm.xlu0 %2475, %v2414
      %v2477 = vpop.permute.xlu0 %2476
      %2479 = vset.pattern.permute.xlu0 0
      %2480 = vperm.xlu0 %2479, %v2418
      %v2481 = vpop.permute.xlu0 %2480
      %2483 = vset.pattern.permute.xlu0 0
      %2484 = vperm.xlu0 %2483, %v2422
      %v2485 = vpop.permute.xlu0 %2484
      %v2487 = vmul.f32 %v2069, %v2425
      %v2488 = vmul.f32 %v2070, %v2425
      %v2489 = vmul.f32 %v2071, %v2429
      %v2490 = vmul.f32 %v2072, %v2429
      %v2491 = vmul.f32 %v2073, %v2433
      %v2492 = vmul.f32 %v2074, %v2433
      %v2493 = vmul.f32 %v2075, %v2437
      %v2494 = vmul.f32 %v2076, %v2437
      %v2495 = vmul.f32 %v2077, %v2441
      %v2496 = vmul.f32 %v2078, %v2441
      %v2497 = vmul.f32 %v2079, %v2445
      %v2498 = vmul.f32 %v2080, %v2445
      %v2499 = vmul.f32 %v2081, %v2449
      %v2500 = vmul.f32 %v2082, %v2449
      %v2501 = vmul.f32 %v2083, %v2453
      %v2502 = vmul.f32 %v2084, %v2453
      %v2503 = vmul.f32 %v2085, %v2457
      %v2504 = vmul.f32 %v2086, %v2457
      %v2505 = vmul.f32 %v2087, %v2461
      %v2506 = vmul.f32 %v2088, %v2461
      %v2507 = vmul.f32 %v2089, %v2465
      %v2508 = vmul.f32 %v2090, %v2465
      %v2509 = vmul.f32 %v2091, %v2469
      %v2510 = vmul.f32 %v2092, %v2469
      %v2511 = vmul.f32 %v2093, %v2473
      %v2512 = vmul.f32 %v2094, %v2473
      %v2513 = vmul.f32 %v2095, %v2477
      %v2514 = vmul.f32 %v2096, %v2477
      %v2515 = vmul.f32 %v2097, %v2481
      %v2516 = vmul.f32 %v2098, %v2481
      %v2517 = vmul.f32 %v2099, %v2485
      %v2518 = vmul.f32 %v2100, %v2485
      %2551 = vrot.lane.b32.xlu0 %v2487, 127
      %v2552 = vpop.permute.xlu0 %2551
      %2553 = vrot.lane.b32.xlu0 %v2488, 127
      %v2554 = vpop.permute.xlu0 %2553
      %2555 = vrot.lane.b32.xlu0 %v2489, 127
      %v2556 = vpop.permute.xlu0 %2555
      %2557 = vrot.lane.b32.xlu0 %v2490, 127
      %v2558 = vpop.permute.xlu0 %2557
      %2559 = vrot.lane.b32.xlu0 %v2491, 127
      %v2560 = vpop.permute.xlu0 %2559
      %2561 = vrot.lane.b32.xlu0 %v2492, 127
      %v2562 = vpop.permute.xlu0 %2561
      %2563 = vrot.lane.b32.xlu0 %v2493, 127
      %v2564 = vpop.permute.xlu0 %2563
      %2565 = vrot.lane.b32.xlu0 %v2494, 127
      %v2566 = vpop.permute.xlu0 %2565
      %2567 = vrot.lane.b32.xlu0 %v2495, 127
      %v2568 = vpop.permute.xlu0 %2567
      %2569 = vrot.lane.b32.xlu0 %v2496, 127
      %v2570 = vpop.permute.xlu0 %2569
      %2571 = vrot.lane.b32.xlu0 %v2497, 127
      %v2572 = vpop.permute.xlu0 %2571
      %2573 = vrot.lane.b32.xlu0 %v2498, 127
      %v2574 = vpop.permute.xlu0 %2573
      %2575 = vrot.lane.b32.xlu0 %v2499, 127
      %v2576 = vpop.permute.xlu0 %2575
      %2577 = vrot.lane.b32.xlu0 %v2500, 127
      %v2578 = vpop.permute.xlu0 %2577
      %2579 = vrot.lane.b32.xlu0 %v2501, 127
      %v2580 = vpop.permute.xlu0 %2579
      %2581 = vrot.lane.b32.xlu0 %v2502, 127
      %v2582 = vpop.permute.xlu0 %2581
      %2583 = vrot.lane.b32.xlu0 %v2503, 127
      %v2584 = vpop.permute.xlu0 %2583
      %2585 = vrot.lane.b32.xlu0 %v2504, 127
      %v2586 = vpop.permute.xlu0 %2585
      %2587 = vrot.lane.b32.xlu0 %v2505, 127
      %v2588 = vpop.permute.xlu0 %2587
      %2589 = vrot.lane.b32.xlu0 %v2506, 127
      %v2590 = vpop.permute.xlu0 %2589
      %2591 = vrot.lane.b32.xlu0 %v2507, 127
      %v2592 = vpop.permute.xlu0 %2591
      %2593 = vrot.lane.b32.xlu0 %v2508, 127
      %v2594 = vpop.permute.xlu0 %2593
      %2595 = vrot.lane.b32.xlu0 %v2509, 127
      %v2596 = vpop.permute.xlu0 %2595
      %2597 = vrot.lane.b32.xlu0 %v2510, 127
      %v2598 = vpop.permute.xlu0 %2597
      %2599 = vrot.lane.b32.xlu0 %v2511, 127
      %v2600 = vpop.permute.xlu0 %2599
      %2601 = vrot.lane.b32.xlu0 %v2512, 127
      %v2602 = vpop.permute.xlu0 %2601
      %2603 = vrot.lane.b32.xlu0 %v2513, 127
      %v2604 = vpop.permute.xlu0 %2603
      %2605 = vrot.lane.b32.xlu0 %v2514, 127
      %v2606 = vpop.permute.xlu0 %2605
      %2607 = vrot.lane.b32.xlu0 %v2515, 127
      %v2608 = vpop.permute.xlu0 %2607
      %2609 = vrot.lane.b32.xlu0 %v2516, 127
      %v2610 = vpop.permute.xlu0 %2609
      %2611 = vrot.lane.b32.xlu0 %v2517, 127
      %v2612 = vpop.permute.xlu0 %2611
      %2613 = vrot.lane.b32.xlu0 %v2518, 127
      %v2614 = vpop.permute.xlu0 %2613
      %v2647 = vadd.f32 %v2294, %v2552
      %v2648 = vadd.f32 %v2295, %v2554
      %v2649 = vadd.f32 %v2296, %v2556
      %v2650 = vadd.f32 %v2297, %v2558
      %v2651 = vadd.f32 %v2298, %v2560
      %v2652 = vadd.f32 %v2299, %v2562
      %v2653 = vadd.f32 %v2300, %v2564
      %v2654 = vadd.f32 %v2301, %v2566
      %v2655 = vadd.f32 %v2302, %v2568
      %v2656 = vadd.f32 %v2303, %v2570
      %v2657 = vadd.f32 %v2304, %v2572
      %v2658 = vadd.f32 %v2305, %v2574
      %v2659 = vadd.f32 %v2306, %v2576
      %v2660 = vadd.f32 %v2307, %v2578
      %v2661 = vadd.f32 %v2308, %v2580
      %v2662 = vadd.f32 %v2309, %v2582
      %v2663 = vadd.f32 %v2310, %v2584
      %v2664 = vadd.f32 %v2311, %v2586
      %v2665 = vadd.f32 %v2312, %v2588
      %v2666 = vadd.f32 %v2313, %v2590
      %v2667 = vadd.f32 %v2314, %v2592
      %v2668 = vadd.f32 %v2315, %v2594
      %v2669 = vadd.f32 %v2316, %v2596
      %v2670 = vadd.f32 %v2317, %v2598
      %v2671 = vadd.f32 %v2318, %v2600
      %v2672 = vadd.f32 %v2319, %v2602
      %v2673 = vadd.f32 %v2320, %v2604
      %v2674 = vadd.f32 %v2321, %v2606
      %v2675 = vadd.f32 %v2322, %v2608
      %v2676 = vadd.f32 %v2323, %v2610
      %v2677 = vadd.f32 %v2324, %v2612
      %v2678 = vadd.f32 %v2325, %v2614
      %s2679 = scalar_lea.vmem %s1, 128
      %v2680 = vld [vmem:[%s2679] sm:$0x1]
      %v2681 = vld [vmem:[%s2679 + $0x1] sm:$0x1]
      %v2682 = vld [vmem:[%s2679 + $0x2] sm:$0x1]
      %v2683 = vld [vmem:[%s2679 + $0x3] sm:$0x1]
      %v2684 = vld [vmem:[%s2679 + $0x4] sm:$0x1]
      %v2685 = vld [vmem:[%s2679 + $0x5] sm:$0x1]
      %v2686 = vld [vmem:[%s2679 + $0x6] sm:$0x1]
      %v2687 = vld [vmem:[%s2679 + $0x7] sm:$0x1]
      %v2688 = vld [vmem:[%s2679 + $0x8] sm:$0x1]
      %v2689 = vld [vmem:[%s2679 + $0x9] sm:$0x1]
      %v2690 = vld [vmem:[%s2679 + $0xa] sm:$0x1]
      %v2691 = vld [vmem:[%s2679 + $0xb] sm:$0x1]
      %v2692 = vld [vmem:[%s2679 + $0xc] sm:$0x1]
      %v2693 = vld [vmem:[%s2679 + $0xd] sm:$0x1]
      %v2694 = vld [vmem:[%s2679 + $0xe] sm:$0x1]
      %v2695 = vld [vmem:[%s2679 + $0xf] sm:$0x1]
      %v2712 = vlaneseq
      %v2713 = vshrl.u32 %v2712, 7
      %v2714 = vsub.s32 0, %v2713
      %v2715 = vrot.slane %v2680, %v2714
      %v2716 = vlaneseq
      %v2717 = vshrl.u32 %v2716, 7
      %v2718 = vsub.s32 0, %v2717
      %v2719 = vrot.slane %v2681, %v2718
      %v2720 = vlaneseq
      %v2721 = vshrl.u32 %v2720, 7
      %v2722 = vsub.s32 0, %v2721
      %v2723 = vrot.slane %v2682, %v2722
      %v2724 = vlaneseq
      %v2725 = vshrl.u32 %v2724, 7
      %v2726 = vsub.s32 0, %v2725
      %v2727 = vrot.slane %v2683, %v2726
      %v2728 = vlaneseq
      %v2729 = vshrl.u32 %v2728, 7
      %v2730 = vsub.s32 0, %v2729
      %v2731 = vrot.slane %v2684, %v2730
      %v2732 = vlaneseq
      %v2733 = vshrl.u32 %v2732, 7
      %v2734 = vsub.s32 0, %v2733
      %v2735 = vrot.slane %v2685, %v2734
      %v2736 = vlaneseq
      %v2737 = vshrl.u32 %v2736, 7
      %v2738 = vsub.s32 0, %v2737
      %v2739 = vrot.slane %v2686, %v2738
      %v2740 = vlaneseq
      %v2741 = vshrl.u32 %v2740, 7
      %v2742 = vsub.s32 0, %v2741
      %v2743 = vrot.slane %v2687, %v2742
      %v2744 = vlaneseq
      %v2745 = vshrl.u32 %v2744, 7
      %v2746 = vsub.s32 0, %v2745
      %v2747 = vrot.slane %v2688, %v2746
      %v2748 = vlaneseq
      %v2749 = vshrl.u32 %v2748, 7
      %v2750 = vsub.s32 0, %v2749
      %v2751 = vrot.slane %v2689, %v2750
      %v2752 = vlaneseq
      %v2753 = vshrl.u32 %v2752, 7
      %v2754 = vsub.s32 0, %v2753
      %v2755 = vrot.slane %v2690, %v2754
      %v2756 = vlaneseq
      %v2757 = vshrl.u32 %v2756, 7
      %v2758 = vsub.s32 0, %v2757
      %v2759 = vrot.slane %v2691, %v2758
      %v2760 = vlaneseq
      %v2761 = vshrl.u32 %v2760, 7
      %v2762 = vsub.s32 0, %v2761
      %v2763 = vrot.slane %v2692, %v2762
      %v2764 = vlaneseq
      %v2765 = vshrl.u32 %v2764, 7
      %v2766 = vsub.s32 0, %v2765
      %v2767 = vrot.slane %v2693, %v2766
      %v2768 = vlaneseq
      %v2769 = vshrl.u32 %v2768, 7
      %v2770 = vsub.s32 0, %v2769
      %v2771 = vrot.slane %v2694, %v2770
      %v2772 = vlaneseq
      %v2773 = vshrl.u32 %v2772, 7
      %v2774 = vsub.s32 0, %v2773
      %v2775 = vrot.slane %v2695, %v2774
      %2776 = vset.pattern.permute.xlu0 0
      %2777 = vperm.xlu0 %2776, %v2715
      %v2778 = vpop.permute.xlu0 %2777
      %2780 = vset.pattern.permute.xlu0 0
      %2781 = vperm.xlu0 %2780, %v2719
      %v2782 = vpop.permute.xlu0 %2781
      %2784 = vset.pattern.permute.xlu0 0
      %2785 = vperm.xlu0 %2784, %v2723
      %v2786 = vpop.permute.xlu0 %2785
      %2788 = vset.pattern.permute.xlu0 0
      %2789 = vperm.xlu0 %2788, %v2727
      %v2790 = vpop.permute.xlu0 %2789
      %2792 = vset.pattern.permute.xlu0 0
      %2793 = vperm.xlu0 %2792, %v2731
      %v2794 = vpop.permute.xlu0 %2793
      %2796 = vset.pattern.permute.xlu0 0
      %2797 = vperm.xlu0 %2796, %v2735
      %v2798 = vpop.permute.xlu0 %2797
      %2800 = vset.pattern.permute.xlu0 0
      %2801 = vperm.xlu0 %2800, %v2739
      %v2802 = vpop.permute.xlu0 %2801
      %2804 = vset.pattern.permute.xlu0 0
      %2805 = vperm.xlu0 %2804, %v2743
      %v2806 = vpop.permute.xlu0 %2805
      %2808 = vset.pattern.permute.xlu0 0
      %2809 = vperm.xlu0 %2808, %v2747
      %v2810 = vpop.permute.xlu0 %2809
      %2812 = vset.pattern.permute.xlu0 0
      %2813 = vperm.xlu0 %2812, %v2751
      %v2814 = vpop.permute.xlu0 %2813
      %2816 = vset.pattern.permute.xlu0 0
      %2817 = vperm.xlu0 %2816, %v2755
      %v2818 = vpop.permute.xlu0 %2817
      %2820 = vset.pattern.permute.xlu0 0
      %2821 = vperm.xlu0 %2820, %v2759
      %v2822 = vpop.permute.xlu0 %2821
      %2824 = vset.pattern.permute.xlu0 0
      %2825 = vperm.xlu0 %2824, %v2763
      %v2826 = vpop.permute.xlu0 %2825
      %2828 = vset.pattern.permute.xlu0 0
      %2829 = vperm.xlu0 %2828, %v2767
      %v2830 = vpop.permute.xlu0 %2829
      %2832 = vset.pattern.permute.xlu0 0
      %2833 = vperm.xlu0 %2832, %v2771
      %v2834 = vpop.permute.xlu0 %2833
      %2836 = vset.pattern.permute.xlu0 0
      %2837 = vperm.xlu0 %2836, %v2775
      %v2838 = vpop.permute.xlu0 %2837
      %v2840 = vmul.f32 %v2069, %v2778
      %v2841 = vmul.f32 %v2070, %v2778
      %v2842 = vmul.f32 %v2071, %v2782
      %v2843 = vmul.f32 %v2072, %v2782
      %v2844 = vmul.f32 %v2073, %v2786
      %v2845 = vmul.f32 %v2074, %v2786
      %v2846 = vmul.f32 %v2075, %v2790
      %v2847 = vmul.f32 %v2076, %v2790
      %v2848 = vmul.f32 %v2077, %v2794
      %v2849 = vmul.f32 %v2078, %v2794
      %v2850 = vmul.f32 %v2079, %v2798
      %v2851 = vmul.f32 %v2080, %v2798
      %v2852 = vmul.f32 %v2081, %v2802
      %v2853 = vmul.f32 %v2082, %v2802
      %v2854 = vmul.f32 %v2083, %v2806
      %v2855 = vmul.f32 %v2084, %v2806
      %v2856 = vmul.f32 %v2085, %v2810
      %v2857 = vmul.f32 %v2086, %v2810
      %v2858 = vmul.f32 %v2087, %v2814
      %v2859 = vmul.f32 %v2088, %v2814
      %v2860 = vmul.f32 %v2089, %v2818
      %v2861 = vmul.f32 %v2090, %v2818
      %v2862 = vmul.f32 %v2091, %v2822
      %v2863 = vmul.f32 %v2092, %v2822
      %v2864 = vmul.f32 %v2093, %v2826
      %v2865 = vmul.f32 %v2094, %v2826
      %v2866 = vmul.f32 %v2095, %v2830
      %v2867 = vmul.f32 %v2096, %v2830
      %v2868 = vmul.f32 %v2097, %v2834
      %v2869 = vmul.f32 %v2098, %v2834
      %v2870 = vmul.f32 %v2099, %v2838
      %v2871 = vmul.f32 %v2100, %v2838
      %2904 = vrot.lane.b32.xlu0 %v2840, 126
      %v2905 = vpop.permute.xlu0 %2904
      %2906 = vrot.lane.b32.xlu0 %v2841, 126
      %v2907 = vpop.permute.xlu0 %2906
      %2908 = vrot.lane.b32.xlu0 %v2842, 126
      %v2909 = vpop.permute.xlu0 %2908
      %2910 = vrot.lane.b32.xlu0 %v2843, 126
      %v2911 = vpop.permute.xlu0 %2910
      %2912 = vrot.lane.b32.xlu0 %v2844, 126
      %v2913 = vpop.permute.xlu0 %2912
      %2914 = vrot.lane.b32.xlu0 %v2845, 126
      %v2915 = vpop.permute.xlu0 %2914
      %2916 = vrot.lane.b32.xlu0 %v2846, 126
      %v2917 = vpop.permute.xlu0 %2916
      %2918 = vrot.lane.b32.xlu0 %v2847, 126
      %v2919 = vpop.permute.xlu0 %2918
      %2920 = vrot.lane.b32.xlu0 %v2848, 126
      %v2921 = vpop.permute.xlu0 %2920
      %2922 = vrot.lane.b32.xlu0 %v2849, 126
      %v2923 = vpop.permute.xlu0 %2922
      %2924 = vrot.lane.b32.xlu0 %v2850, 126
      %v2925 = vpop.permute.xlu0 %2924
      %2926 = vrot.lane.b32.xlu0 %v2851, 126
      %v2927 = vpop.permute.xlu0 %2926
      %2928 = vrot.lane.b32.xlu0 %v2852, 126
      %v2929 = vpop.permute.xlu0 %2928
      %2930 = vrot.lane.b32.xlu0 %v2853, 126
      %v2931 = vpop.permute.xlu0 %2930
      %2932 = vrot.lane.b32.xlu0 %v2854, 126
      %v2933 = vpop.permute.xlu0 %2932
      %2934 = vrot.lane.b32.xlu0 %v2855, 126
      %v2935 = vpop.permute.xlu0 %2934
      %2936 = vrot.lane.b32.xlu0 %v2856, 126
      %v2937 = vpop.permute.xlu0 %2936
      %2938 = vrot.lane.b32.xlu0 %v2857, 126
      %v2939 = vpop.permute.xlu0 %2938
      %2940 = vrot.lane.b32.xlu0 %v2858, 126
      %v2941 = vpop.permute.xlu0 %2940
      %2942 = vrot.lane.b32.xlu0 %v2859, 126
      %v2943 = vpop.permute.xlu0 %2942
      %2944 = vrot.lane.b32.xlu0 %v2860, 126
      %v2945 = vpop.permute.xlu0 %2944
      %2946 = vrot.lane.b32.xlu0 %v2861, 126
      %v2947 = vpop.permute.xlu0 %2946
      %2948 = vrot.lane.b32.xlu0 %v2862, 126
      %v2949 = vpop.permute.xlu0 %2948
      %2950 = vrot.lane.b32.xlu0 %v2863, 126
      %v2951 = vpop.permute.xlu0 %2950
      %2952 = vrot.lane.b32.xlu0 %v2864, 126
      %v2953 = vpop.permute.xlu0 %2952
      %2954 = vrot.lane.b32.xlu0 %v2865, 126
      %v2955 = vpop.permute.xlu0 %2954
      %2956 = vrot.lane.b32.xlu0 %v2866, 126
      %v2957 = vpop.permute.xlu0 %2956
      %2958 = vrot.lane.b32.xlu0 %v2867, 126
      %v2959 = vpop.permute.xlu0 %2958
      %2960 = vrot.lane.b32.xlu0 %v2868, 126
      %v2961 = vpop.permute.xlu0 %2960
      %2962 = vrot.lane.b32.xlu0 %v2869, 126
      %v2963 = vpop.permute.xlu0 %2962
      %2964 = vrot.lane.b32.xlu0 %v2870, 126
      %v2965 = vpop.permute.xlu0 %2964
      %2966 = vrot.lane.b32.xlu0 %v2871, 126
      %v2967 = vpop.permute.xlu0 %2966
      %v3000 = vadd.f32 %v2647, %v2905
      %v3001 = vadd.f32 %v2648, %v2907
      %v3002 = vadd.f32 %v2649, %v2909
      %v3003 = vadd.f32 %v2650, %v2911
      %v3004 = vadd.f32 %v2651, %v2913
      %v3005 = vadd.f32 %v2652, %v2915
      %v3006 = vadd.f32 %v2653, %v2917
      %v3007 = vadd.f32 %v2654, %v2919
      %v3008 = vadd.f32 %v2655, %v2921
      %v3009 = vadd.f32 %v2656, %v2923
      %v3010 = vadd.f32 %v2657, %v2925
      %v3011 = vadd.f32 %v2658, %v2927
      %v3012 = vadd.f32 %v2659, %v2929
      %v3013 = vadd.f32 %v2660, %v2931
      %v3014 = vadd.f32 %v2661, %v2933
      %v3015 = vadd.f32 %v2662, %v2935
      %v3016 = vadd.f32 %v2663, %v2937
      %v3017 = vadd.f32 %v2664, %v2939
      %v3018 = vadd.f32 %v2665, %v2941
      %v3019 = vadd.f32 %v2666, %v2943
      %v3020 = vadd.f32 %v2667, %v2945
      %v3021 = vadd.f32 %v2668, %v2947
      %v3022 = vadd.f32 %v2669, %v2949
      %v3023 = vadd.f32 %v2670, %v2951
      %v3024 = vadd.f32 %v2671, %v2953
      %v3025 = vadd.f32 %v2672, %v2955
      %v3026 = vadd.f32 %v2673, %v2957
      %v3027 = vadd.f32 %v2674, %v2959
      %v3028 = vadd.f32 %v2675, %v2961
      %v3029 = vadd.f32 %v2676, %v2963
      %v3030 = vadd.f32 %v2677, %v2965
      %v3031 = vadd.f32 %v2678, %v2967
      %vm3032 = vcmask 130048
      %3033 = vst.msk [vmem:[%s143] sm:$0xff] %vm3032, %v3000
      %3034 = vst.msk [vmem:[%s143 + $0x8] sm:$0xff] %vm3032, %v3001
      %3035 = vst.msk [vmem:[%s143 + $0x10] sm:$0xff] %vm3032, %v3002
      %3036 = vst.msk [vmem:[%s143 + $0x18] sm:$0xff] %vm3032, %v3003
      %3037 = vst.msk [vmem:[%s143 + $0x20] sm:$0xff] %vm3032, %v3004
      %3038 = vst.msk [vmem:[%s143 + $0x28] sm:$0xff] %vm3032, %v3005
      %3039 = vst.msk [vmem:[%s143 + $0x30] sm:$0xff] %vm3032, %v3006
      %3040 = vst.msk [vmem:[%s143 + $0x38] sm:$0xff] %vm3032, %v3007
      %3041 = vst.msk [vmem:[%s143 + $0x40] sm:$0xff] %vm3032, %v3008
      %3042 = vst.msk [vmem:[%s143 + $0x48] sm:$0xff] %vm3032, %v3009
      %3043 = vst.msk [vmem:[%s143 + $0x50] sm:$0xff] %vm3032, %v3010
      %3044 = vst.msk [vmem:[%s143 + $0x58] sm:$0xff] %vm3032, %v3011
      %3045 = vst.msk [vmem:[%s143 + $0x60] sm:$0xff] %vm3032, %v3012
      %3046 = vst.msk [vmem:[%s143 + $0x68] sm:$0xff] %vm3032, %v3013
      %3047 = vst.msk [vmem:[%s143 + $0x70] sm:$0xff] %vm3032, %v3014
      %3048 = vst.msk [vmem:[%s143 + $0x78] sm:$0xff] %vm3032, %v3015
      %3049 = vst.msk [vmem:[%s143 + $0x80] sm:$0xff] %vm3032, %v3016
      %3050 = vst.msk [vmem:[%s143 + $0x88] sm:$0xff] %vm3032, %v3017
      %3051 = vst.msk [vmem:[%s143 + $0x90] sm:$0xff] %vm3032, %v3018
      %3052 = vst.msk [vmem:[%s143 + $0x98] sm:$0xff] %vm3032, %v3019
      %3053 = vst.msk [vmem:[%s143 + $0xa0] sm:$0xff] %vm3032, %v3020
      %3054 = vst.msk [vmem:[%s143 + $0xa8] sm:$0xff] %vm3032, %v3021
      %3055 = vst.msk [vmem:[%s143 + $0xb0] sm:$0xff] %vm3032, %v3022
      %3056 = vst.msk [vmem:[%s143 + $0xb8] sm:$0xff] %vm3032, %v3023
      %3057 = vst.msk [vmem:[%s143 + $0xc0] sm:$0xff] %vm3032, %v3024
      %3058 = vst.msk [vmem:[%s143 + $0xc8] sm:$0xff] %vm3032, %v3025
      %3059 = vst.msk [vmem:[%s143 + $0xd0] sm:$0xff] %vm3032, %v3026
      %3060 = vst.msk [vmem:[%s143 + $0xd8] sm:$0xff] %vm3032, %v3027
      %3061 = vst.msk [vmem:[%s143 + $0xe0] sm:$0xff] %vm3032, %v3028
      %3062 = vst.msk [vmem:[%s143 + $0xe8] sm:$0xff] %vm3032, %v3029
      %3063 = vst.msk [vmem:[%s143 + $0xf0] sm:$0xff] %vm3032, %v3030
      %3064 = vst.msk [vmem:[%s143 + $0xf8] sm:$0xff] %vm3032, %v3031
      %p3065 = scmp.lt.s32.totalorder %s13, 1
      %s3066 = scalar_select %p3065, %s13, 1
      %s3067 = smul.addr %s3066, 32
      %s3068 = smul.addr %s3067, 8
      %s3069 = scalar_lea.vmem %s2, %s3068
      // Predicated region
      $region29: #{a_call__.4} parent=27 // pred_check
        %p3070 = pneg %p78
      $region30: #{a_call__.4} parent=27 // pred_check_branch
        %3072 = sbr.rel (%p3070) target = $region32
      $region31: #{a_call__.4} parent=27 // pred_region
        _
      $region32: #{a_call__.4} parent=27 // pred_fallthru
        _
    $region28: #{a_call__.4} parent=5 // pred_fallthru
      _
    %p3073 = scmp.le.s32.totalorder 2, %s8
    // Predicated region
    $region33: #{a_call__.4} parent=5 // pred_check
      %p3074 = pneg %p3073
    $region34: #{a_call__.4} parent=5 // pred_check_branch
      %3076 = sbr.rel (%p3074) target = $region36
    $region35: #{a_call__.4} parent=5 // pred_region
      %s3077 = ssub.s32 %s8, 2
      // Predicated region
      $region37: #{a_call__.4} parent=35 // pred_check
        %p3078 = pneg %p84
      $region38: #{a_call__.4} parent=35 // pred_check_branch
        %3080 = sbr.rel (%p3078) target = $region40
      $region39: #{a_call__.4} parent=35 // pred_region
        %p3081 = scmp.lt.s32.totalorder %s14, 1
        %s3082 = scalar_select %p3081, %s14, 1
        %s3083 = smul.addr %s3082, 32
        %s3084 = smul.addr %s3083, 8
        %s3085 = scalar_lea.vmem %s2, %s3084
      $region40: #{a_call__.4} parent=35 // pred_fallthru
        _
    $region36: #{a_call__.4} parent=5 // pred_fallthru
      _
  $region6: #{a_call__.4} parent=0 // loop_footer
    %s12 = sadd.s32 1, %s8
  $region7: #{a_call__.4} parent=0 // loop_footer_branch
    %7 = sbr.rel target = $region3
  $region8: #{a_call__.4} parent=0 // loop_exit
    _

</llo_original>
